<compile_context>
chip_gen: v7x
topology: tpu7x:2x2x1
jax: 0.10.0
libtpu: 0.0.40
codegen_flags: <defaults>
</compile_context>

<pallas_src>
import functools

import jax
import jax.numpy as jnp
from jax import lax
from jax.experimental import pallas as pl
from jax.experimental.pallas import tpu as pltpu


def _conv3x3_bn_relu(x_flat, n_rows, W, w_ref, s_ref, b_ref, compute_dtype):
    """3x3 same-conv + folded BN + ReLU over a flattened (n_rows*W, Cin) strip.

    Rows are flattened row-major (row*W + col). Horizontal zero padding is handled by
    0/1 column masks; vertical padding is the caller's job (zeroed halo rows). Output
    rows 0 and n_rows-1 are garbage and must be discarded by the caller.
    Returns f32 (n_rows*W, Cout).
    """
    R = n_rows * W
    Cin = x_flat.shape[1]
    Cout = w_ref.shape[2]

    # 0/1 column masks (f32) for the dx==0 / dx==2 taps. Built from a 3D iota so no
    # vector remainder/division is needed; the trailing reshape only merges leading dims.
    colw = lax.broadcasted_iota(jnp.int32, (n_rows, W, 1), 1)
    not_left = (colw != 0).astype(jnp.float32).reshape(R, 1)
    not_right = (colw != W - 1).astype(jnp.float32).reshape(R, 1)

    acc = jnp.zeros((R, Cout), jnp.float32)
    for dy in range(3):
        for dx in range(3):
            off = (dy - 1) * W + (dx - 1)
            # lhs[p] = x_flat[p + off]: the input pixel tap (dy,dx) reads for output p.
            # The roll runs on the (otherwise idle) XLU in f32; cyclic wraparound only
            # touches rows/columns that are masked here or discarded by the caller.
            lhs = pltpu.roll(x_flat, shift=(-off) % R, axis=0) if off else x_flat
            if dx == 0:
                lhs = lhs * not_left
            elif dx == 2:
                lhs = lhs * not_right
            # TODO(synk): pad K(=C)/N(=Cout) to 128/256 multiples for MXU occupancy when
            # channels are large but misaligned.
            acc = acc + jnp.dot(lhs.astype(compute_dtype), w_ref[dy * 3 + dx],
                                preferred_element_type=jnp.float32)
    # Folded BatchNorm (affine) + ReLU epilogue, kept in f32.
    return jnp.maximum(acc * s_ref[...] + b_ref[...], 0.0)


def decoder_block_kernel(x_ref, w1_ref, s1_ref, b1_ref, w2_ref, s2_ref, b2_ref, o_ref,
                         *, H, W, strip_rows, compute_dtype):
    """Fused DecoderBlock forward for one (image, row-strip) grid point.

    x_ref : (1, H*W, Cin)        full image, flattened spatial (stays VMEM-resident
                                 across the strip axis of the grid)
    w1_ref: (9, Cin, Cout)       conv1 weights, tap index t = dy*3 + dx
    s1/b1 : (1, Cout)            folded BN1 scale / bias (conv bias folded in)
    w2_ref: (9, Cout, Cout)      conv2 weights
    s2/b2 : (1, Cout)            folded BN2 scale / bias
    o_ref : (1, strip_rows*W, Cout)  output strip
    """
    Cin = x_ref.shape[2]
    Cout = o_ref.shape[2]
    TH = strip_rows
    S = H // TH
    P = TH + 4          # input rows incl. 2-row recompute halo per side
    Q = TH + 2          # intermediate rows incl. 1-row halo per side

    s = pl.program_id(1)
    r0 = s * TH         # first output row of this strip

    # ---- gather the input strip (TH+4 rows) as one flattened f32 value; halo rows that
    # fall outside the image are zeroed with a scalar multiplier (no memset). -----------
    top_start = pl.multiple_of(jnp.maximum(r0 - 2, 0) * W, W)
    mid_start = pl.multiple_of(r0 * W, W)
    bot_start = pl.multiple_of(jnp.minimum(r0 + TH, H - 2) * W, W)

    top = x_ref[0, pl.ds(top_start, 2 * W), :].astype(jnp.float32)
    top = top * jnp.where(s == 0, 0.0, 1.0)
    mid = x_ref[0, pl.ds(mid_start, TH * W), :].astype(jnp.float32)
    bot = x_ref[0, pl.ds(bot_start, 2 * W), :].astype(jnp.float32)
    bot = bot * jnp.where(s == S - 1, 0.0, 1.0)
    xs = jnp.concatenate([top, mid, bot], axis=0)            # (P*W, Cin) f32

    # ---- stage 1: conv1 + folded BN1 + ReLU over the TH+2 intermediate rows -----------
    y1 = _conv3x3_bn_relu(xs, P, W, w1_ref, s1_ref, b1_ref, compute_dtype)
    y1 = y1[W:W + Q * W, :]                                   # rows r0-1 .. r0+TH
    # Zero intermediate rows outside the image (they are conv2's zero padding).
    row = lax.broadcasted_iota(jnp.int32, (Q, W, 1), 0)
    g = r0 - 1 + row
    valid = jnp.logical_and(g >= 0, g < H).astype(jnp.float32).reshape(Q * W, 1)
    y1 = y1 * valid

    # Dropout2d is the identity in eval mode.
    # TODO(synk): training-mode Dropout2d (random channel zeroing) not implemented.

    # ---- stage 2: conv2 + folded BN2 + ReLU over the TH output rows --------------------
    y2 = _conv3x3_bn_relu(y1, Q, W, w2_ref, s2_ref, b2_ref, compute_dtype)
    o_ref[0, :, :] = y2[W:W + TH * W, :].astype(o_ref.dtype)


def fold_bn(gamma, beta, running_mean, running_var, conv_bias, eps=1e-5):
    scale = gamma / jnp.sqrt(running_var + eps)
    bias = beta - running_mean * scale + conv_bias * scale
    return scale.astype(jnp.float32), bias.astype(jnp.float32)


def _prep_weight(w_oihw, dtype):
    """PyTorch (Cout, Cin, 3, 3) -> (9, Cin, Cout), tap index t = dy*3 + dx."""
    cout, cin = w_oihw.shape[0], w_oihw.shape[1]
    return jnp.transpose(w_oihw, (2, 3, 1, 0)).reshape(9, cin, cout).astype(dtype)


def _choose_strip_rows(H):
    """Largest of {32, 16, 8} that splits H into >= 2 strips, else the full height."""
    for th in (32, 16, 8):
        if H % th == 0 and H // th >= 2:
            return th
    return H


def _vmem_limit_bytes():
    """Per-generation VMEM budget (v7x has 64 MiB/TC; v5e/v6e have 128 MiB)."""
    try:
        cap = int(pltpu.get_tpu_info().vmem_capacity_bytes)
    except Exception:
        cap = 64 * 1024 * 1024
    return int(max(32 * 1024 * 1024, min(cap * 3 // 4, 96 * 1024 * 1024)))


def decoder_block_forward_nhwc(x_nhwc, params, *, compute_dtype=jnp.bfloat16,
                               strip_rows=None):
    """Fused DecoderBlock forward (eval mode), NHWC in / NHWC out."""
    N, H, W, Cin = x_nhwc.shape
    Cout = params["conv1_w"].shape[0]
    assert H >= 2, "kernel assumes at least 2 image rows"
    if strip_rows is None:
        strip_rows = _choose_strip_rows(H)
    assert H % strip_rows == 0
    assert strip_rows == H or (strip_rows * W) % 8 == 0
    S = H // strip_rows

    w1 = _prep_weight(params["conv1_w"], compute_dtype)          # (9, Cin, Cout)
    w2 = _prep_weight(params["conv2_w"], compute_dtype)          # (9, Cout, Cout)
    s1, b1 = fold_bn(params["bn1_gamma"], params["bn1_beta"],
                     params["bn1_mean"], params["bn1_var"], params["conv1_b"])
    s2, b2 = fold_bn(params["bn2_gamma"], params["bn2_beta"],
                     params["bn2_mean"], params["bn2_var"], params["conv2_b"])

    kernel = functools.partial(decoder_block_kernel, H=H, W=W,
                               strip_rows=strip_rows, compute_dtype=compute_dtype)

    x_flat = x_nhwc.reshape(N, H * W, Cin)
    out_flat = pl.pallas_call(
        kernel,
        out_shape=jax.ShapeDtypeStruct((N, H * W, Cout), x_nhwc.dtype),
        grid=(N, S),
        in_specs=[
            pl.BlockSpec((1, H * W, Cin), lambda n, s: (n, 0, 0)),
            pl.BlockSpec((9, Cin, Cout), lambda n, s: (0, 0, 0)),
            pl.BlockSpec((1, Cout), lambda n, s: (0, 0)),
            pl.BlockSpec((1, Cout), lambda n, s: (0, 0)),
            pl.BlockSpec((9, Cout, Cout), lambda n, s: (0, 0, 0)),
            pl.BlockSpec((1, Cout), lambda n, s: (0, 0)),
            pl.BlockSpec((1, Cout), lambda n, s: (0, 0)),
        ],
        out_specs=pl.BlockSpec((1, strip_rows * W, Cout), lambda n, s: (n, s, 0)),
        compiler_params=pltpu.CompilerParams(
            dimension_semantics=("parallel", "parallel"),
            vmem_limit_bytes=_vmem_limit_bytes(),
        ),
    )(x_flat, w1, s1.reshape(1, -1), b1.reshape(1, -1),
      w2, s2.reshape(1, -1), b2.reshape(1, -1))
    # TODO(synk): for Cout < 128 a lane-dense (N, H, W*Cout) output packing would cut
    # masked-store traffic further; omitted to avoid an in-kernel cross-lane relayout.
    return out_flat.reshape(N, H, W, Cout)


def decoder_block_forward(x_nchw, params, *, compute_dtype=jnp.bfloat16, strip_rows=None):
    """PyTorch-parity wrapper: NCHW in / NCHW out (eval mode). Layout transposes exist
    only at this boundary; an NHWC network should call decoder_block_forward_nhwc."""
    x = jnp.transpose(x_nchw, (0, 2, 3, 1))                  # NCHW -> NHWC
    y = decoder_block_forward_nhwc(x, params, compute_dtype=compute_dtype,
                                   strip_rows=strip_rows)
    return jnp.transpose(y, (0, 3, 1, 2))                    # NHWC -> NCHW


def init_params(key, in_channels, out_channels):
    k = jax.random.split(key, 4)

    def conv_init(kk, cin, cout):
        bound = 1.0 / jnp.sqrt(cin * 9.0)
        return jax.random.uniform(kk, (cout, cin, 3, 3), jnp.float32, -bound, bound)

    return {
        "conv1_w": conv_init(k[0], in_channels, out_channels),
        "conv1_b": jax.random.uniform(k[1], (out_channels,), jnp.float32, -0.1, 0.1),
        "conv2_w": conv_init(k[2], out_channels, out_channels),
        "conv2_b": jax.random.uniform(k[3], (out_channels,), jnp.float32, -0.1, 0.1),
        "bn1_gamma": jnp.ones((out_channels,), jnp.float32),
        "bn1_beta": jnp.zeros((out_channels,), jnp.float32),
        "bn1_mean": 0.05 * jnp.arange(out_channels, dtype=jnp.float32),
        "bn1_var": 1.0 + 0.1 * jnp.ones((out_channels,), jnp.float32),
        "bn2_gamma": 0.5 + 0.1 * jnp.arange(out_channels, dtype=jnp.float32),
        "bn2_beta": 0.01 * jnp.arange(out_channels, dtype=jnp.float32),
        "bn2_mean": jnp.zeros((out_channels,), jnp.float32),
        "bn2_var": jnp.ones((out_channels,), jnp.float32),
    }


def reference_forward(x_nchw, params, *, cast_dtype=None):
    """Pure-JAX reference (lax conv, NCHW/OIHW). cast_dtype=bfloat16 mimics the kernel's
    bf16-operand / f32-accumulate path so the bf16 check can use a tight tolerance."""

    def conv(x, w, b):
        if cast_dtype is not None:
            x = x.astype(cast_dtype)
            w = w.astype(cast_dtype)
        y = lax.conv_general_dilated(
            x, w, window_strides=(1, 1), padding=((1, 1), (1, 1)),
            dimension_numbers=("NCHW", "OIHW", "NCHW"),
            preferred_element_type=jnp.float32)
        return y + b[None, :, None, None]

    def bn(x, g, be, m, v, eps=1e-5):
        return (x - m[None, :, None, None]) / jnp.sqrt(v + eps)[None, :, None, None] \
               * g[None, :, None, None] + be[None, :, None, None]

    x = conv(x_nchw, params["conv1_w"], params["conv1_b"])
    x = jax.nn.relu(bn(x, params["bn1_gamma"], params["bn1_beta"],
                       params["bn1_mean"], params["bn1_var"]))
    x = conv(x, params["conv2_w"], params["conv2_b"])
    x = jax.nn.relu(bn(x, params["bn2_gamma"], params["bn2_beta"],
                       params["bn2_mean"], params["bn2_var"]))
    return x


if __name__ == "__main__":
    key = jax.random.PRNGKey(0)
    kx, kp = jax.random.split(key)

    N, Cin, Cout, H, W = 2, 4, 8, 16, 16
    x = jax.random.normal(kx, (N, Cin, H, W), jnp.float32)    # PyTorch NCHW input
    params = init_params(kp, Cin, Cout)

    ref32 = reference_forward(x, params)

    # f32 MXU operands, multi-strip grid (2 row strips of 8): strict check.
    out32 = jax.block_until_ready(
        decoder_block_forward(x, params, compute_dtype=jnp.float32))
    assert out32.shape == (N, Cout, H, W)
    assert jnp.allclose(out32, ref32, atol=1e-4, rtol=1e-4), "f32 mismatch vs reference"

    # Single-strip (whole image) path.
    out32_one = jax.block_until_ready(
        decoder_block_forward(x, params, compute_dtype=jnp.float32, strip_rows=H))
    assert jnp.allclose(out32_one, ref32, atol=1e-4, rtol=1e-4), "single-strip mismatch"

    # Default bf16 MXU operands (f32 accumulate + epilogue) vs a bf16-cast reference.
    out_bf16 = jax.block_until_ready(decoder_block_forward(x, params))
    ref_bf16 = reference_forward(x, params, cast_dtype=jnp.bfloat16)
    assert jnp.allclose(out_bf16, ref_bf16, atol=1e-2, rtol=1e-2), "bf16 mismatch vs reference"

    print("KERNEL_OK")
</pallas_src>

<mosaic_0001>
module attributes {stable_mosaic.version = 11 : i64} {
  func.func @decoder_block_kernel(%arg0: i32, %arg1: i32, %arg2: memref<1x256x4xf32, #tpu.memory_space<vmem>>, %arg3: memref<9x4x8xf32, #tpu.memory_space<vmem>>, %arg4: memref<1x8xf32, #tpu.memory_space<vmem>>, %arg5: memref<1x8xf32, #tpu.memory_space<vmem>>, %arg6: memref<9x8x8xf32, #tpu.memory_space<vmem>>, %arg7: memref<1x8xf32, #tpu.memory_space<vmem>>, %arg8: memref<1x8xf32, #tpu.memory_space<vmem>>, %arg9: memref<1x128x8xf32, #tpu.memory_space<vmem>>) attributes {dimension_semantics = [#tpu.dimension_semantics<parallel>, #tpu.dimension_semantics<parallel>], iteration_bounds = array<i64: 2, 2>, scalar_prefetch = 0 : i64, scratch_operands = 0 : i64, tpu.core_type = #tpu.core_type<tc>, window_params = [{transform_indices = @transform_0, window_bounds = array<i64: 1, 256, 4>}, {pipeline_mode = #tpu.pipeline_mode<synchronous>, transform_indices = @transform_1, window_bounds = array<i64: 9, 4, 8>}, {pipeline_mode = #tpu.pipeline_mode<synchronous>, transform_indices = @transform_2, window_bounds = array<i64: 1, 8>}, {pipeline_mode = #tpu.pipeline_mode<synchronous>, transform_indices = @transform_3, window_bounds = array<i64: 1, 8>}, {pipeline_mode = #tpu.pipeline_mode<synchronous>, transform_indices = @transform_4, window_bounds = array<i64: 9, 8, 8>}, {pipeline_mode = #tpu.pipeline_mode<synchronous>, transform_indices = @transform_5, window_bounds = array<i64: 1, 8>}, {pipeline_mode = #tpu.pipeline_mode<synchronous>, transform_indices = @transform_6, window_bounds = array<i64: 1, 8>}, {transform_indices = @transform_7, window_bounds = array<i64: 1, 128, 8>}]} {
    %c8_i32 = arith.constant 8 : i32
    %0 = arith.muli %arg1, %c8_i32 : i32
    %c2_i32 = arith.constant 2 : i32
    %1 = arith.subi %0, %c2_i32 : i32
    %c0_i32 = arith.constant 0 : i32
    %2 = arith.maxsi %1, %c0_i32 : i32
    %c16_i32 = arith.constant 16 : i32
    %3 = arith.muli %2, %c16_i32 : i32
    %4 = tpu.assume_multiple %3, 16 : i32
    %c16_i32_0 = arith.constant 16 : i32
    %5 = arith.muli %0, %c16_i32_0 : i32
    %6 = tpu.assume_multiple %5, 16 : i32
    %c8_i32_1 = arith.constant 8 : i32
    %7 = arith.addi %0, %c8_i32_1 : i32
    %c14_i32 = arith.constant 14 : i32
    %8 = arith.minsi %7, %c14_i32 : i32
    %c16_i32_2 = arith.constant 16 : i32
    %9 = arith.muli %8, %c16_i32_2 : i32
    %10 = tpu.assume_multiple %9, 16 : i32
    %c0 = arith.constant 0 : index
    %11 = arith.index_cast %4 : i32 to index
    %c0_3 = arith.constant 0 : index
    %12 = vector.load %arg2[%c0, %11, %c0_3] : memref<1x256x4xf32, #tpu.memory_space<vmem>>, vector<1x32x4xf32>
    %13 = vector.shape_cast %12 : vector<1x32x4xf32> to vector<32x4xf32>
    %c0_i32_4 = arith.constant 0 : i32
    %14 = arith.cmpi eq, %arg1, %c0_i32_4 : i32
    %cst = arith.constant 0.000000e+00 : f32
    %cst_5 = arith.constant 1.000000e+00 : f32
    %15 = arith.select %14, %cst, %cst_5 : f32
    %16 = vector.broadcast %15 : f32 to vector<32x4xf32>
    %17 = arith.mulf %13, %16 : vector<32x4xf32>
    %c0_6 = arith.constant 0 : index
    %18 = arith.index_cast %6 : i32 to index
    %c0_7 = arith.constant 0 : index
    %19 = vector.load %arg2[%c0_6, %18, %c0_7] : memref<1x256x4xf32, #tpu.memory_space<vmem>>, vector<1x128x4xf32>
    %20 = vector.shape_cast %19 : vector<1x128x4xf32> to vector<128x4xf32>
    %c0_8 = arith.constant 0 : index
    %21 = arith.index_cast %10 : i32 to index
    %c0_9 = arith.constant 0 : index
    %22 = vector.load %arg2[%c0_8, %21, %c0_9] : memref<1x256x4xf32, #tpu.memory_space<vmem>>, vector<1x32x4xf32>
    %23 = vector.shape_cast %22 : vector<1x32x4xf32> to vector<32x4xf32>
    %c1_i32 = arith.constant 1 : i32
    %24 = arith.cmpi eq, %arg1, %c1_i32 : i32
    %cst_10 = arith.constant 0.000000e+00 : f32
    %cst_11 = arith.constant 1.000000e+00 : f32
    %25 = arith.select %24, %cst_10, %cst_11 : f32
    %26 = vector.broadcast %25 : f32 to vector<32x4xf32>
    %27 = arith.mulf %23, %26 : vector<32x4xf32>
    %28 = tpu.concatenate %17, %20, %27 in 0 : vector<32x4xf32>, vector<128x4xf32>, vector<32x4xf32> -> vector<192x4xf32>
    %29 = tpu.iota {dimensions = array<i32: 1>} : vector<12x16x1xi32>
    %c0_i32_12 = arith.constant 0 : i32
    %30 = vector.broadcast %c0_i32_12 : i32 to vector<12x16x1xi32>
    %31 = arith.cmpi ne, %29, %30 : vector<12x16x1xi32>
    %32 = arith.extui %31 : vector<12x16x1xi1> to vector<12x16x1xi32>
    %33 = arith.sitofp %32 : vector<12x16x1xi32> to vector<12x16x1xf32>
    %34 = vector.shape_cast %33 : vector<12x16x1xf32> to vector<192x1xf32>
    %c15_i32 = arith.constant 15 : i32
    %35 = vector.broadcast %c15_i32 : i32 to vector<12x16x1xi32>
    %36 = arith.cmpi ne, %29, %35 : vector<12x16x1xi32>
    %37 = arith.extui %36 : vector<12x16x1xi1> to vector<12x16x1xi32>
    %38 = arith.sitofp %37 : vector<12x16x1xi32> to vector<12x16x1xf32>
    %39 = vector.shape_cast %38 : vector<12x16x1xf32> to vector<192x1xf32>
    %cst_13 = arith.constant 0.000000e+00 : f32
    %40 = vector.broadcast %cst_13 : f32 to vector<192x8xf32>
    %c17_i32 = arith.constant 17 : i32
    %41 = tpu.dynamic_rotate %28 by %c17_i32 dim 0 : vector<192x4xf32>, i32 -> vector<192x4xf32>
    %42 = vector.broadcast %34 : vector<192x1xf32> to vector<192x4xf32>
    %43 = arith.mulf %41, %42 : vector<192x4xf32>
    %c0_14 = arith.constant 0 : index
    %c0_15 = arith.constant 0 : index
    %c0_16 = arith.constant 0 : index
    %44 = vector.load %arg3[%c0_14, %c0_15, %c0_16] : memref<9x4x8xf32, #tpu.memory_space<vmem>>, vector<1x4x8xf32>
    %45 = vector.shape_cast %44 : vector<1x4x8xf32> to vector<4x8xf32>
    %cst_17 = arith.constant dense<0.000000e+00> : vector<192x8xf32>
    %46 = tpu.matmul %43, %45, %cst_17 {dimension_numbers = #tpu.dot_dimension_numbers<[1], [0], [0], [1], [0, 0, 1, 1], [], []>} : vector<192x4xf32>, vector<4x8xf32>, vector<192x8xf32> -> vector<192x8xf32>
    %47 = arith.addf %40, %46 : vector<192x8xf32>
    %c16_i32_18 = arith.constant 16 : i32
    %48 = tpu.dynamic_rotate %28 by %c16_i32_18 dim 0 : vector<192x4xf32>, i32 -> vector<192x4xf32>
    %c1 = arith.constant 1 : index
    %c0_19 = arith.constant 0 : index
    %c0_20 = arith.constant 0 : index
    %49 = vector.load %arg3[%c1, %c0_19, %c0_20] : memref<9x4x8xf32, #tpu.memory_space<vmem>>, vector<1x4x8xf32>
    %50 = vector.shape_cast %49 : vector<1x4x8xf32> to vector<4x8xf32>
    %cst_21 = arith.constant dense<0.000000e+00> : vector<192x8xf32>
    %51 = tpu.matmul %48, %50, %cst_21 {dimension_numbers = #tpu.dot_dimension_numbers<[1], [0], [0], [1], [0, 0, 1, 1], [], []>} : vector<192x4xf32>, vector<4x8xf32>, vector<192x8xf32> -> vector<192x8xf32>
    %52 = arith.addf %47, %51 : vector<192x8xf32>
    %c15_i32_22 = arith.constant 15 : i32
    %53 = tpu.dynamic_rotate %28 by %c15_i32_22 dim 0 : vector<192x4xf32>, i32 -> vector<192x4xf32>
    %54 = vector.broadcast %39 : vector<192x1xf32> to vector<192x4xf32>
    %55 = arith.mulf %53, %54 : vector<192x4xf32>
    %c2 = arith.constant 2 : index
    %c0_23 = arith.constant 0 : index
    %c0_24 = arith.constant 0 : index
    %56 = vector.load %arg3[%c2, %c0_23, %c0_24] : memref<9x4x8xf32, #tpu.memory_space<vmem>>, vector<1x4x8xf32>
    %57 = vector.shape_cast %56 : vector<1x4x8xf32> to vector<4x8xf32>
    %cst_25 = arith.constant dense<0.000000e+00> : vector<192x8xf32>
    %58 = tpu.matmul %55, %57, %cst_25 {dimension_numbers = #tpu.dot_dimension_numbers<[1], [0], [0], [1], [0, 0, 1, 1], [], []>} : vector<192x4xf32>, vector<4x8xf32>, vector<192x8xf32> -> vector<192x8xf32>
    %59 = arith.addf %52, %58 : vector<192x8xf32>
    %c1_i32_26 = arith.constant 1 : i32
    %60 = tpu.dynamic_rotate %28 by %c1_i32_26 dim 0 : vector<192x4xf32>, i32 -> vector<192x4xf32>
    %61 = vector.broadcast %34 : vector<192x1xf32> to vector<192x4xf32>
    %62 = arith.mulf %60, %61 : vector<192x4xf32>
    %c3 = arith.constant 3 : index
    %c0_27 = arith.constant 0 : index
    %c0_28 = arith.constant 0 : index
    %63 = vector.load %arg3[%c3, %c0_27, %c0_28] : memref<9x4x8xf32, #tpu.memory_space<vmem>>, vector<1x4x8xf32>
    %64 = vector.shape_cast %63 : vector<1x4x8xf32> to vector<4x8xf32>
    %cst_29 = arith.constant dense<0.000000e+00> : vector<192x8xf32>
    %65 = tpu.matmul %62, %64, %cst_29 {dimension_numbers = #tpu.dot_dimension_numbers<[1], [0], [0], [1], [0, 0, 1, 1], [], []>} : vector<192x4xf32>, vector<4x8xf32>, vector<192x8xf32> -> vector<192x8xf32>
    %66 = arith.addf %59, %65 : vector<192x8xf32>
    %c4 = arith.constant 4 : index
    %c0_30 = arith.constant 0 : index
    %c0_31 = arith.constant 0 : index
    %67 = vector.load %arg3[%c4, %c0_30, %c0_31] : memref<9x4x8xf32, #tpu.memory_space<vmem>>, vector<1x4x8xf32>
    %68 = vector.shape_cast %67 : vector<1x4x8xf32> to vector<4x8xf32>
    %cst_32 = arith.constant dense<0.000000e+00> : vector<192x8xf32>
    %69 = tpu.matmul %28, %68, %cst_32 {dimension_numbers = #tpu.dot_dimension_numbers<[1], [0], [0], [1], [0, 0, 1, 1], [], []>} : vector<192x4xf32>, vector<4x8xf32>, vector<192x8xf32> -> vector<192x8xf32>
    %70 = arith.addf %66, %69 : vector<192x8xf32>
    %c191_i32 = arith.constant 191 : i32
    %71 = tpu.dynamic_rotate %28 by %c191_i32 dim 0 : vector<192x4xf32>, i32 -> vector<192x4xf32>
    %72 = vector.broadcast %39 : vector<192x1xf32> to vector<192x4xf32>
    %73 = arith.mulf %71, %72 : vector<192x4xf32>
    %c5 = arith.constant 5 : index
    %c0_33 = arith.constant 0 : index
    %c0_34 = arith.constant 0 : index
    %74 = vector.load %arg3[%c5, %c0_33, %c0_34] : memref<9x4x8xf32, #tpu.memory_space<vmem>>, vector<1x4x8xf32>
    %75 = vector.shape_cast %74 : vector<1x4x8xf32> to vector<4x8xf32>
    %cst_35 = arith.constant dense<0.000000e+00> : vector<192x8xf32>
    %76 = tpu.matmul %73, %75, %cst_35 {dimension_numbers = #tpu.dot_dimension_numbers<[1], [0], [0], [1], [0, 0, 1, 1], [], []>} : vector<192x4xf32>, vector<4x8xf32>, vector<192x8xf32> -> vector<192x8xf32>
    %77 = arith.addf %70, %76 : vector<192x8xf32>
    %c177_i32 = arith.constant 177 : i32
    %78 = tpu.dynamic_rotate %28 by %c177_i32 dim 0 : vector<192x4xf32>, i32 -> vector<192x4xf32>
    %79 = vector.broadcast %34 : vector<192x1xf32> to vector<192x4xf32>
    %80 = arith.mulf %78, %79 : vector<192x4xf32>
    %c6 = arith.constant 6 : index
    %c0_36 = arith.constant 0 : index
    %c0_37 = arith.constant 0 : index
    %81 = vector.load %arg3[%c6, %c0_36, %c0_37] : memref<9x4x8xf32, #tpu.memory_space<vmem>>, vector<1x4x8xf32>
    %82 = vector.shape_cast %81 : vector<1x4x8xf32> to vector<4x8xf32>
    %cst_38 = arith.constant dense<0.000000e+00> : vector<192x8xf32>
    %83 = tpu.matmul %80, %82, %cst_38 {dimension_numbers = #tpu.dot_dimension_numbers<[1], [0], [0], [1], [0, 0, 1, 1], [], []>} : vector<192x4xf32>, vector<4x8xf32>, vector<192x8xf32> -> vector<192x8xf32>
    %84 = arith.addf %77, %83 : vector<192x8xf32>
    %c176_i32 = arith.constant 176 : i32
    %85 = tpu.dynamic_rotate %28 by %c176_i32 dim 0 : vector<192x4xf32>, i32 -> vector<192x4xf32>
    %c7 = arith.constant 7 : index
    %c0_39 = arith.constant 0 : index
    %c0_40 = arith.constant 0 : index
    %86 = vector.load %arg3[%c7, %c0_39, %c0_40] : memref<9x4x8xf32, #tpu.memory_space<vmem>>, vector<1x4x8xf32>
    %87 = vector.shape_cast %86 : vector<1x4x8xf32> to vector<4x8xf32>
    %cst_41 = arith.constant dense<0.000000e+00> : vector<192x8xf32>
    %88 = tpu.matmul %85, %87, %cst_41 {dimension_numbers = #tpu.dot_dimension_numbers<[1], [0], [0], [1], [0, 0, 1, 1], [], []>} : vector<192x4xf32>, vector<4x8xf32>, vector<192x8xf32> -> vector<192x8xf32>
    %89 = arith.addf %84, %88 : vector<192x8xf32>
    %c175_i32 = arith.constant 175 : i32
    %90 = tpu.dynamic_rotate %28 by %c175_i32 dim 0 : vector<192x4xf32>, i32 -> vector<192x4xf32>
    %91 = vector.broadcast %39 : vector<192x1xf32> to vector<192x4xf32>
    %92 = arith.mulf %90, %91 : vector<192x4xf32>
    %c8 = arith.constant 8 : index
    %c0_42 = arith.constant 0 : index
    %c0_43 = arith.constant 0 : index
    %93 = vector.load %arg3[%c8, %c0_42, %c0_43] : memref<9x4x8xf32, #tpu.memory_space<vmem>>, vector<1x4x8xf32>
    %94 = vector.shape_cast %93 : vector<1x4x8xf32> to vector<4x8xf32>
    %cst_44 = arith.constant dense<0.000000e+00> : vector<192x8xf32>
    %95 = tpu.matmul %92, %94, %cst_44 {dimension_numbers = #tpu.dot_dimension_numbers<[1], [0], [0], [1], [0, 0, 1, 1], [], []>} : vector<192x4xf32>, vector<4x8xf32>, vector<192x8xf32> -> vector<192x8xf32>
    %96 = arith.addf %89, %95 : vector<192x8xf32>
    %c0_45 = arith.constant 0 : index
    %c0_46 = arith.constant 0 : index
    %97 = vector.load %arg4[%c0_45, %c0_46] : memref<1x8xf32, #tpu.memory_space<vmem>>, vector<1x8xf32>
    %98 = vector.broadcast %97 : vector<1x8xf32> to vector<192x8xf32>
    %99 = arith.mulf %96, %98 : vector<192x8xf32>
    %c0_47 = arith.constant 0 : index
    %c0_48 = arith.constant 0 : index
    %100 = vector.load %arg5[%c0_47, %c0_48] : memref<1x8xf32, #tpu.memory_space<vmem>>, vector<1x8xf32>
    %101 = vector.broadcast %100 : vector<1x8xf32> to vector<192x8xf32>
    %102 = arith.addf %99, %101 : vector<192x8xf32>
    %cst_49 = arith.constant 0.000000e+00 : f32
    %103 = vector.broadcast %cst_49 : f32 to vector<192x8xf32>
    %104 = arith.maximumf %102, %103 : vector<192x8xf32>
    %105 = vector.extract_strided_slice %104 {offsets = [16, 0], sizes = [160, 8], strides = [1, 1]} : vector<192x8xf32> to vector<160x8xf32>
    %106 = tpu.iota {dimensions = array<i32: 0>} : vector<10x16x1xi32>
    %c1_i32_50 = arith.constant 1 : i32
    %107 = arith.subi %0, %c1_i32_50 : i32
    %108 = vector.broadcast %107 : i32 to vector<10x16x1xi32>
    %109 = arith.addi %108, %106 : vector<10x16x1xi32>
    %c0_i32_51 = arith.constant 0 : i32
    %110 = vector.broadcast %c0_i32_51 : i32 to vector<10x16x1xi32>
    %111 = arith.cmpi sge, %109, %110 : vector<10x16x1xi32>
    %c16_i32_52 = arith.constant 16 : i32
    %112 = vector.broadcast %c16_i32_52 : i32 to vector<10x16x1xi32>
    %113 = arith.cmpi slt, %109, %112 : vector<10x16x1xi32>
    %114 = arith.andi %111, %113 : vector<10x16x1xi1>
    %115 = arith.extui %114 : vector<10x16x1xi1> to vector<10x16x1xi32>
    %116 = arith.sitofp %115 : vector<10x16x1xi32> to vector<10x16x1xf32>
    %117 = vector.shape_cast %116 : vector<10x16x1xf32> to vector<160x1xf32>
    %118 = vector.broadcast %117 : vector<160x1xf32> to vector<160x8xf32>
    %119 = arith.mulf %105, %118 : vector<160x8xf32>
    %120 = tpu.iota {dimensions = array<i32: 1>} : vector<10x16x1xi32>
    %c0_i32_53 = arith.constant 0 : i32
    %121 = vector.broadcast %c0_i32_53 : i32 to vector<10x16x1xi32>
    %122 = arith.cmpi ne, %120, %121 : vector<10x16x1xi32>
    %123 = arith.extui %122 : vector<10x16x1xi1> to vector<10x16x1xi32>
    %124 = arith.sitofp %123 : vector<10x16x1xi32> to vector<10x16x1xf32>
    %125 = vector.shape_cast %124 : vector<10x16x1xf32> to vector<160x1xf32>
    %c15_i32_54 = arith.constant 15 : i32
    %126 = vector.broadcast %c15_i32_54 : i32 to vector<10x16x1xi32>
    %127 = arith.cmpi ne, %120, %126 : vector<10x16x1xi32>
    %128 = arith.extui %127 : vector<10x16x1xi1> to vector<10x16x1xi32>
    %129 = arith.sitofp %128 : vector<10x16x1xi32> to vector<10x16x1xf32>
    %130 = vector.shape_cast %129 : vector<10x16x1xf32> to vector<160x1xf32>
    %cst_55 = arith.constant 0.000000e+00 : f32
    %131 = vector.broadcast %cst_55 : f32 to vector<160x8xf32>
    %c17_i32_56 = arith.constant 17 : i32
    %132 = tpu.dynamic_rotate %119 by %c17_i32_56 dim 0 : vector<160x8xf32>, i32 -> vector<160x8xf32>
    %133 = vector.broadcast %125 : vector<160x1xf32> to vector<160x8xf32>
    %134 = arith.mulf %132, %133 : vector<160x8xf32>
    %c0_57 = arith.constant 0 : index
    %c0_58 = arith.constant 0 : index
    %c0_59 = arith.constant 0 : index
    %135 = vector.load %arg6[%c0_57, %c0_58, %c0_59] : memref<9x8x8xf32, #tpu.memory_space<vmem>>, vector<1x8x8xf32>
    %136 = vector.shape_cast %135 : vector<1x8x8xf32> to vector<8x8xf32>
    %cst_60 = arith.constant dense<0.000000e+00> : vector<160x8xf32>
    %137 = tpu.matmul %134, %136, %cst_60 {dimension_numbers = #tpu.dot_dimension_numbers<[1], [0], [0], [1], [0, 0, 1, 1], [], []>} : vector<160x8xf32>, vector<8x8xf32>, vector<160x8xf32> -> vector<160x8xf32>
    %138 = arith.addf %131, %137 : vector<160x8xf32>
    %c16_i32_61 = arith.constant 16 : i32
    %139 = tpu.dynamic_rotate %119 by %c16_i32_61 dim 0 : vector<160x8xf32>, i32 -> vector<160x8xf32>
    %c1_62 = arith.constant 1 : index
    %c0_63 = arith.constant 0 : index
    %c0_64 = arith.constant 0 : index
    %140 = vector.load %arg6[%c1_62, %c0_63, %c0_64] : memref<9x8x8xf32, #tpu.memory_space<vmem>>, vector<1x8x8xf32>
    %141 = vector.shape_cast %140 : vector<1x8x8xf32> to vector<8x8xf32>
    %cst_65 = arith.constant dense<0.000000e+00> : vector<160x8xf32>
    %142 = tpu.matmul %139, %141, %cst_65 {dimension_numbers = #tpu.dot_dimension_numbers<[1], [0], [0], [1], [0, 0, 1, 1], [], []>} : vector<160x8xf32>, vector<8x8xf32>, vector<160x8xf32> -> vector<160x8xf32>
    %143 = arith.addf %138, %142 : vector<160x8xf32>
    %c15_i32_66 = arith.constant 15 : i32
    %144 = tpu.dynamic_rotate %119 by %c15_i32_66 dim 0 : vector<160x8xf32>, i32 -> vector<160x8xf32>
    %145 = vector.broadcast %130 : vector<160x1xf32> to vector<160x8xf32>
    %146 = arith.mulf %144, %145 : vector<160x8xf32>
    %c2_67 = arith.constant 2 : index
    %c0_68 = arith.constant 0 : index
    %c0_69 = arith.constant 0 : index
    %147 = vector.load %arg6[%c2_67, %c0_68, %c0_69] : memref<9x8x8xf32, #tpu.memory_space<vmem>>, vector<1x8x8xf32>
    %148 = vector.shape_cast %147 : vector<1x8x8xf32> to vector<8x8xf32>
    %cst_70 = arith.constant dense<0.000000e+00> : vector<160x8xf32>
    %149 = tpu.matmul %146, %148, %cst_70 {dimension_numbers = #tpu.dot_dimension_numbers<[1], [0], [0], [1], [0, 0, 1, 1], [], []>} : vector<160x8xf32>, vector<8x8xf32>, vector<160x8xf32> -> vector<160x8xf32>
    %150 = arith.addf %143, %149 : vector<160x8xf32>
    %c1_i32_71 = arith.constant 1 : i32
    %151 = tpu.dynamic_rotate %119 by %c1_i32_71 dim 0 : vector<160x8xf32>, i32 -> vector<160x8xf32>
    %152 = vector.broadcast %125 : vector<160x1xf32> to vector<160x8xf32>
    %153 = arith.mulf %151, %152 : vector<160x8xf32>
    %c3_72 = arith.constant 3 : index
    %c0_73 = arith.constant 0 : index
    %c0_74 = arith.constant 0 : index
    %154 = vector.load %arg6[%c3_72, %c0_73, %c0_74] : memref<9x8x8xf32, #tpu.memory_space<vmem>>, vector<1x8x8xf32>
    %155 = vector.shape_cast %154 : vector<1x8x8xf32> to vector<8x8xf32>
    %cst_75 = arith.constant dense<0.000000e+00> : vector<160x8xf32>
    %156 = tpu.matmul %153, %155, %cst_75 {dimension_numbers = #tpu.dot_dimension_numbers<[1], [0], [0], [1], [0, 0, 1, 1], [], []>} : vector<160x8xf32>, vector<8x8xf32>, vector<160x8xf32> -> vector<160x8xf32>
    %157 = arith.addf %150, %156 : vector<160x8xf32>
    %c4_76 = arith.constant 4 : index
    %c0_77 = arith.constant 0 : index
    %c0_78 = arith.constant 0 : index
    %158 = vector.load %arg6[%c4_76, %c0_77, %c0_78] : memref<9x8x8xf32, #tpu.memory_space<vmem>>, vector<1x8x8xf32>
    %159 = vector.shape_cast %158 : vector<1x8x8xf32> to vector<8x8xf32>
    %cst_79 = arith.constant dense<0.000000e+00> : vector<160x8xf32>
    %160 = tpu.matmul %119, %159, %cst_79 {dimension_numbers = #tpu.dot_dimension_numbers<[1], [0], [0], [1], [0, 0, 1, 1], [], []>} : vector<160x8xf32>, vector<8x8xf32>, vector<160x8xf32> -> vector<160x8xf32>
    %161 = arith.addf %157, %160 : vector<160x8xf32>
    %c159_i32 = arith.constant 159 : i32
    %162 = tpu.dynamic_rotate %119 by %c159_i32 dim 0 : vector<160x8xf32>, i32 -> vector<160x8xf32>
    %163 = vector.broadcast %130 : vector<160x1xf32> to vector<160x8xf32>
    %164 = arith.mulf %162, %163 : vector<160x8xf32>
    %c5_80 = arith.constant 5 : index
    %c0_81 = arith.constant 0 : index
    %c0_82 = arith.constant 0 : index
    %165 = vector.load %arg6[%c5_80, %c0_81, %c0_82] : memref<9x8x8xf32, #tpu.memory_space<vmem>>, vector<1x8x8xf32>
    %166 = vector.shape_cast %165 : vector<1x8x8xf32> to vector<8x8xf32>
    %cst_83 = arith.constant dense<0.000000e+00> : vector<160x8xf32>
    %167 = tpu.matmul %164, %166, %cst_83 {dimension_numbers = #tpu.dot_dimension_numbers<[1], [0], [0], [1], [0, 0, 1, 1], [], []>} : vector<160x8xf32>, vector<8x8xf32>, vector<160x8xf32> -> vector<160x8xf32>
    %168 = arith.addf %161, %167 : vector<160x8xf32>
    %c145_i32 = arith.constant 145 : i32
    %169 = tpu.dynamic_rotate %119 by %c145_i32 dim 0 : vector<160x8xf32>, i32 -> vector<160x8xf32>
    %170 = vector.broadcast %125 : vector<160x1xf32> to vector<160x8xf32>
    %171 = arith.mulf %169, %170 : vector<160x8xf32>
    %c6_84 = arith.constant 6 : index
    %c0_85 = arith.constant 0 : index
    %c0_86 = arith.constant 0 : index
    %172 = vector.load %arg6[%c6_84, %c0_85, %c0_86] : memref<9x8x8xf32, #tpu.memory_space<vmem>>, vector<1x8x8xf32>
    %173 = vector.shape_cast %172 : vector<1x8x8xf32> to vector<8x8xf32>
    %cst_87 = arith.constant dense<0.000000e+00> : vector<160x8xf32>
    %174 = tpu.matmul %171, %173, %cst_87 {dimension_numbers = #tpu.dot_dimension_numbers<[1], [0], [0], [1], [0, 0, 1, 1], [], []>} : vector<160x8xf32>, vector<8x8xf32>, vector<160x8xf32> -> vector<160x8xf32>
    %175 = arith.addf %168, %174 : vector<160x8xf32>
    %c144_i32 = arith.constant 144 : i32
    %176 = tpu.dynamic_rotate %119 by %c144_i32 dim 0 : vector<160x8xf32>, i32 -> vector<160x8xf32>
    %c7_88 = arith.constant 7 : index
    %c0_89 = arith.constant 0 : index
    %c0_90 = arith.constant 0 : index
    %177 = vector.load %arg6[%c7_88, %c0_89, %c0_90] : memref<9x8x8xf32, #tpu.memory_space<vmem>>, vector<1x8x8xf32>
    %178 = vector.shape_cast %177 : vector<1x8x8xf32> to vector<8x8xf32>
    %cst_91 = arith.constant dense<0.000000e+00> : vector<160x8xf32>
    %179 = tpu.matmul %176, %178, %cst_91 {dimension_numbers = #tpu.dot_dimension_numbers<[1], [0], [0], [1], [0, 0, 1, 1], [], []>} : vector<160x8xf32>, vector<8x8xf32>, vector<160x8xf32> -> vector<160x8xf32>
    %180 = arith.addf %175, %179 : vector<160x8xf32>
    %c143_i32 = arith.constant 143 : i32
    %181 = tpu.dynamic_rotate %119 by %c143_i32 dim 0 : vector<160x8xf32>, i32 -> vector<160x8xf32>
    %182 = vector.broadcast %130 : vector<160x1xf32> to vector<160x8xf32>
    %183 = arith.mulf %181, %182 : vector<160x8xf32>
    %c8_92 = arith.constant 8 : index
    %c0_93 = arith.constant 0 : index
    %c0_94 = arith.constant 0 : index
    %184 = vector.load %arg6[%c8_92, %c0_93, %c0_94] : memref<9x8x8xf32, #tpu.memory_space<vmem>>, vector<1x8x8xf32>
    %185 = vector.shape_cast %184 : vector<1x8x8xf32> to vector<8x8xf32>
    %cst_95 = arith.constant dense<0.000000e+00> : vector<160x8xf32>
    %186 = tpu.matmul %183, %185, %cst_95 {dimension_numbers = #tpu.dot_dimension_numbers<[1], [0], [0], [1], [0, 0, 1, 1], [], []>} : vector<160x8xf32>, vector<8x8xf32>, vector<160x8xf32> -> vector<160x8xf32>
    %187 = arith.addf %180, %186 : vector<160x8xf32>
    %c0_96 = arith.constant 0 : index
    %c0_97 = arith.constant 0 : index
    %188 = vector.load %arg7[%c0_96, %c0_97] : memref<1x8xf32, #tpu.memory_space<vmem>>, vector<1x8xf32>
    %189 = vector.broadcast %188 : vector<1x8xf32> to vector<160x8xf32>
    %190 = arith.mulf %187, %189 : vector<160x8xf32>
    %c0_98 = arith.constant 0 : index
    %c0_99 = arith.constant 0 : index
    %191 = vector.load %arg8[%c0_98, %c0_99] : memref<1x8xf32, #tpu.memory_space<vmem>>, vector<1x8xf32>
    %192 = vector.broadcast %191 : vector<1x8xf32> to vector<160x8xf32>
    %193 = arith.addf %190, %192 : vector<160x8xf32>
    %cst_100 = arith.constant 0.000000e+00 : f32
    %194 = vector.broadcast %cst_100 : f32 to vector<160x8xf32>
    %195 = arith.maximumf %193, %194 : vector<160x8xf32>
    %196 = vector.extract_strided_slice %195 {offsets = [16, 0], sizes = [128, 8], strides = [1, 1]} : vector<160x8xf32> to vector<128x8xf32>
    %c0_101 = arith.constant 0 : index
    %c0_102 = arith.constant 0 : index
    %c0_103 = arith.constant 0 : index
    %197 = vector.load %arg9[%c0_101, %c0_102, %c0_103] : memref<1x128x8xf32, #tpu.memory_space<vmem>>, vector<1x128x8xf32>
    %198 = vector.shape_cast %197 : vector<1x128x8xf32> to vector<128x8xf32>
    %199 = vector.shape_cast %196 : vector<128x8xf32> to vector<1x128x8xf32>
    tpu.vector_store %arg9[%c0_101, %c0_102, %c0_103], %199 {strides = array<i32>} : memref<1x128x8xf32, #tpu.memory_space<vmem>>, vector<1x128x8xf32>,
    return
  }
  func.func @transform_0(%arg0: i32, %arg1: i32) -> (i32, i32, i32) {
    %c0_i32 = arith.constant 0 : i32
    %c0_i32_0 = arith.constant 0 : i32
    %c0_i32_1 = arith.constant 0 : i32
    return %arg0, %c0_i32, %c0_i32_0 : i32, i32, i32
  }
  func.func @transform_1(%arg0: i32, %arg1: i32) -> (i32, i32, i32) {
    %c0_i32 = arith.constant 0 : i32
    %c0_i32_0 = arith.constant 0 : i32
    %c0_i32_1 = arith.constant 0 : i32
    %c0_i32_2 = arith.constant 0 : i32
    return %c0_i32, %c0_i32_0, %c0_i32_1 : i32, i32, i32
  }
  func.func @transform_2(%arg0: i32, %arg1: i32) -> (i32, i32) {
    %c0_i32 = arith.constant 0 : i32
    %c0_i32_0 = arith.constant 0 : i32
    %c0_i32_1 = arith.constant 0 : i32
    return %c0_i32, %c0_i32_0 : i32, i32
  }
  func.func @transform_3(%arg0: i32, %arg1: i32) -> (i32, i32) {
    %c0_i32 = arith.constant 0 : i32
    %c0_i32_0 = arith.constant 0 : i32
    %c0_i32_1 = arith.constant 0 : i32
    return %c0_i32, %c0_i32_0 : i32, i32
  }
  func.func @transform_4(%arg0: i32, %arg1: i32) -> (i32, i32, i32) {
    %c0_i32 = arith.constant 0 : i32
    %c0_i32_0 = arith.constant 0 : i32
    %c0_i32_1 = arith.constant 0 : i32
    %c0_i32_2 = arith.constant 0 : i32
    return %c0_i32, %c0_i32_0, %c0_i32_1 : i32, i32, i32
  }
  func.func @transform_5(%arg0: i32, %arg1: i32) -> (i32, i32) {
    %c0_i32 = arith.constant 0 : i32
    %c0_i32_0 = arith.constant 0 : i32
    %c0_i32_1 = arith.constant 0 : i32
    return %c0_i32, %c0_i32_0 : i32, i32
  }
  func.func @transform_6(%arg0: i32, %arg1: i32) -> (i32, i32) {
    %c0_i32 = arith.constant 0 : i32
    %c0_i32_0 = arith.constant 0 : i32
    %c0_i32_1 = arith.constant 0 : i32
    return %c0_i32, %c0_i32_0 : i32, i32
  }
  func.func @transform_7(%arg0: i32, %arg1: i32) -> (i32, i32, i32) {
    %c0_i32 = arith.constant 0 : i32
    %c0_i32_0 = arith.constant 0 : i32
    return %arg0, %arg1, %c0_i32 : i32, i32, i32
  }
}

</mosaic_0001>

<llo_original>
// kernel: tpu_custom_call.1
$region0: #{tpu_custom_call.1}
  #allocation0 [shape = 'u32[]', space=smem, size = 0x4, offset = 0x4, fixed_abs, tag = 'smem constant byte address 0x4 - core index']
  #allocation1 [shape = 'u32[144,128]{1,0:T(1,128)}', space=vmem, size = 0x12000, scoped, tag = 'internal scratch']
  %s0 = inlined_call_operand.vmem [shape: f32[2,256,4], index: 0, kind: input, shape index: {}]
  %s1 = inlined_call_operand.vmem [shape: f32[9,4,8], index: 1, kind: input, shape index: {}]
  %s2 = inlined_call_operand.vmem [shape: f32[1,8], index: 2, kind: input, shape index: {}]
  %s3 = inlined_call_operand.vmem [shape: f32[1,8], index: 3, kind: input, shape index: {}]
  %s4 = inlined_call_operand.vmem [shape: f32[9,8,8], index: 4, kind: input, shape index: {}]
  %s5 = inlined_call_operand.vmem [shape: f32[1,8], index: 5, kind: input, shape index: {}]
  %s6 = inlined_call_operand.vmem [shape: f32[1,8], index: 6, kind: input, shape index: {}]
  %s7 = inlined_call_operand.vmem [shape: f32[2,256,8], index: 7, kind: output, shape index: {}]
  %s8 = sld [smem:[#allocation0]]
  $region61: #{tpu_custom_call.1} parent=0
    _
  %s10 = ssub.s32 1, %s8
  %s11 = scalar_select 0, %s10, %s8
  loop: start=0, step=1, limit=6
  $region2: #{tpu_custom_call.1} parent=0 // loop_pre_header
    _
  $region3: #{tpu_custom_call.1} parent=0 // loop_header
    %s13 = sphi 0, %s17
    %p14 = scmp.ge.s32.totalorder %s13, 6
    %s20 = sphi 0, %s32
    %s21 = sphi 0, %s28
    %s22 = sphi 0, %s20
    %s23 = sphi 0, %s21
    %s24 = sphi 0, %s22
    %s25 = sphi 0, %s23
    %s35 = sphi 0, %s37
    %s38 = sphi 0, %s35
    %s39 = sphi 0, %s38
    %s55 = sphi 0, %s39
    %s59 = sphi 0, %s59
    %s61 = sphi 0, %s59
    %s62 = sphi 0, %s61
    %s76 = sphi 0, %s62
    %s80 = sphi 0, %s80
    %s82 = sphi 0, %s80
    %s83 = sphi 0, %s82
    %s97 = sphi 0, %s83
    %s101 = sphi 0, %s101
    %s103 = sphi 0, %s101
    %s104 = sphi 0, %s103
    %s118 = sphi 0, %s104
    %s122 = sphi 0, %s122
    %s124 = sphi 0, %s122
    %s125 = sphi 0, %s124
    %s139 = sphi 0, %s125
    %s143 = sphi 0, %s143
    %s145 = sphi 0, %s143
    %s146 = sphi 0, %s145
    %s160 = sphi 0, %s146
    %s164 = sphi 0, %s164
    %s166 = sphi 0, %s164
    %s167 = sphi 0, %s166
    %s181 = sphi 0, %s167
    %s189 = sphi 0, %s191
    %s192 = sphi 0, %s189
    %s193 = sphi 0, %s192
    %s209 = sphi 0, %s193
  $region4: #{tpu_custom_call.1} parent=0 // loop_header_branch
    %16 = sbr.rel (%p14) target = $region8
  $region5: #{tpu_custom_call.1} parent=0 // loop_body
    %s18 = ssub.s32 %s13, 1
    %s19 = ssub.s32 %s13, 2
    %s26 = sadd.s32 1, %s21
    %p27 = scmp.ge.s32.totalorder %s26, 2
    %s28 = scalar_select %p27, 0, %s26
    %s29 = sadd.s32 1, %s20
    %s30 = scalar_select %p27, %s29, %s20
    %p31 = scmp.ge.s32.totalorder %s30, 2
    %s32 = scalar_select %p31, 0, %s30
    %s33 = ssub.s32 %s20, %s32
    %p34 = scmp.eq.s32.totalorder %s33, 0
    %s36 = sadd.s32 %s35, 1
    %s37 = scalar_select %p34, %s35, %s36
    %p40 = pneg %p34
    %p41 = scmp.eq.s32.totalorder %s13, 3
    %p42 = por %p40, %p41
    %p43 = scmp.ne.s32.totalorder %s35, %s38
    %p44 = scmp.eq.s32.totalorder %s13, 0
    %p45 = por %p43, %p44
    %p46 = scmp.ne.s32.totalorder %s35, %s38
    %p47 = scmp.eq.s32.totalorder %s18, 3
    %p48 = por %p46, %p47
    %p49 = scmp.ne.s32.totalorder %s38, %s39
    %p50 = scmp.eq.s32.totalorder %s18, 0
    %p51 = por %p49, %p50
    %p52 = scmp.ne.s32.totalorder %s38, %s39
    %p53 = scmp.eq.s32.totalorder %s19, 3
    %p54 = por %p52, %p53
    %p56 = scmp.ne.s32.totalorder %s39, %s55
    %p57 = scmp.eq.s32.totalorder %s19, 0
    %p58 = por %p56, %p57
    %s60 = sadd.s32 %s59, 1
    %p63 = scmp.eq.s32.totalorder %s13, 3
    %p64 = scmp.ne.s32.totalorder %s59, %s61
    %p65 = scmp.eq.s32.totalorder %s13, 0
    %p66 = por %p64, %p65
    %p67 = scmp.ne.s32.totalorder %s59, %s61
    %p68 = scmp.eq.s32.totalorder %s18, 3
    %p69 = por %p67, %p68
    %p70 = scmp.ne.s32.totalorder %s61, %s62
    %p71 = scmp.eq.s32.totalorder %s18, 0
    %p72 = por %p70, %p71
    %p73 = scmp.ne.s32.totalorder %s61, %s62
    %p74 = scmp.eq.s32.totalorder %s19, 3
    %p75 = por %p73, %p74
    %p77 = scmp.ne.s32.totalorder %s62, %s76
    %p78 = scmp.eq.s32.totalorder %s19, 0
    %p79 = por %p77, %p78
    %s81 = sadd.s32 %s80, 1
    %p84 = scmp.eq.s32.totalorder %s13, 3
    %p85 = scmp.ne.s32.totalorder %s80, %s82
    %p86 = scmp.eq.s32.totalorder %s13, 0
    %p87 = por %p85, %p86
    %p88 = scmp.ne.s32.totalorder %s80, %s82
    %p89 = scmp.eq.s32.totalorder %s18, 3
    %p90 = por %p88, %p89
    %p91 = scmp.ne.s32.totalorder %s82, %s83
    %p92 = scmp.eq.s32.totalorder %s18, 0
    %p93 = por %p91, %p92
    %p94 = scmp.ne.s32.totalorder %s82, %s83
    %p95 = scmp.eq.s32.totalorder %s19, 3
    %p96 = por %p94, %p95
    %p98 = scmp.ne.s32.totalorder %s83, %s97
    %p99 = scmp.eq.s32.totalorder %s19, 0
    %p100 = por %p98, %p99
    %s102 = sadd.s32 %s101, 1
    %p105 = scmp.eq.s32.totalorder %s13, 3
    %p106 = scmp.ne.s32.totalorder %s101, %s103
    %p107 = scmp.eq.s32.totalorder %s13, 0
    %p108 = por %p106, %p107
    %p109 = scmp.ne.s32.totalorder %s101, %s103
    %p110 = scmp.eq.s32.totalorder %s18, 3
    %p111 = por %p109, %p110
    %p112 = scmp.ne.s32.totalorder %s103, %s104
    %p113 = scmp.eq.s32.totalorder %s18, 0
    %p114 = por %p112, %p113
    %p115 = scmp.ne.s32.totalorder %s103, %s104
    %p116 = scmp.eq.s32.totalorder %s19, 3
    %p117 = por %p115, %p116
    %p119 = scmp.ne.s32.totalorder %s104, %s118
    %p120 = scmp.eq.s32.totalorder %s19, 0
    %p121 = por %p119, %p120
    %s123 = sadd.s32 %s122, 1
    %p126 = scmp.eq.s32.totalorder %s13, 3
    %p127 = scmp.ne.s32.totalorder %s122, %s124
    %p128 = scmp.eq.s32.totalorder %s13, 0
    %p129 = por %p127, %p128
    %p130 = scmp.ne.s32.totalorder %s122, %s124
    %p131 = scmp.eq.s32.totalorder %s18, 3
    %p132 = por %p130, %p131
    %p133 = scmp.ne.s32.totalorder %s124, %s125
    %p134 = scmp.eq.s32.totalorder %s18, 0
    %p135 = por %p133, %p134
    %p136 = scmp.ne.s32.totalorder %s124, %s125
    %p137 = scmp.eq.s32.totalorder %s19, 3
    %p138 = por %p136, %p137
    %p140 = scmp.ne.s32.totalorder %s125, %s139
    %p141 = scmp.eq.s32.totalorder %s19, 0
    %p142 = por %p140, %p141
    %s144 = sadd.s32 %s143, 1
    %p147 = scmp.eq.s32.totalorder %s13, 3
    %p148 = scmp.ne.s32.totalorder %s143, %s145
    %p149 = scmp.eq.s32.totalorder %s13, 0
    %p150 = por %p148, %p149
    %p151 = scmp.ne.s32.totalorder %s143, %s145
    %p152 = scmp.eq.s32.totalorder %s18, 3
    %p153 = por %p151, %p152
    %p154 = scmp.ne.s32.totalorder %s145, %s146
    %p155 = scmp.eq.s32.totalorder %s18, 0
    %p156 = por %p154, %p155
    %p157 = scmp.ne.s32.totalorder %s145, %s146
    %p158 = scmp.eq.s32.totalorder %s19, 3
    %p159 = por %p157, %p158
    %p161 = scmp.ne.s32.totalorder %s146, %s160
    %p162 = scmp.eq.s32.totalorder %s19, 0
    %p163 = por %p161, %p162
    %s165 = sadd.s32 %s164, 1
    %p168 = scmp.eq.s32.totalorder %s13, 3
    %p169 = scmp.ne.s32.totalorder %s164, %s166
    %p170 = scmp.eq.s32.totalorder %s13, 0
    %p171 = por %p169, %p170
    %p172 = scmp.ne.s32.totalorder %s164, %s166
    %p173 = scmp.eq.s32.totalorder %s18, 3
    %p174 = por %p172, %p173
    %p175 = scmp.ne.s32.totalorder %s166, %s167
    %p176 = scmp.eq.s32.totalorder %s18, 0
    %p177 = por %p175, %p176
    %p178 = scmp.ne.s32.totalorder %s166, %s167
    %p179 = scmp.eq.s32.totalorder %s19, 3
    %p180 = por %p178, %p179
    %p182 = scmp.ne.s32.totalorder %s167, %s181
    %p183 = scmp.eq.s32.totalorder %s19, 0
    %p184 = por %p182, %p183
    %s185 = ssub.s32 %s20, %s32
    %s186 = ssub.s32 %s21, %s28
    %s187 = sor.u32 %s185, %s186
    %p188 = scmp.eq.s32.totalorder %s187, 0
    %s190 = sadd.s32 %s189, 1
    %s191 = scalar_select %p188, %s189, %s190
    %p194 = pneg %p188
    %p195 = scmp.eq.s32.totalorder %s13, 3
    %p196 = por %p194, %p195
    %p197 = scmp.ne.s32.totalorder %s189, %s192
    %p198 = scmp.eq.s32.totalorder %s13, 0
    %p199 = por %p197, %p198
    %p200 = scmp.ne.s32.totalorder %s189, %s192
    %p201 = scmp.eq.s32.totalorder %s18, 3
    %p202 = por %p200, %p201
    %p203 = scmp.ne.s32.totalorder %s192, %s193
    %p204 = scmp.eq.s32.totalorder %s18, 0
    %p205 = por %p203, %p204
    %p206 = scmp.ne.s32.totalorder %s192, %s193
    %p207 = scmp.eq.s32.totalorder %s19, 3
    %p208 = por %p206, %p207
    %p210 = scmp.ne.s32.totalorder %s193, %s209
    %p211 = scmp.eq.s32.totalorder %s19, 0
    %p212 = por %p210, %p211
    %p213 = scmp.le.s32.totalorder 1, %s13
    %p214 = scmp.lt.s32.totalorder %s13, 5
    %p215 = pnand %p213, %p214
    %p216 = pneg %p215
    // Predicated region
    $region9: #{tpu_custom_call.1} parent=5 // pred_check
      _
    $region10: #{tpu_custom_call.1} parent=5 // pred_check_branch
      %218 = sbr.rel (%p215) target = $region12
    $region11: #{tpu_custom_call.1} parent=5 // pred_region
      %s219 = ssub.s32 %s13, 1
      // Predicated region
      $region13: #{tpu_custom_call.1} parent=11 // pred_check
        %p220 = pneg %p72
      $region14: #{tpu_custom_call.1} parent=11 // pred_check_branch
        %222 = sbr.rel (%p220) target = $region16
      $region15: #{tpu_custom_call.1} parent=11 // pred_region
        _
      $region16: #{tpu_custom_call.1} parent=11 // pred_fallthru
        _
      // Predicated region
      $region17: #{tpu_custom_call.1} parent=11 // pred_check
        %p223 = pneg %p93
      $region18: #{tpu_custom_call.1} parent=11 // pred_check_branch
        %225 = sbr.rel (%p223) target = $region20
      $region19: #{tpu_custom_call.1} parent=11 // pred_region
        _
      $region20: #{tpu_custom_call.1} parent=11 // pred_fallthru
        _
      // Predicated region
      $region21: #{tpu_custom_call.1} parent=11 // pred_check
        %p226 = pneg %p114
      $region22: #{tpu_custom_call.1} parent=11 // pred_check_branch
        %228 = sbr.rel (%p226) target = $region24
      $region23: #{tpu_custom_call.1} parent=11 // pred_region
        _
      $region24: #{tpu_custom_call.1} parent=11 // pred_fallthru
        _
      // Predicated region
      $region25: #{tpu_custom_call.1} parent=11 // pred_check
        %p229 = pneg %p135
      $region26: #{tpu_custom_call.1} parent=11 // pred_check_branch
        %231 = sbr.rel (%p229) target = $region28
      $region27: #{tpu_custom_call.1} parent=11 // pred_region
        _
      $region28: #{tpu_custom_call.1} parent=11 // pred_fallthru
        _
      // Predicated region
      $region29: #{tpu_custom_call.1} parent=11 // pred_check
        %p232 = pneg %p156
      $region30: #{tpu_custom_call.1} parent=11 // pred_check_branch
        %234 = sbr.rel (%p232) target = $region32
      $region31: #{tpu_custom_call.1} parent=11 // pred_region
        _
      $region32: #{tpu_custom_call.1} parent=11 // pred_fallthru
        _
      // Predicated region
      $region33: #{tpu_custom_call.1} parent=11 // pred_check
        %p235 = pneg %p177
      $region34: #{tpu_custom_call.1} parent=11 // pred_check_branch
        %237 = sbr.rel (%p235) target = $region36
      $region35: #{tpu_custom_call.1} parent=11 // pred_region
        _
      $region36: #{tpu_custom_call.1} parent=11 // pred_fallthru
        _
    $region12: #{tpu_custom_call.1} parent=5 // pred_fallthru
      _
    %p238 = scmp.lt.s32.totalorder %s13, 4
    // Predicated region
    $region37: #{tpu_custom_call.1} parent=5 // pred_check
      %p239 = pneg %p238
    $region38: #{tpu_custom_call.1} parent=5 // pred_check_branch
      %241 = sbr.rel (%p239) target = $region40
    $region39: #{tpu_custom_call.1} parent=5 // pred_region
      // Predicated region
      $region41: #{tpu_custom_call.1} parent=39 // pred_check
        %p242 = pneg %p45
      $region42: #{tpu_custom_call.1} parent=39 // pred_check_branch
        %244 = sbr.rel (%p242) target = $region44
      $region43: #{tpu_custom_call.1} parent=39 // pred_region
        %p245 = scmp.lt.s32.totalorder %s20, 1
        %s246 = scalar_select %p245, %s20, 1
        %s247 = smul.addr %s246, 32
        %s248 = smul.addr %s247, 8
        %s249 = scalar_lea.vmem %s0, %s248
      $region44: #{tpu_custom_call.1} parent=39 // pred_fallthru
        _
    $region40: #{tpu_custom_call.1} parent=5 // pred_fallthru
      _
    %p250 = scmp.le.s32.totalorder 1, %s13
    %p251 = scmp.lt.s32.totalorder %s13, 5
    %p252 = pnand %p250, %p251
    %p253 = pneg %p252
    // Predicated region
    $region45: #{tpu_custom_call.1} parent=5 // pred_check
      _
    $region46: #{tpu_custom_call.1} parent=5 // pred_check_branch
      %255 = sbr.rel (%p252) target = $region48
    $region47: #{tpu_custom_call.1} parent=5 // pred_region
      %s256 = ssub.s32 %s13, 1
      %p257 = scmp.lt.s32.totalorder %s22, 1
      %s258 = scalar_select %p257, %s22, 1
      %s259 = smul.addr %s258, 32
      %s260 = smul.addr %s259, 8
      %s261 = scalar_lea.vmem %s0, %s260
      %p262 = pneg %p51
      %p263 = pneg %p48
      %p264 = pneg %p72
      %p265 = pneg %p69
      %p266 = pneg %p93
      %p267 = pneg %p90
      %p268 = pneg %p114
      %p269 = pneg %p111
      %p270 = pneg %p135
      %p271 = pneg %p132
      %p272 = pneg %p156
      %p273 = pneg %p153
      %p274 = pneg %p177
      %p275 = pneg %p174
      %p276 = pneg %p205
      %p277 = pneg %p202
      %s278 = smul.u32 16, %s23
      %p279 = scmp.lt.s32.totalorder %s22, 1
      %s280 = scalar_select %p279, %s22, 1
      %p281 = scmp.lt.s32.totalorder %s278, 31
      %s282 = scalar_select %p281, %s278, 31
      %s283 = smul.addr %s280, 32
      %s284 = sadd.s32 %s282, %s283
      %s285 = smul.addr %s284, 8
      %s286 = scalar_lea.vmem %s7, %s285
      %p287 = scmp.lt.s32.totalorder %s22, 1
      %s288 = scalar_select %p287, %s22, 1
      %s289 = smul.addr %s288, 32
      %s290 = smul.addr %s289, 8
      %s291 = scalar_lea.vmem %s0, %s290
      %s292 = smul.u32 16, %s23
      %p293 = scmp.lt.s32.totalorder %s22, 1
      %s294 = scalar_select %p293, %s22, 1
      %p295 = scmp.lt.s32.totalorder %s292, 31
      %s296 = scalar_select %p295, %s292, 31
      %s297 = smul.addr %s294, 32
      %s298 = sadd.s32 %s296, %s297
      %s299 = smul.addr %s298, 8
      %s300 = scalar_lea.vmem %s7, %s299
      %s301 = smul.u32 16, %s23
      %s302 = smul.u32 %s23, 8
      %s303 = ssub.s32 %s302, 2
      %p304 = scmp.gt.s32.totalorder %s303, 0
      %s305 = scalar_select %p304, %s303, 0
      %s306 = smul.u32 %s305, 16
      %s307 = smul.u32 %s23, 128
      %s308 = sadd.s32 %s302, 8
      %p309 = scmp.lt.s32.totalorder %s308, 14
      %s310 = scalar_select %p309, %s308, 14
      %s311 = smul.u32 %s310, 16
      %s312 = scalar_lea.vmem %s291, %s306
      %v313 = vld [vmem:[%s312] sm:$0xff]
      %v314 = vld [vmem:[%s312 + $0x8] sm:$0xff]
      %v315 = vld [vmem:[%s312 + $0x10] sm:$0xff]
      %v316 = vld [vmem:[%s312 + $0x18] sm:$0xff]
      %p317 = scmp.eq.s32.totalorder %s23, 0
      %s318 = scalar_select %p317, 0.0, 1.0
      %v319 = vstv %s318
      %v320 = vmul.f32 %v313, %v319
      %v321 = vmul.f32 %v314, %v319
      %v322 = vmul.f32 %v315, %v319
      %v323 = vmul.f32 %v316, %v319
      %s324 = scalar_lea.vmem %s291, %s307
      %v325 = vld [vmem:[%s324] sm:$0xff]
      %v326 = vld [vmem:[%s324 + $0x8] sm:$0xff]
      %v327 = vld [vmem:[%s324 + $0x10] sm:$0xff]
      %v328 = vld [vmem:[%s324 + $0x18] sm:$0xff]
      %v329 = vld [vmem:[%s324 + $0x20] sm:$0xff]
      %v330 = vld [vmem:[%s324 + $0x28] sm:$0xff]
      %v331 = vld [vmem:[%s324 + $0x30] sm:$0xff]
      %v332 = vld [vmem:[%s324 + $0x38] sm:$0xff]
      %v333 = vld [vmem:[%s324 + $0x40] sm:$0xff]
      %v334 = vld [vmem:[%s324 + $0x48] sm:$0xff]
      %v335 = vld [vmem:[%s324 + $0x50] sm:$0xff]
      %v336 = vld [vmem:[%s324 + $0x58] sm:$0xff]
      %v337 = vld [vmem:[%s324 + $0x60] sm:$0xff]
      %v338 = vld [vmem:[%s324 + $0x68] sm:$0xff]
      %v339 = vld [vmem:[%s324 + $0x70] sm:$0xff]
      %v340 = vld [vmem:[%s324 + $0x78] sm:$0xff]
      %s341 = scalar_lea.vmem %s291, %s311
      %v342 = vld [vmem:[%s341] sm:$0xff]
      %v343 = vld [vmem:[%s341 + $0x8] sm:$0xff]
      %v344 = vld [vmem:[%s341 + $0x10] sm:$0xff]
      %v345 = vld [vmem:[%s341 + $0x18] sm:$0xff]
      %p346 = scmp.eq.s32.totalorder %s23, 1
      %s347 = scalar_select %p346, 0.0, 1.0
      %v348 = vstv %s347
      %v349 = vmul.f32 %v342, %v348
      %v350 = vmul.f32 %v343, %v348
      %v351 = vmul.f32 %v344, %v348
      %v352 = vmul.f32 %v345, %v348
      %v353 = vlaneseq
      %v354 = vshrl.u32 %v353, 7
      %v355 = vadd.s32 %v354, 8
      %vm356 = vcmp.ne.s32.totalorder %v354, 0
      %vm357 = vcmp.ne.s32.totalorder %v355, 0
      %v358 = vsel %vm356, 1, 0
      %v359 = vsel %vm357, 1, 0
      %v360 = vcvt.s32.f32 %v358
      %v361 = vcvt.s32.f32 %v359
      %vm362 = vcmp.ne.s32.totalorder %v354, 15
      %vm363 = vcmp.ne.s32.totalorder %v355, 15
      %v364 = vsel %vm362, 1, 0
      %v365 = vsel %vm363, 1, 0
      %v366 = vcvt.s32.f32 %v364
      %v367 = vcvt.s32.f32 %v365
      %v368 = vrot.slane %v320, 7
      %v369 = vrot.slane %v321, 7
      %v370 = vrot.slane %v322, 7
      %v371 = vrot.slane %v323, 7
      %v372 = vrot.slane %v325, 7
      %v373 = vrot.slane %v326, 7
      %v374 = vrot.slane %v327, 7
      %v375 = vrot.slane %v328, 7
      %v376 = vrot.slane %v329, 7
      %v377 = vrot.slane %v330, 7
      %v378 = vrot.slane %v331, 7
      %v379 = vrot.slane %v332, 7
      %v380 = vrot.slane %v333, 7
      %v381 = vrot.slane %v334, 7
      %v382 = vrot.slane %v335, 7
      %v383 = vrot.slane %v336, 7
      %v384 = vrot.slane %v337, 7
      %v385 = vrot.slane %v338, 7
      %v386 = vrot.slane %v339, 7
      %v387 = vrot.slane %v340, 7
      %v388 = vrot.slane %v349, 7
      %v389 = vrot.slane %v350, 7
      %v390 = vrot.slane %v351, 7
      %v391 = vrot.slane %v352, 7
      %vm392 = vcmp.lt.s32.totalorder %v354, 1
      %v393 = vsel %vm392, %v390, %v391
      %v394 = vsel %vm392, %v389, %v390
      %v395 = vsel %vm392, %v388, %v389
      %v396 = vsel %vm392, %v387, %v388
      %v397 = vsel %vm392, %v386, %v387
      %v398 = vsel %vm392, %v385, %v386
      %v399 = vsel %vm392, %v384, %v385
      %v400 = vsel %vm392, %v383, %v384
      %v401 = vsel %vm392, %v382, %v383
      %v402 = vsel %vm392, %v381, %v382
      %v403 = vsel %vm392, %v380, %v381
      %v404 = vsel %vm392, %v379, %v380
      %v405 = vsel %vm392, %v378, %v379
      %v406 = vsel %vm392, %v377, %v378
      %v407 = vsel %vm392, %v376, %v377
      %v408 = vsel %vm392, %v375, %v376
      %v409 = vsel %vm392, %v374, %v375
      %v410 = vsel %vm392, %v373, %v374
      %v411 = vsel %vm392, %v372, %v373
      %v412 = vsel %vm392, %v371, %v372
      %v413 = vsel %vm392, %v370, %v371
      %v414 = vsel %vm392, %v369, %v370
      %v415 = vsel %vm392, %v368, %v369
      %v416 = vsel %vm392, %v391, %v368
      %v417 = vmul.f32 %v394, %v360
      %v418 = vmul.f32 %v393, %v361
      %v419 = vmul.f32 %v416, %v360
      %v420 = vmul.f32 %v415, %v361
      %v421 = vmul.f32 %v414, %v360
      %v422 = vmul.f32 %v413, %v361
      %v423 = vmul.f32 %v412, %v360
      %v424 = vmul.f32 %v411, %v361
      %v425 = vmul.f32 %v410, %v360
      %v426 = vmul.f32 %v409, %v361
      %v427 = vmul.f32 %v408, %v360
      %v428 = vmul.f32 %v407, %v361
      %v429 = vmul.f32 %v406, %v360
      %v430 = vmul.f32 %v405, %v361
      %v431 = vmul.f32 %v404, %v360
      %v432 = vmul.f32 %v403, %v361
      %v433 = vmul.f32 %v402, %v360
      %v434 = vmul.f32 %v401, %v361
      %v435 = vmul.f32 %v400, %v360
      %v436 = vmul.f32 %v399, %v361
      %v437 = vmul.f32 %v398, %v360
      %v438 = vmul.f32 %v397, %v361
      %v439 = vmul.f32 %v396, %v360
      %v440 = vmul.f32 %v395, %v361
      %v441 = vld [vmem:[%s1] sm:$0xf]
      %s442 = scalar_lea.vmem %s1, 4
      %v443 = vld [vmem:[%s442] sm:$0xf]
      %vm444 = vcmask 31744
      %v446 = vsel %vm444, %v351, 0
      %v449 = vsel %vm444, %v352, 0
      %v452 = vsel %vm444, %v320, 0
      %v455 = vsel %vm444, %v321, 0
      %v458 = vsel %vm444, %v322, 0
      %v461 = vsel %vm444, %v323, 0
      %v464 = vsel %vm444, %v325, 0
      %v467 = vsel %vm444, %v326, 0
      %v470 = vsel %vm444, %v327, 0
      %v473 = vsel %vm444, %v328, 0
      %v476 = vsel %vm444, %v329, 0
      %v479 = vsel %vm444, %v330, 0
      %v482 = vsel %vm444, %v331, 0
      %v485 = vsel %vm444, %v332, 0
      %v488 = vsel %vm444, %v333, 0
      %v491 = vsel %vm444, %v334, 0
      %v494 = vsel %vm444, %v335, 0
      %v497 = vsel %vm444, %v336, 0
      %v500 = vsel %vm444, %v337, 0
      %v503 = vsel %vm444, %v338, 0
      %v506 = vsel %vm444, %v339, 0
      %v509 = vsel %vm444, %v340, 0
      %v512 = vsel %vm444, %v349, 0
      %v515 = vsel %vm444, %v350, 0
      %vm517 = vcmask 1043456
      %v519 = vsel %vm517, %v443, 0
      %521 = vmatprep.subr.mxu0 0.0
      %522 = vmatpush1.msra.mxu0 %v519
      %523 = vmatprep.subr.mxu0 0.0
      %524 = vmatpush1.msra.mxu0 0.0
      %525 = vmatprep.subr.mxu0 0.0
      %526 = vmatpush1.msra.mxu0 0.0
      %527 = vmatprep.subr.mxu0 0.0
      %528 = vmatpush1.msra.mxu0 0.0
      %529 = vmatprep.subr.mxu0 0.0
      %530 = vmatpush1.msra.mxu0 0.0
      %531 = vmatprep.subr.mxu0 0.0
      %532 = vmatpush1.msra.mxu0 0.0
      %533 = vmatprep.subr.mxu0 0.0
      %534 = vmatpush1.msra.mxu0 0.0
      %535 = vmatprep.subr.mxu0 0.0
      %536 = vmatpush1.msra.mxu0 0.0
      %537 = vmatprep.subr.mxu0 0.0
      %538 = vmatpush1.msra.mxu0 0.0
      %539 = vmatprep.subr.mxu0 0.0
      %540 = vmatpush1.msra.mxu0 0.0
      %541 = vmatprep.subr.mxu0 0.0
      %542 = vmatpush1.msra.mxu0 0.0
      %543 = vmatprep.subr.mxu0 0.0
      %544 = vmatpush1.msra.mxu0 0.0
      %545 = vmatprep.subr.mxu0 0.0
      %546 = vmatpush1.msra.mxu0 0.0
      %547 = vmatprep.subr.mxu0 0.0
      %548 = vmatpush1.msra.mxu0 0.0
      %549 = vmatprep.subr.mxu0 0.0
      %550 = vmatpush1.msra.mxu0 0.0
      %551 = vmatprep.subr.mxu0 0.0
      %552 = vmatpush1.msra.mxu0 0.0
      %553 = vmatprep.subr.mxu0 0.0
      %554 = vmatpush1.msra.mxu0 0.0
      %555 = vmatprep.subr.mxu0 0.0
      %556 = vmatpush1.msra.mxu0 0.0
      %557 = vmatprep.subr.mxu0 0.0
      %558 = vmatpush1.msra.mxu0 0.0
      %559 = vmatprep.subr.mxu0 0.0
      %560 = vmatpush1.msra.mxu0 0.0
      %561 = vmatprep.subr.mxu0 0.0
      %562 = vmatpush1.msra.mxu0 0.0
      %563 = vmatprep.subr.mxu0 0.0
      %564 = vmatpush1.msra.mxu0 0.0
      %565 = vmatprep.subr.mxu0 0.0
      %566 = vmatpush1.msra.mxu0 0.0
      %567 = vmatprep.subr.mxu0 0.0
      %568 = vmatpush1.msra.mxu0 0.0
      %569 = vmatprep.subr.mxu0 0.0
      %570 = vmatpush1.msra.mxu0 0.0
      %571 = vmatprep.subr.mxu0 0.0
      %572 = vmatpush1.msra.mxu0 0.0
      %573 = vmatprep.subr.mxu0 0.0
      %574 = vmatpush1.msra.mxu0 0.0
      %575 = vmatprep.subr.mxu0 0.0
      %576 = vmatpush1.msra.mxu0 0.0
      %577 = vmatprep.subr.mxu0 0.0
      %578 = vmatpush1.msra.mxu0 0.0
      %579 = vmatprep.subr.mxu0 0.0
      %580 = vmatpush1.msra.mxu0 0.0
      %581 = vmatprep.subr.mxu0 0.0
      %582 = vmatpush1.msra.mxu0 0.0
      %583 = vmatprep.subr.mxu0 0.0
      %584 = vmatpush1.msra.mxu0 0.0
      %585 = vmatprep.mubr.f32.mxu0 0.0
      %586 = vmatmul.mubr.f32.gmra.mrb[0].mxu0 %v446
      %v587 = vpop.f32.mrb[0].mxu0
      %v588 = vpop.f32.mrb[0].mxu0
      %589 = vmatprep.mubr.f32.mxu0 0.0
      %590 = vmatmul.mubr.f32.gmra.mrb[0].mxu0 %v449
      %v591 = vpop.f32.mrb[0].mxu0
      %v592 = vpop.f32.mrb[0].mxu0
      %593 = vmatprep.mubr.f32.mxu0 0.0
      %594 = vmatmul.mubr.f32.gmra.mrb[0].mxu0 %v452
      %v595 = vpop.f32.mrb[0].mxu0
      %v596 = vadd.f32 0.0, %v595
      %v597 = vpop.f32.mrb[0].mxu0
      %598 = vmatprep.mubr.f32.mxu0 0.0
      %599 = vmatmul.mubr.f32.gmra.mrb[0].mxu0 %v455
      %v600 = vpop.f32.mrb[0].mxu0
      %v601 = vadd.f32 0.0, %v600
      %v602 = vpop.f32.mrb[0].mxu0
      %603 = vmatprep.mubr.f32.mxu0 0.0
      %604 = vmatmul.mubr.f32.gmra.mrb[0].mxu0 %v458
      %v605 = vpop.f32.mrb[0].mxu0
      %v606 = vadd.f32 0.0, %v605
      %v607 = vpop.f32.mrb[0].mxu0
      %608 = vmatprep.mubr.f32.mxu0 0.0
      %609 = vmatmul.mubr.f32.gmra.mrb[0].mxu0 %v461
      %v610 = vpop.f32.mrb[0].mxu0
      %v611 = vadd.f32 0.0, %v610
      %v612 = vpop.f32.mrb[0].mxu0
      %613 = vmatprep.mubr.f32.mxu0 0.0
      %614 = vmatmul.mubr.f32.gmra.mrb[0].mxu0 %v464
      %v615 = vpop.f32.mrb[0].mxu0
      %v616 = vadd.f32 0.0, %v615
      %v617 = vpop.f32.mrb[0].mxu0
      %618 = vmatprep.mubr.f32.mxu0 0.0
      %619 = vmatmul.mubr.f32.gmra.mrb[0].mxu0 %v467
      %v620 = vpop.f32.mrb[0].mxu0
      %v621 = vadd.f32 0.0, %v620
      %v622 = vpop.f32.mrb[0].mxu0
      %623 = vmatprep.mubr.f32.mxu0 0.0
      %624 = vmatmul.mubr.f32.gmra.mrb[0].mxu0 %v470
      %v625 = vpop.f32.mrb[0].mxu0
      %v626 = vadd.f32 0.0, %v625
      %v627 = vpop.f32.mrb[0].mxu0
      %628 = vmatprep.mubr.f32.mxu0 0.0
      %629 = vmatmul.mubr.f32.gmra.mrb[0].mxu0 %v473
      %v630 = vpop.f32.mrb[0].mxu0
      %v631 = vadd.f32 0.0, %v630
      %v632 = vpop.f32.mrb[0].mxu0
      %633 = vmatprep.mubr.f32.mxu0 0.0
      %634 = vmatmul.mubr.f32.gmra.mrb[0].mxu0 %v476
      %v635 = vpop.f32.mrb[0].mxu0
      %v636 = vadd.f32 0.0, %v635
      %v637 = vpop.f32.mrb[0].mxu0
      %638 = vmatprep.mubr.f32.mxu0 0.0
      %639 = vmatmul.mubr.f32.gmra.mrb[0].mxu0 %v479
      %v640 = vpop.f32.mrb[0].mxu0
      %v641 = vadd.f32 0.0, %v640
      %v642 = vpop.f32.mrb[0].mxu0
      %643 = vmatprep.mubr.f32.mxu0 0.0
      %644 = vmatmul.mubr.f32.gmra.mrb[0].mxu0 %v482
      %v645 = vpop.f32.mrb[0].mxu0
      %v646 = vadd.f32 0.0, %v645
      %v647 = vpop.f32.mrb[0].mxu0
      %648 = vmatprep.mubr.f32.mxu0 0.0
      %649 = vmatmul.mubr.f32.gmra.mrb[0].mxu0 %v485
      %v650 = vpop.f32.mrb[0].mxu0
      %v651 = vadd.f32 0.0, %v650
      %v652 = vpop.f32.mrb[0].mxu0
      %653 = vmatprep.mubr.f32.mxu0 0.0
      %654 = vmatmul.mubr.f32.gmra.mrb[0].mxu0 %v488
      %v655 = vpop.f32.mrb[0].mxu0
      %v656 = vadd.f32 0.0, %v655
      %v657 = vpop.f32.mrb[0].mxu0
      %658 = vmatprep.mubr.f32.mxu0 0.0
      %659 = vmatmul.mubr.f32.gmra.mrb[0].mxu0 %v491
      %v660 = vpop.f32.mrb[0].mxu0
      %v661 = vadd.f32 0.0, %v660
      %v662 = vpop.f32.mrb[0].mxu0
      %663 = vmatprep.mubr.f32.mxu0 0.0
      %664 = vmatmul.mubr.f32.gmra.mrb[0].mxu0 %v494
      %v665 = vpop.f32.mrb[0].mxu0
      %v666 = vadd.f32 0.0, %v665
      %v667 = vpop.f32.mrb[0].mxu0
      %668 = vmatprep.mubr.f32.mxu0 0.0
      %669 = vmatmul.mubr.f32.gmra.mrb[0].mxu0 %v497
      %v670 = vpop.f32.mrb[0].mxu0
      %v671 = vadd.f32 0.0, %v670
      %v672 = vpop.f32.mrb[0].mxu0
      %673 = vmatprep.mubr.f32.mxu0 0.0
      %674 = vmatmul.mubr.f32.gmra.mrb[0].mxu0 %v500
      %v675 = vpop.f32.mrb[0].mxu0
      %v676 = vadd.f32 0.0, %v675
      %v677 = vpop.f32.mrb[0].mxu0
      %678 = vmatprep.mubr.f32.mxu0 0.0
      %679 = vmatmul.mubr.f32.gmra.mrb[0].mxu0 %v503
      %v680 = vpop.f32.mrb[0].mxu0
      %v681 = vadd.f32 0.0, %v680
      %v682 = vpop.f32.mrb[0].mxu0
      %683 = vmatprep.mubr.f32.mxu0 0.0
      %684 = vmatmul.mubr.f32.gmra.mrb[0].mxu0 %v506
      %v685 = vpop.f32.mrb[0].mxu0
      %v686 = vadd.f32 0.0, %v685
      %v687 = vpop.f32.mrb[0].mxu0
      %688 = vmatprep.mubr.f32.mxu0 0.0
      %689 = vmatmul.mubr.f32.gmra.mrb[0].mxu0 %v509
      %v690 = vpop.f32.mrb[0].mxu0
      %v691 = vadd.f32 0.0, %v690
      %v692 = vpop.f32.mrb[0].mxu0
      %693 = vmatprep.mubr.f32.mxu0 0.0
      %694 = vmatmul.mubr.f32.gmra.mrb[0].mxu0 %v512
      %v695 = vpop.f32.mrb[0].mxu0
      %v696 = vpop.f32.mrb[0].mxu0
      %697 = vmatprep.mubr.f32.mxu0 0.0
      %698 = vmatmul.mubr.f32.gmra.mrb[0].mxu0 %v515
      %v699 = vpop.f32.mrb[0].mxu0
      %v700 = vpop.f32.mrb[0].mxu0
      %701 = vdwg.mxu0
      %v703 = vsel %vm444, %v417, 0
      %v706 = vsel %vm444, %v418, 0
      %v709 = vsel %vm444, %v419, 0
      %v712 = vsel %vm444, %v420, 0
      %v715 = vsel %vm444, %v421, 0
      %v718 = vsel %vm444, %v422, 0
      %v721 = vsel %vm444, %v423, 0
      %v724 = vsel %vm444, %v424, 0
      %v727 = vsel %vm444, %v425, 0
      %v730 = vsel %vm444, %v426, 0
      %v733 = vsel %vm444, %v427, 0
      %v736 = vsel %vm444, %v428, 0
      %v739 = vsel %vm444, %v429, 0
      %v742 = vsel %vm444, %v430, 0
      %v745 = vsel %vm444, %v431, 0
      %v748 = vsel %vm444, %v432, 0
      %v751 = vsel %vm444, %v433, 0
      %v754 = vsel %vm444, %v434, 0
      %v757 = vsel %vm444, %v435, 0
      %v760 = vsel %vm444, %v436, 0
      %v763 = vsel %vm444, %v437, 0
      %v766 = vsel %vm444, %v438, 0
      %v769 = vsel %vm444, %v439, 0
      %v772 = vsel %vm444, %v440, 0
      %v775 = vsel %vm517, %v441, 0
      %777 = vmatprep.subr.mxu0 0.0
      %778 = vmatpush1.msra.mxu0 %v775
      %779 = vmatprep.subr.mxu0 0.0
      %780 = vmatpush1.msra.mxu0 0.0
      %781 = vmatprep.subr.mxu0 0.0
      %782 = vmatpush1.msra.mxu0 0.0
      %783 = vmatprep.subr.mxu0 0.0
      %784 = vmatpush1.msra.mxu0 0.0
      %785 = vmatprep.subr.mxu0 0.0
      %786 = vmatpush1.msra.mxu0 0.0
      %787 = vmatprep.subr.mxu0 0.0
      %788 = vmatpush1.msra.mxu0 0.0
      %789 = vmatprep.subr.mxu0 0.0
      %790 = vmatpush1.msra.mxu0 0.0
      %791 = vmatprep.subr.mxu0 0.0
      %792 = vmatpush1.msra.mxu0 0.0
      %793 = vmatprep.subr.mxu0 0.0
      %794 = vmatpush1.msra.mxu0 0.0
      %795 = vmatprep.subr.mxu0 0.0
      %796 = vmatpush1.msra.mxu0 0.0
      %797 = vmatprep.subr.mxu0 0.0
      %798 = vmatpush1.msra.mxu0 0.0
      %799 = vmatprep.subr.mxu0 0.0
      %800 = vmatpush1.msra.mxu0 0.0
      %801 = vmatprep.subr.mxu0 0.0
      %802 = vmatpush1.msra.mxu0 0.0
      %803 = vmatprep.subr.mxu0 0.0
      %804 = vmatpush1.msra.mxu0 0.0
      %805 = vmatprep.subr.mxu0 0.0
      %806 = vmatpush1.msra.mxu0 0.0
      %807 = vmatprep.subr.mxu0 0.0
      %808 = vmatpush1.msra.mxu0 0.0
      %809 = vmatprep.subr.mxu0 0.0
      %810 = vmatpush1.msra.mxu0 0.0
      %811 = vmatprep.subr.mxu0 0.0
      %812 = vmatpush1.msra.mxu0 0.0
      %813 = vmatprep.subr.mxu0 0.0
      %814 = vmatpush1.msra.mxu0 0.0
      %815 = vmatprep.subr.mxu0 0.0
      %816 = vmatpush1.msra.mxu0 0.0
      %817 = vmatprep.subr.mxu0 0.0
      %818 = vmatpush1.msra.mxu0 0.0
      %819 = vmatprep.subr.mxu0 0.0
      %820 = vmatpush1.msra.mxu0 0.0
      %821 = vmatprep.subr.mxu0 0.0
      %822 = vmatpush1.msra.mxu0 0.0
      %823 = vmatprep.subr.mxu0 0.0
      %824 = vmatpush1.msra.mxu0 0.0
      %825 = vmatprep.subr.mxu0 0.0
      %826 = vmatpush1.msra.mxu0 0.0
      %827 = vmatprep.subr.mxu0 0.0
      %828 = vmatpush1.msra.mxu0 0.0
      %829 = vmatprep.subr.mxu0 0.0
      %830 = vmatpush1.msra.mxu0 0.0
      %831 = vmatprep.subr.mxu0 0.0
      %832 = vmatpush1.msra.mxu0 0.0
      %833 = vmatprep.subr.mxu0 0.0
      %834 = vmatpush1.msra.mxu0 0.0
      %835 = vmatprep.subr.mxu0 0.0
      %836 = vmatpush1.msra.mxu0 0.0
      %837 = vmatprep.subr.mxu0 0.0
      %838 = vmatpush1.msra.mxu0 0.0
      %839 = vmatprep.subr.mxu0 0.0
      %840 = vmatpush1.msra.mxu0 0.0
      %841 = vmatprep.mubr.f32.mxu0 0.0
      %842 = vmatmul.mubr.f32.gmra.mrb[0].mxu0 %v703
      %v843 = vpop.f32.mrb[0].mxu0
      %v844 = vpop.f32.mrb[0].mxu0
      %845 = vmatprep.mubr.f32.mxu0 0.0
      %846 = vmatmul.mubr.f32.gmra.mrb[0].mxu0 %v706
      %v847 = vpop.f32.mrb[0].mxu0
      %v848 = vpop.f32.mrb[0].mxu0
      %849 = vmatprep.mubr.f32.mxu0 0.0
      %850 = vmatmul.mubr.f32.gmra.mrb[0].mxu0 %v709
      %v851 = vpop.f32.mrb[0].mxu0
      %v852 = vadd.f32 %v596, %v851
      %v853 = vpop.f32.mrb[0].mxu0
      %854 = vmatprep.mubr.f32.mxu0 0.0
      %855 = vmatmul.mubr.f32.gmra.mrb[0].mxu0 %v712
      %v856 = vpop.f32.mrb[0].mxu0
      %v857 = vadd.f32 %v601, %v856
      %v858 = vpop.f32.mrb[0].mxu0
      %859 = vmatprep.mubr.f32.mxu0 0.0
      %860 = vmatmul.mubr.f32.gmra.mrb[0].mxu0 %v715
      %v861 = vpop.f32.mrb[0].mxu0
      %v862 = vadd.f32 %v606, %v861
      %v863 = vpop.f32.mrb[0].mxu0
      %864 = vmatprep.mubr.f32.mxu0 0.0
      %865 = vmatmul.mubr.f32.gmra.mrb[0].mxu0 %v718
      %v866 = vpop.f32.mrb[0].mxu0
      %v867 = vadd.f32 %v611, %v866
      %v868 = vpop.f32.mrb[0].mxu0
      %869 = vmatprep.mubr.f32.mxu0 0.0
      %870 = vmatmul.mubr.f32.gmra.mrb[0].mxu0 %v721
      %v871 = vpop.f32.mrb[0].mxu0
      %v872 = vadd.f32 %v616, %v871
      %v873 = vpop.f32.mrb[0].mxu0
      %874 = vmatprep.mubr.f32.mxu0 0.0
      %875 = vmatmul.mubr.f32.gmra.mrb[0].mxu0 %v724
      %v876 = vpop.f32.mrb[0].mxu0
      %v877 = vadd.f32 %v621, %v876
      %v878 = vpop.f32.mrb[0].mxu0
      %879 = vmatprep.mubr.f32.mxu0 0.0
      %880 = vmatmul.mubr.f32.gmra.mrb[0].mxu0 %v727
      %v881 = vpop.f32.mrb[0].mxu0
      %v882 = vadd.f32 %v626, %v881
      %v883 = vpop.f32.mrb[0].mxu0
      %884 = vmatprep.mubr.f32.mxu0 0.0
      %885 = vmatmul.mubr.f32.gmra.mrb[0].mxu0 %v730
      %v886 = vpop.f32.mrb[0].mxu0
      %v887 = vadd.f32 %v631, %v886
      %v888 = vpop.f32.mrb[0].mxu0
      %889 = vmatprep.mubr.f32.mxu0 0.0
      %890 = vmatmul.mubr.f32.gmra.mrb[0].mxu0 %v733
      %v891 = vpop.f32.mrb[0].mxu0
      %v892 = vadd.f32 %v636, %v891
      %v893 = vpop.f32.mrb[0].mxu0
      %894 = vmatprep.mubr.f32.mxu0 0.0
      %895 = vmatmul.mubr.f32.gmra.mrb[0].mxu0 %v736
      %v896 = vpop.f32.mrb[0].mxu0
      %v897 = vadd.f32 %v641, %v896
      %v898 = vpop.f32.mrb[0].mxu0
      %899 = vmatprep.mubr.f32.mxu0 0.0
      %900 = vmatmul.mubr.f32.gmra.mrb[0].mxu0 %v739
      %v901 = vpop.f32.mrb[0].mxu0
      %v902 = vadd.f32 %v646, %v901
      %v903 = vpop.f32.mrb[0].mxu0
      %904 = vmatprep.mubr.f32.mxu0 0.0
      %905 = vmatmul.mubr.f32.gmra.mrb[0].mxu0 %v742
      %v906 = vpop.f32.mrb[0].mxu0
      %v907 = vadd.f32 %v651, %v906
      %v908 = vpop.f32.mrb[0].mxu0
      %909 = vmatprep.mubr.f32.mxu0 0.0
      %910 = vmatmul.mubr.f32.gmra.mrb[0].mxu0 %v745
      %v911 = vpop.f32.mrb[0].mxu0
      %v912 = vadd.f32 %v656, %v911
      %v913 = vpop.f32.mrb[0].mxu0
      %914 = vmatprep.mubr.f32.mxu0 0.0
      %915 = vmatmul.mubr.f32.gmra.mrb[0].mxu0 %v748
      %v916 = vpop.f32.mrb[0].mxu0
      %v917 = vadd.f32 %v661, %v916
      %v918 = vpop.f32.mrb[0].mxu0
      %919 = vmatprep.mubr.f32.mxu0 0.0
      %920 = vmatmul.mubr.f32.gmra.mrb[0].mxu0 %v751
      %v921 = vpop.f32.mrb[0].mxu0
      %v922 = vadd.f32 %v666, %v921
      %v923 = vpop.f32.mrb[0].mxu0
      %924 = vmatprep.mubr.f32.mxu0 0.0
      %925 = vmatmul.mubr.f32.gmra.mrb[0].mxu0 %v754
      %v926 = vpop.f32.mrb[0].mxu0
      %v927 = vadd.f32 %v671, %v926
      %v928 = vpop.f32.mrb[0].mxu0
      %929 = vmatprep.mubr.f32.mxu0 0.0
      %930 = vmatmul.mubr.f32.gmra.mrb[0].mxu0 %v757
      %v931 = vpop.f32.mrb[0].mxu0
      %v932 = vadd.f32 %v676, %v931
      %v933 = vpop.f32.mrb[0].mxu0
      %934 = vmatprep.mubr.f32.mxu0 0.0
      %935 = vmatmul.mubr.f32.gmra.mrb[0].mxu0 %v760
      %v936 = vpop.f32.mrb[0].mxu0
      %v937 = vadd.f32 %v681, %v936
      %v938 = vpop.f32.mrb[0].mxu0
      %939 = vmatprep.mubr.f32.mxu0 0.0
      %940 = vmatmul.mubr.f32.gmra.mrb[0].mxu0 %v763
      %v941 = vpop.f32.mrb[0].mxu0
      %v942 = vadd.f32 %v686, %v941
      %v943 = vpop.f32.mrb[0].mxu0
      %944 = vmatprep.mubr.f32.mxu0 0.0
      %945 = vmatmul.mubr.f32.gmra.mrb[0].mxu0 %v766
      %v946 = vpop.f32.mrb[0].mxu0
      %v947 = vadd.f32 %v691, %v946
      %v948 = vpop.f32.mrb[0].mxu0
      %949 = vmatprep.mubr.f32.mxu0 0.0
      %950 = vmatmul.mubr.f32.gmra.mrb[0].mxu0 %v769
      %v951 = vpop.f32.mrb[0].mxu0
      %v952 = vpop.f32.mrb[0].mxu0
      %953 = vmatprep.mubr.f32.mxu0 0.0
      %954 = vmatmul.mubr.f32.gmra.mrb[0].mxu0 %v772
      %v955 = vpop.f32.mrb[0].mxu0
      %v956 = vpop.f32.mrb[0].mxu0
      %957 = vdwg.mxu0
      %v958 = vrot.slane %v320, 1
      %v959 = vrot.slane %v321, 1
      %v960 = vrot.slane %v322, 1
      %v961 = vrot.slane %v323, 1
      %v962 = vrot.slane %v325, 1
      %v963 = vrot.slane %v326, 1
      %v964 = vrot.slane %v327, 1
      %v965 = vrot.slane %v328, 1
      %v966 = vrot.slane %v329, 1
      %v967 = vrot.slane %v330, 1
      %v968 = vrot.slane %v331, 1
      %v969 = vrot.slane %v332, 1
      %v970 = vrot.slane %v333, 1
      %v971 = vrot.slane %v334, 1
      %v972 = vrot.slane %v335, 1
      %v973 = vrot.slane %v336, 1
      %v974 = vrot.slane %v337, 1
      %v975 = vrot.slane %v338, 1
      %v976 = vrot.slane %v339, 1
      %v977 = vrot.slane %v340, 1
      %v978 = vrot.slane %v349, 1
      %v979 = vrot.slane %v350, 1
      %v980 = vrot.slane %v351, 1
      %v981 = vrot.slane %v352, 1
      %vm982 = vcmp.lt.s32.totalorder %v354, 7
      %v983 = vsel %vm982, %v980, %v981
      %v984 = vsel %vm982, %v979, %v980
      %v985 = vsel %vm982, %v978, %v979
      %v986 = vsel %vm982, %v977, %v978
      %v987 = vsel %vm982, %v976, %v977
      %v988 = vsel %vm982, %v975, %v976
      %v989 = vsel %vm982, %v974, %v975
      %v990 = vsel %vm982, %v973, %v974
      %v991 = vsel %vm982, %v972, %v973
      %v992 = vsel %vm982, %v971, %v972
      %v993 = vsel %vm982, %v970, %v971
      %v994 = vsel %vm982, %v969, %v970
      %v995 = vsel %vm982, %v968, %v969
      %v996 = vsel %vm982, %v967, %v968
      %v997 = vsel %vm982, %v966, %v967
      %v998 = vsel %vm982, %v965, %v966
      %v999 = vsel %vm982, %v964, %v965
      %v1000 = vsel %vm982, %v963, %v964
      %v1001 = vsel %vm982, %v962, %v963
      %v1002 = vsel %vm982, %v961, %v962
      %v1003 = vsel %vm982, %v960, %v961
      %v1004 = vsel %vm982, %v959, %v960
      %v1005 = vsel %vm982, %v958, %v959
      %v1006 = vsel %vm982, %v981, %v958
      %v1007 = vmul.f32 %v983, %v366
      %v1008 = vmul.f32 %v1006, %v367
      %v1009 = vmul.f32 %v1005, %v366
      %v1010 = vmul.f32 %v1004, %v367
      %v1011 = vmul.f32 %v1003, %v366
      %v1012 = vmul.f32 %v1002, %v367
      %v1013 = vmul.f32 %v1001, %v366
      %v1014 = vmul.f32 %v1000, %v367
      %v1015 = vmul.f32 %v999, %v366
      %v1016 = vmul.f32 %v998, %v367
      %v1017 = vmul.f32 %v997, %v366
      %v1018 = vmul.f32 %v996, %v367
      %v1019 = vmul.f32 %v995, %v366
      %v1020 = vmul.f32 %v994, %v367
      %v1021 = vmul.f32 %v993, %v366
      %v1022 = vmul.f32 %v992, %v367
      %v1023 = vmul.f32 %v991, %v366
      %v1024 = vmul.f32 %v990, %v367
      %v1025 = vmul.f32 %v989, %v366
      %v1026 = vmul.f32 %v988, %v367
      %v1027 = vmul.f32 %v987, %v366
      %v1028 = vmul.f32 %v986, %v367
      %v1029 = vmul.f32 %v985, %v366
      %v1030 = vmul.f32 %v984, %v367
      %s1031 = scalar_lea.vmem %s1, 8
      %v1032 = vld [vmem:[%s1031] sm:$0xf]
      %v1034 = vsel %vm444, %v1007, 0
      %v1037 = vsel %vm444, %v1008, 0
      %v1040 = vsel %vm444, %v1009, 0
      %v1043 = vsel %vm444, %v1010, 0
      %v1046 = vsel %vm444, %v1011, 0
      %v1049 = vsel %vm444, %v1012, 0
      %v1052 = vsel %vm444, %v1013, 0
      %v1055 = vsel %vm444, %v1014, 0
      %v1058 = vsel %vm444, %v1015, 0
      %v1061 = vsel %vm444, %v1016, 0
      %v1064 = vsel %vm444, %v1017, 0
      %v1067 = vsel %vm444, %v1018, 0
      %v1070 = vsel %vm444, %v1019, 0
      %v1073 = vsel %vm444, %v1020, 0
      %v1076 = vsel %vm444, %v1021, 0
      %v1079 = vsel %vm444, %v1022, 0
      %v1082 = vsel %vm444, %v1023, 0
      %v1085 = vsel %vm444, %v1024, 0
      %v1088 = vsel %vm444, %v1025, 0
      %v1091 = vsel %vm444, %v1026, 0
      %v1094 = vsel %vm444, %v1027, 0
      %v1097 = vsel %vm444, %v1028, 0
      %v1100 = vsel %vm444, %v1029, 0
      %v1103 = vsel %vm444, %v1030, 0
      %v1106 = vsel %vm517, %v1032, 0
      %1108 = vmatprep.subr.mxu0 0.0
      %1109 = vmatpush1.msra.mxu0 %v1106
      %1110 = vmatprep.subr.mxu0 0.0
      %1111 = vmatpush1.msra.mxu0 0.0
      %1112 = vmatprep.subr.mxu0 0.0
      %1113 = vmatpush1.msra.mxu0 0.0
      %1114 = vmatprep.subr.mxu0 0.0
      %1115 = vmatpush1.msra.mxu0 0.0
      %1116 = vmatprep.subr.mxu0 0.0
      %1117 = vmatpush1.msra.mxu0 0.0
      %1118 = vmatprep.subr.mxu0 0.0
      %1119 = vmatpush1.msra.mxu0 0.0
      %1120 = vmatprep.subr.mxu0 0.0
      %1121 = vmatpush1.msra.mxu0 0.0
      %1122 = vmatprep.subr.mxu0 0.0
      %1123 = vmatpush1.msra.mxu0 0.0
      %1124 = vmatprep.subr.mxu0 0.0
      %1125 = vmatpush1.msra.mxu0 0.0
      %1126 = vmatprep.subr.mxu0 0.0
      %1127 = vmatpush1.msra.mxu0 0.0
      %1128 = vmatprep.subr.mxu0 0.0
      %1129 = vmatpush1.msra.mxu0 0.0
      %1130 = vmatprep.subr.mxu0 0.0
      %1131 = vmatpush1.msra.mxu0 0.0
      %1132 = vmatprep.subr.mxu0 0.0
      %1133 = vmatpush1.msra.mxu0 0.0
      %1134 = vmatprep.subr.mxu0 0.0
      %1135 = vmatpush1.msra.mxu0 0.0
      %1136 = vmatprep.subr.mxu0 0.0
      %1137 = vmatpush1.msra.mxu0 0.0
      %1138 = vmatprep.subr.mxu0 0.0
      %1139 = vmatpush1.msra.mxu0 0.0
      %1140 = vmatprep.subr.mxu0 0.0
      %1141 = vmatpush1.msra.mxu0 0.0
      %1142 = vmatprep.subr.mxu0 0.0
      %1143 = vmatpush1.msra.mxu0 0.0
      %1144 = vmatprep.subr.mxu0 0.0
      %1145 = vmatpush1.msra.mxu0 0.0
      %1146 = vmatprep.subr.mxu0 0.0
      %1147 = vmatpush1.msra.mxu0 0.0
      %1148 = vmatprep.subr.mxu0 0.0
      %1149 = vmatpush1.msra.mxu0 0.0
      %1150 = vmatprep.subr.mxu0 0.0
      %1151 = vmatpush1.msra.mxu0 0.0
      %1152 = vmatprep.subr.mxu0 0.0
      %1153 = vmatpush1.msra.mxu0 0.0
      %1154 = vmatprep.subr.mxu0 0.0
      %1155 = vmatpush1.msra.mxu0 0.0
      %1156 = vmatprep.subr.mxu0 0.0
      %1157 = vmatpush1.msra.mxu0 0.0
      %1158 = vmatprep.subr.mxu0 0.0
      %1159 = vmatpush1.msra.mxu0 0.0
      %1160 = vmatprep.subr.mxu0 0.0
      %1161 = vmatpush1.msra.mxu0 0.0
      %1162 = vmatprep.subr.mxu0 0.0
      %1163 = vmatpush1.msra.mxu0 0.0
      %1164 = vmatprep.subr.mxu0 0.0
      %1165 = vmatpush1.msra.mxu0 0.0
      %1166 = vmatprep.subr.mxu0 0.0
      %1167 = vmatpush1.msra.mxu0 0.0
      %1168 = vmatprep.subr.mxu0 0.0
      %1169 = vmatpush1.msra.mxu0 0.0
      %1170 = vmatprep.subr.mxu0 0.0
      %1171 = vmatpush1.msra.mxu0 0.0
      %1172 = vmatprep.mubr.f32.mxu0 0.0
      %1173 = vmatmul.mubr.f32.gmra.mrb[0].mxu0 %v1034
      %v1174 = vpop.f32.mrb[0].mxu0
      %v1175 = vpop.f32.mrb[0].mxu0
      %1176 = vmatprep.mubr.f32.mxu0 0.0
      %1177 = vmatmul.mubr.f32.gmra.mrb[0].mxu0 %v1037
      %v1178 = vpop.f32.mrb[0].mxu0
      %v1179 = vpop.f32.mrb[0].mxu0
      %1180 = vmatprep.mubr.f32.mxu0 0.0
      %1181 = vmatmul.mubr.f32.gmra.mrb[0].mxu0 %v1040
      %v1182 = vpop.f32.mrb[0].mxu0
      %v1183 = vadd.f32 0.0, %v1182
      %v1184 = vpop.f32.mrb[0].mxu0
      %1185 = vmatprep.mubr.f32.mxu0 0.0
      %1186 = vmatmul.mubr.f32.gmra.mrb[0].mxu0 %v1043
      %v1187 = vpop.f32.mrb[0].mxu0
      %v1188 = vadd.f32 0.0, %v1187
      %v1189 = vpop.f32.mrb[0].mxu0
      %1190 = vmatprep.mubr.f32.mxu0 0.0
      %1191 = vmatmul.mubr.f32.gmra.mrb[0].mxu0 %v1046
      %v1192 = vpop.f32.mrb[0].mxu0
      %v1193 = vadd.f32 0.0, %v1192
      %v1194 = vpop.f32.mrb[0].mxu0
      %1195 = vmatprep.mubr.f32.mxu0 0.0
      %1196 = vmatmul.mubr.f32.gmra.mrb[0].mxu0 %v1049
      %v1197 = vpop.f32.mrb[0].mxu0
      %v1198 = vadd.f32 0.0, %v1197
      %v1199 = vpop.f32.mrb[0].mxu0
      %1200 = vmatprep.mubr.f32.mxu0 0.0
      %1201 = vmatmul.mubr.f32.gmra.mrb[0].mxu0 %v1052
      %v1202 = vpop.f32.mrb[0].mxu0
      %v1203 = vadd.f32 0.0, %v1202
      %v1204 = vpop.f32.mrb[0].mxu0
      %1205 = vmatprep.mubr.f32.mxu0 0.0
      %1206 = vmatmul.mubr.f32.gmra.mrb[0].mxu0 %v1055
      %v1207 = vpop.f32.mrb[0].mxu0
      %v1208 = vadd.f32 0.0, %v1207
      %v1209 = vpop.f32.mrb[0].mxu0
      %1210 = vmatprep.mubr.f32.mxu0 0.0
      %1211 = vmatmul.mubr.f32.gmra.mrb[0].mxu0 %v1058
      %v1212 = vpop.f32.mrb[0].mxu0
      %v1213 = vadd.f32 0.0, %v1212
      %v1214 = vpop.f32.mrb[0].mxu0
      %1215 = vmatprep.mubr.f32.mxu0 0.0
      %1216 = vmatmul.mubr.f32.gmra.mrb[0].mxu0 %v1061
      %v1217 = vpop.f32.mrb[0].mxu0
      %v1218 = vadd.f32 0.0, %v1217
      %v1219 = vpop.f32.mrb[0].mxu0
      %1220 = vmatprep.mubr.f32.mxu0 0.0
      %1221 = vmatmul.mubr.f32.gmra.mrb[0].mxu0 %v1064
      %v1222 = vpop.f32.mrb[0].mxu0
      %v1223 = vadd.f32 0.0, %v1222
      %v1224 = vpop.f32.mrb[0].mxu0
      %1225 = vmatprep.mubr.f32.mxu0 0.0
      %1226 = vmatmul.mubr.f32.gmra.mrb[0].mxu0 %v1067
      %v1227 = vpop.f32.mrb[0].mxu0
      %v1228 = vadd.f32 0.0, %v1227
      %v1229 = vpop.f32.mrb[0].mxu0
      %1230 = vmatprep.mubr.f32.mxu0 0.0
      %1231 = vmatmul.mubr.f32.gmra.mrb[0].mxu0 %v1070
      %v1232 = vpop.f32.mrb[0].mxu0
      %v1233 = vadd.f32 0.0, %v1232
      %v1234 = vpop.f32.mrb[0].mxu0
      %1235 = vmatprep.mubr.f32.mxu0 0.0
      %1236 = vmatmul.mubr.f32.gmra.mrb[0].mxu0 %v1073
      %v1237 = vpop.f32.mrb[0].mxu0
      %v1238 = vadd.f32 0.0, %v1237
      %v1239 = vpop.f32.mrb[0].mxu0
      %1240 = vmatprep.mubr.f32.mxu0 0.0
      %1241 = vmatmul.mubr.f32.gmra.mrb[0].mxu0 %v1076
      %v1242 = vpop.f32.mrb[0].mxu0
      %v1243 = vadd.f32 0.0, %v1242
      %v1244 = vpop.f32.mrb[0].mxu0
      %1245 = vmatprep.mubr.f32.mxu0 0.0
      %1246 = vmatmul.mubr.f32.gmra.mrb[0].mxu0 %v1079
      %v1247 = vpop.f32.mrb[0].mxu0
      %v1248 = vadd.f32 0.0, %v1247
      %v1249 = vpop.f32.mrb[0].mxu0
      %1250 = vmatprep.mubr.f32.mxu0 0.0
      %1251 = vmatmul.mubr.f32.gmra.mrb[0].mxu0 %v1082
      %v1252 = vpop.f32.mrb[0].mxu0
      %v1253 = vadd.f32 0.0, %v1252
      %v1254 = vpop.f32.mrb[0].mxu0
      %1255 = vmatprep.mubr.f32.mxu0 0.0
      %1256 = vmatmul.mubr.f32.gmra.mrb[0].mxu0 %v1085
      %v1257 = vpop.f32.mrb[0].mxu0
      %v1258 = vadd.f32 0.0, %v1257
      %v1259 = vpop.f32.mrb[0].mxu0
      %1260 = vmatprep.mubr.f32.mxu0 0.0
      %1261 = vmatmul.mubr.f32.gmra.mrb[0].mxu0 %v1088
      %v1262 = vpop.f32.mrb[0].mxu0
      %v1263 = vadd.f32 0.0, %v1262
      %v1264 = vpop.f32.mrb[0].mxu0
      %1265 = vmatprep.mubr.f32.mxu0 0.0
      %1266 = vmatmul.mubr.f32.gmra.mrb[0].mxu0 %v1091
      %v1267 = vpop.f32.mrb[0].mxu0
      %v1268 = vadd.f32 0.0, %v1267
      %v1269 = vpop.f32.mrb[0].mxu0
      %1270 = vmatprep.mubr.f32.mxu0 0.0
      %1271 = vmatmul.mubr.f32.gmra.mrb[0].mxu0 %v1094
      %v1272 = vpop.f32.mrb[0].mxu0
      %v1273 = vadd.f32 0.0, %v1272
      %v1274 = vpop.f32.mrb[0].mxu0
      %1275 = vmatprep.mubr.f32.mxu0 0.0
      %1276 = vmatmul.mubr.f32.gmra.mrb[0].mxu0 %v1097
      %v1277 = vpop.f32.mrb[0].mxu0
      %v1278 = vadd.f32 0.0, %v1277
      %v1279 = vpop.f32.mrb[0].mxu0
      %1280 = vmatprep.mubr.f32.mxu0 0.0
      %1281 = vmatmul.mubr.f32.gmra.mrb[0].mxu0 %v1100
      %v1282 = vpop.f32.mrb[0].mxu0
      %v1283 = vpop.f32.mrb[0].mxu0
      %1284 = vmatprep.mubr.f32.mxu0 0.0
      %1285 = vmatmul.mubr.f32.gmra.mrb[0].mxu0 %v1103
      %v1286 = vpop.f32.mrb[0].mxu0
      %v1287 = vpop.f32.mrb[0].mxu0
      %1288 = vdwg.mxu0
      %v1289 = vadd.f32 %v852, %v1183
      %v1290 = vadd.f32 %v857, %v1188
      %v1291 = vadd.f32 %v862, %v1193
      %v1292 = vadd.f32 %v867, %v1198
      %v1293 = vadd.f32 %v872, %v1203
      %v1294 = vadd.f32 %v877, %v1208
      %v1295 = vadd.f32 %v882, %v1213
      %v1296 = vadd.f32 %v887, %v1218
      %v1297 = vadd.f32 %v892, %v1223
      %v1298 = vadd.f32 %v897, %v1228
      %v1299 = vadd.f32 %v902, %v1233
      %v1300 = vadd.f32 %v907, %v1238
      %v1301 = vadd.f32 %v912, %v1243
      %v1302 = vadd.f32 %v917, %v1248
      %v1303 = vadd.f32 %v922, %v1253
      %v1304 = vadd.f32 %v927, %v1258
      %v1305 = vadd.f32 %v932, %v1263
      %v1306 = vadd.f32 %v937, %v1268
      %v1307 = vadd.f32 %v942, %v1273
      %v1308 = vadd.f32 %v947, %v1278
      %s1309 = scalar_lea.vmem %s1, 12
      %v1310 = vld [vmem:[%s1309] sm:$0xf]
      %v1312 = vsel %vm517, %v1310, 0
      %1314 = vmatprep.subr.mxu0 0.0
      %1315 = vmatpush1.msra.mxu0 %v1312
      %1316 = vmatprep.subr.mxu0 0.0
      %1317 = vmatpush1.msra.mxu0 0.0
      %1318 = vmatprep.subr.mxu0 0.0
      %1319 = vmatpush1.msra.mxu0 0.0
      %1320 = vmatprep.subr.mxu0 0.0
      %1321 = vmatpush1.msra.mxu0 0.0
      %1322 = vmatprep.subr.mxu0 0.0
      %1323 = vmatpush1.msra.mxu0 0.0
      %1324 = vmatprep.subr.mxu0 0.0
      %1325 = vmatpush1.msra.mxu0 0.0
      %1326 = vmatprep.subr.mxu0 0.0
      %1327 = vmatpush1.msra.mxu0 0.0
      %1328 = vmatprep.subr.mxu0 0.0
      %1329 = vmatpush1.msra.mxu0 0.0
      %1330 = vmatprep.subr.mxu0 0.0
      %1331 = vmatpush1.msra.mxu0 0.0
      %1332 = vmatprep.subr.mxu0 0.0
      %1333 = vmatpush1.msra.mxu0 0.0
      %1334 = vmatprep.subr.mxu0 0.0
      %1335 = vmatpush1.msra.mxu0 0.0
      %1336 = vmatprep.subr.mxu0 0.0
      %1337 = vmatpush1.msra.mxu0 0.0
      %1338 = vmatprep.subr.mxu0 0.0
      %1339 = vmatpush1.msra.mxu0 0.0
      %1340 = vmatprep.subr.mxu0 0.0
      %1341 = vmatpush1.msra.mxu0 0.0
      %1342 = vmatprep.subr.mxu0 0.0
      %1343 = vmatpush1.msra.mxu0 0.0
      %1344 = vmatprep.subr.mxu0 0.0
      %1345 = vmatpush1.msra.mxu0 0.0
      %1346 = vmatprep.subr.mxu0 0.0
      %1347 = vmatpush1.msra.mxu0 0.0
      %1348 = vmatprep.subr.mxu0 0.0
      %1349 = vmatpush1.msra.mxu0 0.0
      %1350 = vmatprep.subr.mxu0 0.0
      %1351 = vmatpush1.msra.mxu0 0.0
      %1352 = vmatprep.subr.mxu0 0.0
      %1353 = vmatpush1.msra.mxu0 0.0
      %1354 = vmatprep.subr.mxu0 0.0
      %1355 = vmatpush1.msra.mxu0 0.0
      %1356 = vmatprep.subr.mxu0 0.0
      %1357 = vmatpush1.msra.mxu0 0.0
      %1358 = vmatprep.subr.mxu0 0.0
      %1359 = vmatpush1.msra.mxu0 0.0
      %1360 = vmatprep.subr.mxu0 0.0
      %1361 = vmatpush1.msra.mxu0 0.0
      %1362 = vmatprep.subr.mxu0 0.0
      %1363 = vmatpush1.msra.mxu0 0.0
      %1364 = vmatprep.subr.mxu0 0.0
      %1365 = vmatpush1.msra.mxu0 0.0
      %1366 = vmatprep.subr.mxu0 0.0
      %1367 = vmatpush1.msra.mxu0 0.0
      %1368 = vmatprep.subr.mxu0 0.0
      %1369 = vmatpush1.msra.mxu0 0.0
      %1370 = vmatprep.subr.mxu0 0.0
      %1371 = vmatpush1.msra.mxu0 0.0
      %1372 = vmatprep.subr.mxu0 0.0
      %1373 = vmatpush1.msra.mxu0 0.0
      %1374 = vmatprep.subr.mxu0 0.0
      %1375 = vmatpush1.msra.mxu0 0.0
      %1376 = vmatprep.subr.mxu0 0.0
      %1377 = vmatpush1.msra.mxu0 0.0
      %1378 = vmatprep.mubr.f32.mxu0 0.0
      %1379 = vmatmul.mubr.f32.gmra.mrb[0].mxu0 %v709
      %v1380 = vpop.f32.mrb[0].mxu0
      %v1381 = vpop.f32.mrb[0].mxu0
      %1382 = vmatprep.mubr.f32.mxu0 0.0
      %1383 = vmatmul.mubr.f32.gmra.mrb[0].mxu0 %v712
      %v1384 = vpop.f32.mrb[0].mxu0
      %v1385 = vpop.f32.mrb[0].mxu0
      %1386 = vmatprep.mubr.f32.mxu0 0.0
      %1387 = vmatmul.mubr.f32.gmra.mrb[0].mxu0 %v715
      %v1388 = vpop.f32.mrb[0].mxu0
      %v1389 = vadd.f32 0.0, %v1388
      %v1390 = vpop.f32.mrb[0].mxu0
      %1391 = vmatprep.mubr.f32.mxu0 0.0
      %1392 = vmatmul.mubr.f32.gmra.mrb[0].mxu0 %v718
      %v1393 = vpop.f32.mrb[0].mxu0
      %v1394 = vadd.f32 0.0, %v1393
      %v1395 = vpop.f32.mrb[0].mxu0
      %1396 = vmatprep.mubr.f32.mxu0 0.0
      %1397 = vmatmul.mubr.f32.gmra.mrb[0].mxu0 %v721
      %v1398 = vpop.f32.mrb[0].mxu0
      %v1399 = vadd.f32 0.0, %v1398
      %v1400 = vpop.f32.mrb[0].mxu0
      %1401 = vmatprep.mubr.f32.mxu0 0.0
      %1402 = vmatmul.mubr.f32.gmra.mrb[0].mxu0 %v724
      %v1403 = vpop.f32.mrb[0].mxu0
      %v1404 = vadd.f32 0.0, %v1403
      %v1405 = vpop.f32.mrb[0].mxu0
      %1406 = vmatprep.mubr.f32.mxu0 0.0
      %1407 = vmatmul.mubr.f32.gmra.mrb[0].mxu0 %v727
      %v1408 = vpop.f32.mrb[0].mxu0
      %v1409 = vadd.f32 0.0, %v1408
      %v1410 = vpop.f32.mrb[0].mxu0
      %1411 = vmatprep.mubr.f32.mxu0 0.0
      %1412 = vmatmul.mubr.f32.gmra.mrb[0].mxu0 %v730
      %v1413 = vpop.f32.mrb[0].mxu0
      %v1414 = vadd.f32 0.0, %v1413
      %v1415 = vpop.f32.mrb[0].mxu0
      %1416 = vmatprep.mubr.f32.mxu0 0.0
      %1417 = vmatmul.mubr.f32.gmra.mrb[0].mxu0 %v733
      %v1418 = vpop.f32.mrb[0].mxu0
      %v1419 = vadd.f32 0.0, %v1418
      %v1420 = vpop.f32.mrb[0].mxu0
      %1421 = vmatprep.mubr.f32.mxu0 0.0
      %1422 = vmatmul.mubr.f32.gmra.mrb[0].mxu0 %v736
      %v1423 = vpop.f32.mrb[0].mxu0
      %v1424 = vadd.f32 0.0, %v1423
      %v1425 = vpop.f32.mrb[0].mxu0
      %1426 = vmatprep.mubr.f32.mxu0 0.0
      %1427 = vmatmul.mubr.f32.gmra.mrb[0].mxu0 %v739
      %v1428 = vpop.f32.mrb[0].mxu0
      %v1429 = vadd.f32 0.0, %v1428
      %v1430 = vpop.f32.mrb[0].mxu0
      %1431 = vmatprep.mubr.f32.mxu0 0.0
      %1432 = vmatmul.mubr.f32.gmra.mrb[0].mxu0 %v742
      %v1433 = vpop.f32.mrb[0].mxu0
      %v1434 = vadd.f32 0.0, %v1433
      %v1435 = vpop.f32.mrb[0].mxu0
      %1436 = vmatprep.mubr.f32.mxu0 0.0
      %1437 = vmatmul.mubr.f32.gmra.mrb[0].mxu0 %v745
      %v1438 = vpop.f32.mrb[0].mxu0
      %v1439 = vadd.f32 0.0, %v1438
      %v1440 = vpop.f32.mrb[0].mxu0
      %1441 = vmatprep.mubr.f32.mxu0 0.0
      %1442 = vmatmul.mubr.f32.gmra.mrb[0].mxu0 %v748
      %v1443 = vpop.f32.mrb[0].mxu0
      %v1444 = vadd.f32 0.0, %v1443
      %v1445 = vpop.f32.mrb[0].mxu0
      %1446 = vmatprep.mubr.f32.mxu0 0.0
      %1447 = vmatmul.mubr.f32.gmra.mrb[0].mxu0 %v751
      %v1448 = vpop.f32.mrb[0].mxu0
      %v1449 = vadd.f32 0.0, %v1448
      %v1450 = vpop.f32.mrb[0].mxu0
      %1451 = vmatprep.mubr.f32.mxu0 0.0
      %1452 = vmatmul.mubr.f32.gmra.mrb[0].mxu0 %v754
      %v1453 = vpop.f32.mrb[0].mxu0
      %v1454 = vadd.f32 0.0, %v1453
      %v1455 = vpop.f32.mrb[0].mxu0
      %1456 = vmatprep.mubr.f32.mxu0 0.0
      %1457 = vmatmul.mubr.f32.gmra.mrb[0].mxu0 %v757
      %v1458 = vpop.f32.mrb[0].mxu0
      %v1459 = vadd.f32 0.0, %v1458
      %v1460 = vpop.f32.mrb[0].mxu0
      %1461 = vmatprep.mubr.f32.mxu0 0.0
      %1462 = vmatmul.mubr.f32.gmra.mrb[0].mxu0 %v760
      %v1463 = vpop.f32.mrb[0].mxu0
      %v1464 = vadd.f32 0.0, %v1463
      %v1465 = vpop.f32.mrb[0].mxu0
      %1466 = vmatprep.mubr.f32.mxu0 0.0
      %1467 = vmatmul.mubr.f32.gmra.mrb[0].mxu0 %v763
      %v1468 = vpop.f32.mrb[0].mxu0
      %v1469 = vadd.f32 0.0, %v1468
      %v1470 = vpop.f32.mrb[0].mxu0
      %1471 = vmatprep.mubr.f32.mxu0 0.0
      %1472 = vmatmul.mubr.f32.gmra.mrb[0].mxu0 %v766
      %v1473 = vpop.f32.mrb[0].mxu0
      %v1474 = vadd.f32 0.0, %v1473
      %v1475 = vpop.f32.mrb[0].mxu0
      %1476 = vmatprep.mubr.f32.mxu0 0.0
      %1477 = vmatmul.mubr.f32.gmra.mrb[0].mxu0 %v769
      %v1478 = vpop.f32.mrb[0].mxu0
      %v1479 = vadd.f32 0.0, %v1478
      %v1480 = vpop.f32.mrb[0].mxu0
      %1481 = vmatprep.mubr.f32.mxu0 0.0
      %1482 = vmatmul.mubr.f32.gmra.mrb[0].mxu0 %v772
      %v1483 = vpop.f32.mrb[0].mxu0
      %v1484 = vadd.f32 0.0, %v1483
      %v1485 = vpop.f32.mrb[0].mxu0
      %1486 = vmatprep.mubr.f32.mxu0 0.0
      %1487 = vmatmul.mubr.f32.gmra.mrb[0].mxu0 %v703
      %v1488 = vpop.f32.mrb[0].mxu0
      %v1489 = vpop.f32.mrb[0].mxu0
      %1490 = vmatprep.mubr.f32.mxu0 0.0
      %1491 = vmatmul.mubr.f32.gmra.mrb[0].mxu0 %v706
      %v1492 = vpop.f32.mrb[0].mxu0
      %v1493 = vpop.f32.mrb[0].mxu0
      %1494 = vdwg.mxu0
      %v1495 = vadd.f32 %v1289, %v1389
      %v1496 = vadd.f32 %v1290, %v1394
      %v1497 = vadd.f32 %v1291, %v1399
      %v1498 = vadd.f32 %v1292, %v1404
      %v1499 = vadd.f32 %v1293, %v1409
      %v1500 = vadd.f32 %v1294, %v1414
      %v1501 = vadd.f32 %v1295, %v1419
      %v1502 = vadd.f32 %v1296, %v1424
      %v1503 = vadd.f32 %v1297, %v1429
      %v1504 = vadd.f32 %v1298, %v1434
      %v1505 = vadd.f32 %v1299, %v1439
      %v1506 = vadd.f32 %v1300, %v1444
      %v1507 = vadd.f32 %v1301, %v1449
      %v1508 = vadd.f32 %v1302, %v1454
      %v1509 = vadd.f32 %v1303, %v1459
      %v1510 = vadd.f32 %v1304, %v1464
      %v1511 = vadd.f32 %v1305, %v1469
      %v1512 = vadd.f32 %v1306, %v1474
      %v1513 = vadd.f32 %v1307, %v1479
      %v1514 = vadd.f32 %v1308, %v1484
      %s1515 = scalar_lea.vmem %s1, 16
      %v1516 = vld [vmem:[%s1515] sm:$0xf]
      %v1518 = vsel %vm517, %v1516, 0
      %1520 = vmatprep.subr.mxu0 0.0
      %1521 = vmatpush1.msra.mxu0 %v1518
      %1522 = vmatprep.subr.mxu0 0.0
      %1523 = vmatpush1.msra.mxu0 0.0
      %1524 = vmatprep.subr.mxu0 0.0
      %1525 = vmatpush1.msra.mxu0 0.0
      %1526 = vmatprep.subr.mxu0 0.0
      %1527 = vmatpush1.msra.mxu0 0.0
      %1528 = vmatprep.subr.mxu0 0.0
      %1529 = vmatpush1.msra.mxu0 0.0
      %1530 = vmatprep.subr.mxu0 0.0
      %1531 = vmatpush1.msra.mxu0 0.0
      %1532 = vmatprep.subr.mxu0 0.0
      %1533 = vmatpush1.msra.mxu0 0.0
      %1534 = vmatprep.subr.mxu0 0.0
      %1535 = vmatpush1.msra.mxu0 0.0
      %1536 = vmatprep.subr.mxu0 0.0
      %1537 = vmatpush1.msra.mxu0 0.0
      %1538 = vmatprep.subr.mxu0 0.0
      %1539 = vmatpush1.msra.mxu0 0.0
      %1540 = vmatprep.subr.mxu0 0.0
      %1541 = vmatpush1.msra.mxu0 0.0
      %1542 = vmatprep.subr.mxu0 0.0
      %1543 = vmatpush1.msra.mxu0 0.0
      %1544 = vmatprep.subr.mxu0 0.0
      %1545 = vmatpush1.msra.mxu0 0.0
      %1546 = vmatprep.subr.mxu0 0.0
      %1547 = vmatpush1.msra.mxu0 0.0
      %1548 = vmatprep.subr.mxu0 0.0
      %1549 = vmatpush1.msra.mxu0 0.0
      %1550 = vmatprep.subr.mxu0 0.0
      %1551 = vmatpush1.msra.mxu0 0.0
      %1552 = vmatprep.subr.mxu0 0.0
      %1553 = vmatpush1.msra.mxu0 0.0
      %1554 = vmatprep.subr.mxu0 0.0
      %1555 = vmatpush1.msra.mxu0 0.0
      %1556 = vmatprep.subr.mxu0 0.0
      %1557 = vmatpush1.msra.mxu0 0.0
      %1558 = vmatprep.subr.mxu0 0.0
      %1559 = vmatpush1.msra.mxu0 0.0
      %1560 = vmatprep.subr.mxu0 0.0
      %1561 = vmatpush1.msra.mxu0 0.0
      %1562 = vmatprep.subr.mxu0 0.0
      %1563 = vmatpush1.msra.mxu0 0.0
      %1564 = vmatprep.subr.mxu0 0.0
      %1565 = vmatpush1.msra.mxu0 0.0
      %1566 = vmatprep.subr.mxu0 0.0
      %1567 = vmatpush1.msra.mxu0 0.0
      %1568 = vmatprep.subr.mxu0 0.0
      %1569 = vmatpush1.msra.mxu0 0.0
      %1570 = vmatprep.subr.mxu0 0.0
      %1571 = vmatpush1.msra.mxu0 0.0
      %1572 = vmatprep.subr.mxu0 0.0
      %1573 = vmatpush1.msra.mxu0 0.0
      %1574 = vmatprep.subr.mxu0 0.0
      %1575 = vmatpush1.msra.mxu0 0.0
      %1576 = vmatprep.subr.mxu0 0.0
      %1577 = vmatpush1.msra.mxu0 0.0
      %1578 = vmatprep.subr.mxu0 0.0
      %1579 = vmatpush1.msra.mxu0 0.0
      %1580 = vmatprep.subr.mxu0 0.0
      %1581 = vmatpush1.msra.mxu0 0.0
      %1582 = vmatprep.subr.mxu0 0.0
      %1583 = vmatpush1.msra.mxu0 0.0
      %1584 = vmatprep.mubr.f32.mxu0 0.0
      %1585 = vmatmul.mubr.f32.gmra.mrb[0].mxu0 %v452
      %v1586 = vpop.f32.mrb[0].mxu0
      %v1587 = vpop.f32.mrb[0].mxu0
      %1588 = vmatprep.mubr.f32.mxu0 0.0
      %1589 = vmatmul.mubr.f32.gmra.mrb[0].mxu0 %v455
      %v1590 = vpop.f32.mrb[0].mxu0
      %v1591 = vpop.f32.mrb[0].mxu0
      %1592 = vmatprep.mubr.f32.mxu0 0.0
      %1593 = vmatmul.mubr.f32.gmra.mrb[0].mxu0 %v458
      %v1594 = vpop.f32.mrb[0].mxu0
      %v1595 = vadd.f32 0.0, %v1594
      %v1596 = vpop.f32.mrb[0].mxu0
      %1597 = vmatprep.mubr.f32.mxu0 0.0
      %1598 = vmatmul.mubr.f32.gmra.mrb[0].mxu0 %v461
      %v1599 = vpop.f32.mrb[0].mxu0
      %v1600 = vadd.f32 0.0, %v1599
      %v1601 = vpop.f32.mrb[0].mxu0
      %1602 = vmatprep.mubr.f32.mxu0 0.0
      %1603 = vmatmul.mubr.f32.gmra.mrb[0].mxu0 %v464
      %v1604 = vpop.f32.mrb[0].mxu0
      %v1605 = vadd.f32 0.0, %v1604
      %v1606 = vpop.f32.mrb[0].mxu0
      %1607 = vmatprep.mubr.f32.mxu0 0.0
      %1608 = vmatmul.mubr.f32.gmra.mrb[0].mxu0 %v467
      %v1609 = vpop.f32.mrb[0].mxu0
      %v1610 = vadd.f32 0.0, %v1609
      %v1611 = vpop.f32.mrb[0].mxu0
      %1612 = vmatprep.mubr.f32.mxu0 0.0
      %1613 = vmatmul.mubr.f32.gmra.mrb[0].mxu0 %v470
      %v1614 = vpop.f32.mrb[0].mxu0
      %v1615 = vadd.f32 0.0, %v1614
      %v1616 = vpop.f32.mrb[0].mxu0
      %1617 = vmatprep.mubr.f32.mxu0 0.0
      %1618 = vmatmul.mubr.f32.gmra.mrb[0].mxu0 %v473
      %v1619 = vpop.f32.mrb[0].mxu0
      %v1620 = vadd.f32 0.0, %v1619
      %v1621 = vpop.f32.mrb[0].mxu0
      %1622 = vmatprep.mubr.f32.mxu0 0.0
      %1623 = vmatmul.mubr.f32.gmra.mrb[0].mxu0 %v476
      %v1624 = vpop.f32.mrb[0].mxu0
      %v1625 = vadd.f32 0.0, %v1624
      %v1626 = vpop.f32.mrb[0].mxu0
      %1627 = vmatprep.mubr.f32.mxu0 0.0
      %1628 = vmatmul.mubr.f32.gmra.mrb[0].mxu0 %v479
      %v1629 = vpop.f32.mrb[0].mxu0
      %v1630 = vadd.f32 0.0, %v1629
      %v1631 = vpop.f32.mrb[0].mxu0
      %1632 = vmatprep.mubr.f32.mxu0 0.0
      %1633 = vmatmul.mubr.f32.gmra.mrb[0].mxu0 %v482
      %v1634 = vpop.f32.mrb[0].mxu0
      %v1635 = vadd.f32 0.0, %v1634
      %v1636 = vpop.f32.mrb[0].mxu0
      %1637 = vmatprep.mubr.f32.mxu0 0.0
      %1638 = vmatmul.mubr.f32.gmra.mrb[0].mxu0 %v485
      %v1639 = vpop.f32.mrb[0].mxu0
      %v1640 = vadd.f32 0.0, %v1639
      %v1641 = vpop.f32.mrb[0].mxu0
      %1642 = vmatprep.mubr.f32.mxu0 0.0
      %1643 = vmatmul.mubr.f32.gmra.mrb[0].mxu0 %v488
      %v1644 = vpop.f32.mrb[0].mxu0
      %v1645 = vadd.f32 0.0, %v1644
      %v1646 = vpop.f32.mrb[0].mxu0
      %1647 = vmatprep.mubr.f32.mxu0 0.0
      %1648 = vmatmul.mubr.f32.gmra.mrb[0].mxu0 %v491
      %v1649 = vpop.f32.mrb[0].mxu0
      %v1650 = vadd.f32 0.0, %v1649
      %v1651 = vpop.f32.mrb[0].mxu0
      %1652 = vmatprep.mubr.f32.mxu0 0.0
      %1653 = vmatmul.mubr.f32.gmra.mrb[0].mxu0 %v494
      %v1654 = vpop.f32.mrb[0].mxu0
      %v1655 = vadd.f32 0.0, %v1654
      %v1656 = vpop.f32.mrb[0].mxu0
      %1657 = vmatprep.mubr.f32.mxu0 0.0
      %1658 = vmatmul.mubr.f32.gmra.mrb[0].mxu0 %v497
      %v1659 = vpop.f32.mrb[0].mxu0
      %v1660 = vadd.f32 0.0, %v1659
      %v1661 = vpop.f32.mrb[0].mxu0
      %1662 = vmatprep.mubr.f32.mxu0 0.0
      %1663 = vmatmul.mubr.f32.gmra.mrb[0].mxu0 %v500
      %v1664 = vpop.f32.mrb[0].mxu0
      %v1665 = vadd.f32 0.0, %v1664
      %v1666 = vpop.f32.mrb[0].mxu0
      %1667 = vmatprep.mubr.f32.mxu0 0.0
      %1668 = vmatmul.mubr.f32.gmra.mrb[0].mxu0 %v503
      %v1669 = vpop.f32.mrb[0].mxu0
      %v1670 = vadd.f32 0.0, %v1669
      %v1671 = vpop.f32.mrb[0].mxu0
      %1672 = vmatprep.mubr.f32.mxu0 0.0
      %1673 = vmatmul.mubr.f32.gmra.mrb[0].mxu0 %v506
      %v1674 = vpop.f32.mrb[0].mxu0
      %v1675 = vadd.f32 0.0, %v1674
      %v1676 = vpop.f32.mrb[0].mxu0
      %1677 = vmatprep.mubr.f32.mxu0 0.0
      %1678 = vmatmul.mubr.f32.gmra.mrb[0].mxu0 %v509
      %v1679 = vpop.f32.mrb[0].mxu0
      %v1680 = vadd.f32 0.0, %v1679
      %v1681 = vpop.f32.mrb[0].mxu0
      %1682 = vmatprep.mubr.f32.mxu0 0.0
      %1683 = vmatmul.mubr.f32.gmra.mrb[0].mxu0 %v512
      %v1684 = vpop.f32.mrb[0].mxu0
      %v1685 = vadd.f32 0.0, %v1684
      %v1686 = vpop.f32.mrb[0].mxu0
      %1687 = vmatprep.mubr.f32.mxu0 0.0
      %1688 = vmatmul.mubr.f32.gmra.mrb[0].mxu0 %v515
      %v1689 = vpop.f32.mrb[0].mxu0
      %v1690 = vadd.f32 0.0, %v1689
      %v1691 = vpop.f32.mrb[0].mxu0
      %1692 = vmatprep.mubr.f32.mxu0 0.0
      %1693 = vmatmul.mubr.f32.gmra.mrb[0].mxu0 %v446
      %v1694 = vpop.f32.mrb[0].mxu0
      %v1695 = vpop.f32.mrb[0].mxu0
      %1696 = vmatprep.mubr.f32.mxu0 0.0
      %1697 = vmatmul.mubr.f32.gmra.mrb[0].mxu0 %v449
      %v1698 = vpop.f32.mrb[0].mxu0
      %v1699 = vpop.f32.mrb[0].mxu0
      %1700 = vdwg.mxu0
      %v1701 = vadd.f32 %v1495, %v1595
      %v1702 = vadd.f32 %v1496, %v1600
      %v1703 = vadd.f32 %v1497, %v1605
      %v1704 = vadd.f32 %v1498, %v1610
      %v1705 = vadd.f32 %v1499, %v1615
      %v1706 = vadd.f32 %v1500, %v1620
      %v1707 = vadd.f32 %v1501, %v1625
      %v1708 = vadd.f32 %v1502, %v1630
      %v1709 = vadd.f32 %v1503, %v1635
      %v1710 = vadd.f32 %v1504, %v1640
      %v1711 = vadd.f32 %v1505, %v1645
      %v1712 = vadd.f32 %v1506, %v1650
      %v1713 = vadd.f32 %v1507, %v1655
      %v1714 = vadd.f32 %v1508, %v1660
      %v1715 = vadd.f32 %v1509, %v1665
      %v1716 = vadd.f32 %v1510, %v1670
      %v1717 = vadd.f32 %v1511, %v1675
      %v1718 = vadd.f32 %v1512, %v1680
      %v1719 = vadd.f32 %v1513, %v1685
      %v1720 = vadd.f32 %v1514, %v1690
      %s1721 = scalar_lea.vmem %s1, 20
      %v1722 = vld [vmem:[%s1721] sm:$0xf]
      %v1724 = vsel %vm517, %v1722, 0
      %1726 = vmatprep.subr.mxu0 0.0
      %1727 = vmatpush1.msra.mxu0 %v1724
      %1728 = vmatprep.subr.mxu0 0.0
      %1729 = vmatpush1.msra.mxu0 0.0
      %1730 = vmatprep.subr.mxu0 0.0
      %1731 = vmatpush1.msra.mxu0 0.0
      %1732 = vmatprep.subr.mxu0 0.0
      %1733 = vmatpush1.msra.mxu0 0.0
      %1734 = vmatprep.subr.mxu0 0.0
      %1735 = vmatpush1.msra.mxu0 0.0
      %1736 = vmatprep.subr.mxu0 0.0
      %1737 = vmatpush1.msra.mxu0 0.0
      %1738 = vmatprep.subr.mxu0 0.0
      %1739 = vmatpush1.msra.mxu0 0.0
      %1740 = vmatprep.subr.mxu0 0.0
      %1741 = vmatpush1.msra.mxu0 0.0
      %1742 = vmatprep.subr.mxu0 0.0
      %1743 = vmatpush1.msra.mxu0 0.0
      %1744 = vmatprep.subr.mxu0 0.0
      %1745 = vmatpush1.msra.mxu0 0.0
      %1746 = vmatprep.subr.mxu0 0.0
      %1747 = vmatpush1.msra.mxu0 0.0
      %1748 = vmatprep.subr.mxu0 0.0
      %1749 = vmatpush1.msra.mxu0 0.0
      %1750 = vmatprep.subr.mxu0 0.0
      %1751 = vmatpush1.msra.mxu0 0.0
      %1752 = vmatprep.subr.mxu0 0.0
      %1753 = vmatpush1.msra.mxu0 0.0
      %1754 = vmatprep.subr.mxu0 0.0
      %1755 = vmatpush1.msra.mxu0 0.0
      %1756 = vmatprep.subr.mxu0 0.0
      %1757 = vmatpush1.msra.mxu0 0.0
      %1758 = vmatprep.subr.mxu0 0.0
      %1759 = vmatpush1.msra.mxu0 0.0
      %1760 = vmatprep.subr.mxu0 0.0
      %1761 = vmatpush1.msra.mxu0 0.0
      %1762 = vmatprep.subr.mxu0 0.0
      %1763 = vmatpush1.msra.mxu0 0.0
      %1764 = vmatprep.subr.mxu0 0.0
      %1765 = vmatpush1.msra.mxu0 0.0
      %1766 = vmatprep.subr.mxu0 0.0
      %1767 = vmatpush1.msra.mxu0 0.0
      %1768 = vmatprep.subr.mxu0 0.0
      %1769 = vmatpush1.msra.mxu0 0.0
      %1770 = vmatprep.subr.mxu0 0.0
      %1771 = vmatpush1.msra.mxu0 0.0
      %1772 = vmatprep.subr.mxu0 0.0
      %1773 = vmatpush1.msra.mxu0 0.0
      %1774 = vmatprep.subr.mxu0 0.0
      %1775 = vmatpush1.msra.mxu0 0.0
      %1776 = vmatprep.subr.mxu0 0.0
      %1777 = vmatpush1.msra.mxu0 0.0
      %1778 = vmatprep.subr.mxu0 0.0
      %1779 = vmatpush1.msra.mxu0 0.0
      %1780 = vmatprep.subr.mxu0 0.0
      %1781 = vmatpush1.msra.mxu0 0.0
      %1782 = vmatprep.subr.mxu0 0.0
      %1783 = vmatpush1.msra.mxu0 0.0
      %1784 = vmatprep.subr.mxu0 0.0
      %1785 = vmatpush1.msra.mxu0 0.0
      %1786 = vmatprep.subr.mxu0 0.0
      %1787 = vmatpush1.msra.mxu0 0.0
      %1788 = vmatprep.subr.mxu0 0.0
      %1789 = vmatpush1.msra.mxu0 0.0
      %1790 = vmatprep.mubr.f32.mxu0 0.0
      %1791 = vmatmul.mubr.f32.gmra.mrb[0].mxu0 %v1040
      %v1792 = vpop.f32.mrb[0].mxu0
      %v1793 = vpop.f32.mrb[0].mxu0
      %1794 = vmatprep.mubr.f32.mxu0 0.0
      %1795 = vmatmul.mubr.f32.gmra.mrb[0].mxu0 %v1043
      %v1796 = vpop.f32.mrb[0].mxu0
      %v1797 = vpop.f32.mrb[0].mxu0
      %1798 = vmatprep.mubr.f32.mxu0 0.0
      %1799 = vmatmul.mubr.f32.gmra.mrb[0].mxu0 %v1046
      %v1800 = vpop.f32.mrb[0].mxu0
      %v1801 = vadd.f32 0.0, %v1800
      %v1802 = vpop.f32.mrb[0].mxu0
      %1803 = vmatprep.mubr.f32.mxu0 0.0
      %1804 = vmatmul.mubr.f32.gmra.mrb[0].mxu0 %v1049
      %v1805 = vpop.f32.mrb[0].mxu0
      %v1806 = vadd.f32 0.0, %v1805
      %v1807 = vpop.f32.mrb[0].mxu0
      %1808 = vmatprep.mubr.f32.mxu0 0.0
      %1809 = vmatmul.mubr.f32.gmra.mrb[0].mxu0 %v1052
      %v1810 = vpop.f32.mrb[0].mxu0
      %v1811 = vadd.f32 0.0, %v1810
      %v1812 = vpop.f32.mrb[0].mxu0
      %1813 = vmatprep.mubr.f32.mxu0 0.0
      %1814 = vmatmul.mubr.f32.gmra.mrb[0].mxu0 %v1055
      %v1815 = vpop.f32.mrb[0].mxu0
      %v1816 = vadd.f32 0.0, %v1815
      %v1817 = vpop.f32.mrb[0].mxu0
      %1818 = vmatprep.mubr.f32.mxu0 0.0
      %1819 = vmatmul.mubr.f32.gmra.mrb[0].mxu0 %v1058
      %v1820 = vpop.f32.mrb[0].mxu0
      %v1821 = vadd.f32 0.0, %v1820
      %v1822 = vpop.f32.mrb[0].mxu0
      %1823 = vmatprep.mubr.f32.mxu0 0.0
      %1824 = vmatmul.mubr.f32.gmra.mrb[0].mxu0 %v1061
      %v1825 = vpop.f32.mrb[0].mxu0
      %v1826 = vadd.f32 0.0, %v1825
      %v1827 = vpop.f32.mrb[0].mxu0
      %1828 = vmatprep.mubr.f32.mxu0 0.0
      %1829 = vmatmul.mubr.f32.gmra.mrb[0].mxu0 %v1064
      %v1830 = vpop.f32.mrb[0].mxu0
      %v1831 = vadd.f32 0.0, %v1830
      %v1832 = vpop.f32.mrb[0].mxu0
      %1833 = vmatprep.mubr.f32.mxu0 0.0
      %1834 = vmatmul.mubr.f32.gmra.mrb[0].mxu0 %v1067
      %v1835 = vpop.f32.mrb[0].mxu0
      %v1836 = vadd.f32 0.0, %v1835
      %v1837 = vpop.f32.mrb[0].mxu0
      %1838 = vmatprep.mubr.f32.mxu0 0.0
      %1839 = vmatmul.mubr.f32.gmra.mrb[0].mxu0 %v1070
      %v1840 = vpop.f32.mrb[0].mxu0
      %v1841 = vadd.f32 0.0, %v1840
      %v1842 = vpop.f32.mrb[0].mxu0
      %1843 = vmatprep.mubr.f32.mxu0 0.0
      %1844 = vmatmul.mubr.f32.gmra.mrb[0].mxu0 %v1073
      %v1845 = vpop.f32.mrb[0].mxu0
      %v1846 = vadd.f32 0.0, %v1845
      %v1847 = vpop.f32.mrb[0].mxu0
      %1848 = vmatprep.mubr.f32.mxu0 0.0
      %1849 = vmatmul.mubr.f32.gmra.mrb[0].mxu0 %v1076
      %v1850 = vpop.f32.mrb[0].mxu0
      %v1851 = vadd.f32 0.0, %v1850
      %v1852 = vpop.f32.mrb[0].mxu0
      %1853 = vmatprep.mubr.f32.mxu0 0.0
      %1854 = vmatmul.mubr.f32.gmra.mrb[0].mxu0 %v1079
      %v1855 = vpop.f32.mrb[0].mxu0
      %v1856 = vadd.f32 0.0, %v1855
      %v1857 = vpop.f32.mrb[0].mxu0
      %1858 = vmatprep.mubr.f32.mxu0 0.0
      %1859 = vmatmul.mubr.f32.gmra.mrb[0].mxu0 %v1082
      %v1860 = vpop.f32.mrb[0].mxu0
      %v1861 = vadd.f32 0.0, %v1860
      %v1862 = vpop.f32.mrb[0].mxu0
      %1863 = vmatprep.mubr.f32.mxu0 0.0
      %1864 = vmatmul.mubr.f32.gmra.mrb[0].mxu0 %v1085
      %v1865 = vpop.f32.mrb[0].mxu0
      %v1866 = vadd.f32 0.0, %v1865
      %v1867 = vpop.f32.mrb[0].mxu0
      %1868 = vmatprep.mubr.f32.mxu0 0.0
      %1869 = vmatmul.mubr.f32.gmra.mrb[0].mxu0 %v1088
      %v1870 = vpop.f32.mrb[0].mxu0
      %v1871 = vadd.f32 0.0, %v1870
      %v1872 = vpop.f32.mrb[0].mxu0
      %1873 = vmatprep.mubr.f32.mxu0 0.0
      %1874 = vmatmul.mubr.f32.gmra.mrb[0].mxu0 %v1091
      %v1875 = vpop.f32.mrb[0].mxu0
      %v1876 = vadd.f32 0.0, %v1875
      %v1877 = vpop.f32.mrb[0].mxu0
      %1878 = vmatprep.mubr.f32.mxu0 0.0
      %1879 = vmatmul.mubr.f32.gmra.mrb[0].mxu0 %v1094
      %v1880 = vpop.f32.mrb[0].mxu0
      %v1881 = vadd.f32 0.0, %v1880
      %v1882 = vpop.f32.mrb[0].mxu0
      %1883 = vmatprep.mubr.f32.mxu0 0.0
      %1884 = vmatmul.mubr.f32.gmra.mrb[0].mxu0 %v1097
      %v1885 = vpop.f32.mrb[0].mxu0
      %v1886 = vadd.f32 0.0, %v1885
      %v1887 = vpop.f32.mrb[0].mxu0
      %1888 = vmatprep.mubr.f32.mxu0 0.0
      %1889 = vmatmul.mubr.f32.gmra.mrb[0].mxu0 %v1100
      %v1890 = vpop.f32.mrb[0].mxu0
      %v1891 = vadd.f32 0.0, %v1890
      %v1892 = vpop.f32.mrb[0].mxu0
      %1893 = vmatprep.mubr.f32.mxu0 0.0
      %1894 = vmatmul.mubr.f32.gmra.mrb[0].mxu0 %v1103
      %v1895 = vpop.f32.mrb[0].mxu0
      %v1896 = vadd.f32 0.0, %v1895
      %v1897 = vpop.f32.mrb[0].mxu0
      %1898 = vmatprep.mubr.f32.mxu0 0.0
      %1899 = vmatmul.mubr.f32.gmra.mrb[0].mxu0 %v1034
      %v1900 = vpop.f32.mrb[0].mxu0
      %v1901 = vpop.f32.mrb[0].mxu0
      %1902 = vmatprep.mubr.f32.mxu0 0.0
      %1903 = vmatmul.mubr.f32.gmra.mrb[0].mxu0 %v1037
      %v1904 = vpop.f32.mrb[0].mxu0
      %v1905 = vpop.f32.mrb[0].mxu0
      %1906 = vdwg.mxu0
      %v1907 = vadd.f32 %v1701, %v1801
      %v1908 = vadd.f32 %v1702, %v1806
      %v1909 = vadd.f32 %v1703, %v1811
      %v1910 = vadd.f32 %v1704, %v1816
      %v1911 = vadd.f32 %v1705, %v1821
      %v1912 = vadd.f32 %v1706, %v1826
      %v1913 = vadd.f32 %v1707, %v1831
      %v1914 = vadd.f32 %v1708, %v1836
      %v1915 = vadd.f32 %v1709, %v1841
      %v1916 = vadd.f32 %v1710, %v1846
      %v1917 = vadd.f32 %v1711, %v1851
      %v1918 = vadd.f32 %v1712, %v1856
      %v1919 = vadd.f32 %v1713, %v1861
      %v1920 = vadd.f32 %v1714, %v1866
      %v1921 = vadd.f32 %v1715, %v1871
      %v1922 = vadd.f32 %v1716, %v1876
      %v1923 = vadd.f32 %v1717, %v1881
      %v1924 = vadd.f32 %v1718, %v1886
      %v1925 = vadd.f32 %v1719, %v1891
      %v1926 = vadd.f32 %v1720, %v1896
      %s1927 = scalar_lea.vmem %s1, 24
      %v1928 = vld [vmem:[%s1927] sm:$0xf]
      %v1930 = vsel %vm517, %v1928, 0
      %1932 = vmatprep.subr.mxu0 0.0
      %1933 = vmatpush1.msra.mxu0 %v1930
      %1934 = vmatprep.subr.mxu0 0.0
      %1935 = vmatpush1.msra.mxu0 0.0
      %1936 = vmatprep.subr.mxu0 0.0
      %1937 = vmatpush1.msra.mxu0 0.0
      %1938 = vmatprep.subr.mxu0 0.0
      %1939 = vmatpush1.msra.mxu0 0.0
      %1940 = vmatprep.subr.mxu0 0.0
      %1941 = vmatpush1.msra.mxu0 0.0
      %1942 = vmatprep.subr.mxu0 0.0
      %1943 = vmatpush1.msra.mxu0 0.0
      %1944 = vmatprep.subr.mxu0 0.0
      %1945 = vmatpush1.msra.mxu0 0.0
      %1946 = vmatprep.subr.mxu0 0.0
      %1947 = vmatpush1.msra.mxu0 0.0
      %1948 = vmatprep.subr.mxu0 0.0
      %1949 = vmatpush1.msra.mxu0 0.0
      %1950 = vmatprep.subr.mxu0 0.0
      %1951 = vmatpush1.msra.mxu0 0.0
      %1952 = vmatprep.subr.mxu0 0.0
      %1953 = vmatpush1.msra.mxu0 0.0
      %1954 = vmatprep.subr.mxu0 0.0
      %1955 = vmatpush1.msra.mxu0 0.0
      %1956 = vmatprep.subr.mxu0 0.0
      %1957 = vmatpush1.msra.mxu0 0.0
      %1958 = vmatprep.subr.mxu0 0.0
      %1959 = vmatpush1.msra.mxu0 0.0
      %1960 = vmatprep.subr.mxu0 0.0
      %1961 = vmatpush1.msra.mxu0 0.0
      %1962 = vmatprep.subr.mxu0 0.0
      %1963 = vmatpush1.msra.mxu0 0.0
      %1964 = vmatprep.subr.mxu0 0.0
      %1965 = vmatpush1.msra.mxu0 0.0
      %1966 = vmatprep.subr.mxu0 0.0
      %1967 = vmatpush1.msra.mxu0 0.0
      %1968 = vmatprep.subr.mxu0 0.0
      %1969 = vmatpush1.msra.mxu0 0.0
      %1970 = vmatprep.subr.mxu0 0.0
      %1971 = vmatpush1.msra.mxu0 0.0
      %1972 = vmatprep.subr.mxu0 0.0
      %1973 = vmatpush1.msra.mxu0 0.0
      %1974 = vmatprep.subr.mxu0 0.0
      %1975 = vmatpush1.msra.mxu0 0.0
      %1976 = vmatprep.subr.mxu0 0.0
      %1977 = vmatpush1.msra.mxu0 0.0
      %1978 = vmatprep.subr.mxu0 0.0
      %1979 = vmatpush1.msra.mxu0 0.0
      %1980 = vmatprep.subr.mxu0 0.0
      %1981 = vmatpush1.msra.mxu0 0.0
      %1982 = vmatprep.subr.mxu0 0.0
      %1983 = vmatpush1.msra.mxu0 0.0
      %1984 = vmatprep.subr.mxu0 0.0
      %1985 = vmatpush1.msra.mxu0 0.0
      %1986 = vmatprep.subr.mxu0 0.0
      %1987 = vmatpush1.msra.mxu0 0.0
      %1988 = vmatprep.subr.mxu0 0.0
      %1989 = vmatpush1.msra.mxu0 0.0
      %1990 = vmatprep.subr.mxu0 0.0
      %1991 = vmatpush1.msra.mxu0 0.0
      %1992 = vmatprep.subr.mxu0 0.0
      %1993 = vmatpush1.msra.mxu0 0.0
      %1994 = vmatprep.subr.mxu0 0.0
      %1995 = vmatpush1.msra.mxu0 0.0
      %1996 = vmatprep.mubr.f32.mxu0 0.0
      %1997 = vmatmul.mubr.f32.gmra.mrb[0].mxu0 %v715
      %v1998 = vpop.f32.mrb[0].mxu0
      %v1999 = vpop.f32.mrb[0].mxu0
      %2000 = vmatprep.mubr.f32.mxu0 0.0
      %2001 = vmatmul.mubr.f32.gmra.mrb[0].mxu0 %v718
      %v2002 = vpop.f32.mrb[0].mxu0
      %v2003 = vpop.f32.mrb[0].mxu0
      %2004 = vmatprep.mubr.f32.mxu0 0.0
      %2005 = vmatmul.mubr.f32.gmra.mrb[0].mxu0 %v721
      %v2006 = vpop.f32.mrb[0].mxu0
      %v2007 = vadd.f32 0.0, %v2006
      %v2008 = vpop.f32.mrb[0].mxu0
      %2009 = vmatprep.mubr.f32.mxu0 0.0
      %2010 = vmatmul.mubr.f32.gmra.mrb[0].mxu0 %v724
      %v2011 = vpop.f32.mrb[0].mxu0
      %v2012 = vadd.f32 0.0, %v2011
      %v2013 = vpop.f32.mrb[0].mxu0
      %2014 = vmatprep.mubr.f32.mxu0 0.0
      %2015 = vmatmul.mubr.f32.gmra.mrb[0].mxu0 %v727
      %v2016 = vpop.f32.mrb[0].mxu0
      %v2017 = vadd.f32 0.0, %v2016
      %v2018 = vpop.f32.mrb[0].mxu0
      %2019 = vmatprep.mubr.f32.mxu0 0.0
      %2020 = vmatmul.mubr.f32.gmra.mrb[0].mxu0 %v730
      %v2021 = vpop.f32.mrb[0].mxu0
      %v2022 = vadd.f32 0.0, %v2021
      %v2023 = vpop.f32.mrb[0].mxu0
      %2024 = vmatprep.mubr.f32.mxu0 0.0
      %2025 = vmatmul.mubr.f32.gmra.mrb[0].mxu0 %v733
      %v2026 = vpop.f32.mrb[0].mxu0
      %v2027 = vadd.f32 0.0, %v2026
      %v2028 = vpop.f32.mrb[0].mxu0
      %2029 = vmatprep.mubr.f32.mxu0 0.0
      %2030 = vmatmul.mubr.f32.gmra.mrb[0].mxu0 %v736
      %v2031 = vpop.f32.mrb[0].mxu0
      %v2032 = vadd.f32 0.0, %v2031
      %v2033 = vpop.f32.mrb[0].mxu0
      %2034 = vmatprep.mubr.f32.mxu0 0.0
      %2035 = vmatmul.mubr.f32.gmra.mrb[0].mxu0 %v739
      %v2036 = vpop.f32.mrb[0].mxu0
      %v2037 = vadd.f32 0.0, %v2036
      %v2038 = vpop.f32.mrb[0].mxu0
      %2039 = vmatprep.mubr.f32.mxu0 0.0
      %2040 = vmatmul.mubr.f32.gmra.mrb[0].mxu0 %v742
      %v2041 = vpop.f32.mrb[0].mxu0
      %v2042 = vadd.f32 0.0, %v2041
      %v2043 = vpop.f32.mrb[0].mxu0
      %2044 = vmatprep.mubr.f32.mxu0 0.0
      %2045 = vmatmul.mubr.f32.gmra.mrb[0].mxu0 %v745
      %v2046 = vpop.f32.mrb[0].mxu0
      %v2047 = vadd.f32 0.0, %v2046
      %v2048 = vpop.f32.mrb[0].mxu0
      %2049 = vmatprep.mubr.f32.mxu0 0.0
      %2050 = vmatmul.mubr.f32.gmra.mrb[0].mxu0 %v748
      %v2051 = vpop.f32.mrb[0].mxu0
      %v2052 = vadd.f32 0.0, %v2051
      %v2053 = vpop.f32.mrb[0].mxu0
      %2054 = vmatprep.mubr.f32.mxu0 0.0
      %2055 = vmatmul.mubr.f32.gmra.mrb[0].mxu0 %v751
      %v2056 = vpop.f32.mrb[0].mxu0
      %v2057 = vadd.f32 0.0, %v2056
      %v2058 = vpop.f32.mrb[0].mxu0
      %2059 = vmatprep.mubr.f32.mxu0 0.0
      %2060 = vmatmul.mubr.f32.gmra.mrb[0].mxu0 %v754
      %v2061 = vpop.f32.mrb[0].mxu0
      %v2062 = vadd.f32 0.0, %v2061
      %v2063 = vpop.f32.mrb[0].mxu0
      %2064 = vmatprep.mubr.f32.mxu0 0.0
      %2065 = vmatmul.mubr.f32.gmra.mrb[0].mxu0 %v757
      %v2066 = vpop.f32.mrb[0].mxu0
      %v2067 = vadd.f32 0.0, %v2066
      %v2068 = vpop.f32.mrb[0].mxu0
      %2069 = vmatprep.mubr.f32.mxu0 0.0
      %2070 = vmatmul.mubr.f32.gmra.mrb[0].mxu0 %v760
      %v2071 = vpop.f32.mrb[0].mxu0
      %v2072 = vadd.f32 0.0, %v2071
      %v2073 = vpop.f32.mrb[0].mxu0
      %2074 = vmatprep.mubr.f32.mxu0 0.0
      %2075 = vmatmul.mubr.f32.gmra.mrb[0].mxu0 %v763
      %v2076 = vpop.f32.mrb[0].mxu0
      %v2077 = vadd.f32 0.0, %v2076
      %v2078 = vpop.f32.mrb[0].mxu0
      %2079 = vmatprep.mubr.f32.mxu0 0.0
      %2080 = vmatmul.mubr.f32.gmra.mrb[0].mxu0 %v766
      %v2081 = vpop.f32.mrb[0].mxu0
      %v2082 = vadd.f32 0.0, %v2081
      %v2083 = vpop.f32.mrb[0].mxu0
      %2084 = vmatprep.mubr.f32.mxu0 0.0
      %2085 = vmatmul.mubr.f32.gmra.mrb[0].mxu0 %v769
      %v2086 = vpop.f32.mrb[0].mxu0
      %v2087 = vadd.f32 0.0, %v2086
      %v2088 = vpop.f32.mrb[0].mxu0
      %2089 = vmatprep.mubr.f32.mxu0 0.0
      %2090 = vmatmul.mubr.f32.gmra.mrb[0].mxu0 %v772
      %v2091 = vpop.f32.mrb[0].mxu0
      %v2092 = vadd.f32 0.0, %v2091
      %v2093 = vpop.f32.mrb[0].mxu0
      %2094 = vmatprep.mubr.f32.mxu0 0.0
      %2095 = vmatmul.mubr.f32.gmra.mrb[0].mxu0 %v703
      %v2096 = vpop.f32.mrb[0].mxu0
      %v2097 = vadd.f32 0.0, %v2096
      %v2098 = vpop.f32.mrb[0].mxu0
      %2099 = vmatprep.mubr.f32.mxu0 0.0
      %2100 = vmatmul.mubr.f32.gmra.mrb[0].mxu0 %v706
      %v2101 = vpop.f32.mrb[0].mxu0
      %v2102 = vadd.f32 0.0, %v2101
      %v2103 = vpop.f32.mrb[0].mxu0
      %2104 = vmatprep.mubr.f32.mxu0 0.0
      %2105 = vmatmul.mubr.f32.gmra.mrb[0].mxu0 %v709
      %v2106 = vpop.f32.mrb[0].mxu0
      %v2107 = vpop.f32.mrb[0].mxu0
      %2108 = vmatprep.mubr.f32.mxu0 0.0
      %2109 = vmatmul.mubr.f32.gmra.mrb[0].mxu0 %v712
      %v2110 = vpop.f32.mrb[0].mxu0
      %v2111 = vpop.f32.mrb[0].mxu0
      %2112 = vdwg.mxu0
      %v2113 = vadd.f32 %v1907, %v2007
      %v2114 = vadd.f32 %v1908, %v2012
      %v2115 = vadd.f32 %v1909, %v2017
      %v2116 = vadd.f32 %v1910, %v2022
      %v2117 = vadd.f32 %v1911, %v2027
      %v2118 = vadd.f32 %v1912, %v2032
      %v2119 = vadd.f32 %v1913, %v2037
      %v2120 = vadd.f32 %v1914, %v2042
      %v2121 = vadd.f32 %v1915, %v2047
      %v2122 = vadd.f32 %v1916, %v2052
      %v2123 = vadd.f32 %v1917, %v2057
      %v2124 = vadd.f32 %v1918, %v2062
      %v2125 = vadd.f32 %v1919, %v2067
      %v2126 = vadd.f32 %v1920, %v2072
      %v2127 = vadd.f32 %v1921, %v2077
      %v2128 = vadd.f32 %v1922, %v2082
      %v2129 = vadd.f32 %v1923, %v2087
      %v2130 = vadd.f32 %v1924, %v2092
      %v2131 = vadd.f32 %v1925, %v2097
      %v2132 = vadd.f32 %v1926, %v2102
      %s2133 = scalar_lea.vmem %s1, 28
      %v2134 = vld [vmem:[%s2133] sm:$0xf]
      %v2136 = vsel %vm517, %v2134, 0
      %2138 = vmatprep.subr.mxu0 0.0
      %2139 = vmatpush1.msra.mxu0 %v2136
      %2140 = vmatprep.subr.mxu0 0.0
      %2141 = vmatpush1.msra.mxu0 0.0
      %2142 = vmatprep.subr.mxu0 0.0
      %2143 = vmatpush1.msra.mxu0 0.0
      %2144 = vmatprep.subr.mxu0 0.0
      %2145 = vmatpush1.msra.mxu0 0.0
      %2146 = vmatprep.subr.mxu0 0.0
      %2147 = vmatpush1.msra.mxu0 0.0
      %2148 = vmatprep.subr.mxu0 0.0
      %2149 = vmatpush1.msra.mxu0 0.0
      %2150 = vmatprep.subr.mxu0 0.0
      %2151 = vmatpush1.msra.mxu0 0.0
      %2152 = vmatprep.subr.mxu0 0.0
      %2153 = vmatpush1.msra.mxu0 0.0
      %2154 = vmatprep.subr.mxu0 0.0
      %2155 = vmatpush1.msra.mxu0 0.0
      %2156 = vmatprep.subr.mxu0 0.0
      %2157 = vmatpush1.msra.mxu0 0.0
      %2158 = vmatprep.subr.mxu0 0.0
      %2159 = vmatpush1.msra.mxu0 0.0
      %2160 = vmatprep.subr.mxu0 0.0
      %2161 = vmatpush1.msra.mxu0 0.0
      %2162 = vmatprep.subr.mxu0 0.0
      %2163 = vmatpush1.msra.mxu0 0.0
      %2164 = vmatprep.subr.mxu0 0.0
      %2165 = vmatpush1.msra.mxu0 0.0
      %2166 = vmatprep.subr.mxu0 0.0
      %2167 = vmatpush1.msra.mxu0 0.0
      %2168 = vmatprep.subr.mxu0 0.0
      %2169 = vmatpush1.msra.mxu0 0.0
      %2170 = vmatprep.subr.mxu0 0.0
      %2171 = vmatpush1.msra.mxu0 0.0
      %2172 = vmatprep.subr.mxu0 0.0
      %2173 = vmatpush1.msra.mxu0 0.0
      %2174 = vmatprep.subr.mxu0 0.0
      %2175 = vmatpush1.msra.mxu0 0.0
      %2176 = vmatprep.subr.mxu0 0.0
      %2177 = vmatpush1.msra.mxu0 0.0
      %2178 = vmatprep.subr.mxu0 0.0
      %2179 = vmatpush1.msra.mxu0 0.0
      %2180 = vmatprep.subr.mxu0 0.0
      %2181 = vmatpush1.msra.mxu0 0.0
      %2182 = vmatprep.subr.mxu0 0.0
      %2183 = vmatpush1.msra.mxu0 0.0
      %2184 = vmatprep.subr.mxu0 0.0
      %2185 = vmatpush1.msra.mxu0 0.0
      %2186 = vmatprep.subr.mxu0 0.0
      %2187 = vmatpush1.msra.mxu0 0.0
      %2188 = vmatprep.subr.mxu0 0.0
      %2189 = vmatpush1.msra.mxu0 0.0
      %2190 = vmatprep.subr.mxu0 0.0
      %2191 = vmatpush1.msra.mxu0 0.0
      %2192 = vmatprep.subr.mxu0 0.0
      %2193 = vmatpush1.msra.mxu0 0.0
      %2194 = vmatprep.subr.mxu0 0.0
      %2195 = vmatpush1.msra.mxu0 0.0
      %2196 = vmatprep.subr.mxu0 0.0
      %2197 = vmatpush1.msra.mxu0 0.0
      %2198 = vmatprep.subr.mxu0 0.0
      %2199 = vmatpush1.msra.mxu0 0.0
      %2200 = vmatprep.subr.mxu0 0.0
      %2201 = vmatpush1.msra.mxu0 0.0
      %2202 = vmatprep.mubr.f32.mxu0 0.0
      %2203 = vmatmul.mubr.f32.gmra.mrb[0].mxu0 %v458
      %v2204 = vpop.f32.mrb[0].mxu0
      %v2205 = vpop.f32.mrb[0].mxu0
      %2206 = vmatprep.mubr.f32.mxu0 0.0
      %2207 = vmatmul.mubr.f32.gmra.mrb[0].mxu0 %v461
      %v2208 = vpop.f32.mrb[0].mxu0
      %v2209 = vpop.f32.mrb[0].mxu0
      %2210 = vmatprep.mubr.f32.mxu0 0.0
      %2211 = vmatmul.mubr.f32.gmra.mrb[0].mxu0 %v464
      %v2212 = vpop.f32.mrb[0].mxu0
      %v2213 = vadd.f32 0.0, %v2212
      %v2214 = vpop.f32.mrb[0].mxu0
      %2215 = vmatprep.mubr.f32.mxu0 0.0
      %2216 = vmatmul.mubr.f32.gmra.mrb[0].mxu0 %v467
      %v2217 = vpop.f32.mrb[0].mxu0
      %v2218 = vadd.f32 0.0, %v2217
      %v2219 = vpop.f32.mrb[0].mxu0
      %2220 = vmatprep.mubr.f32.mxu0 0.0
      %2221 = vmatmul.mubr.f32.gmra.mrb[0].mxu0 %v470
      %v2222 = vpop.f32.mrb[0].mxu0
      %v2223 = vadd.f32 0.0, %v2222
      %v2224 = vpop.f32.mrb[0].mxu0
      %2225 = vmatprep.mubr.f32.mxu0 0.0
      %2226 = vmatmul.mubr.f32.gmra.mrb[0].mxu0 %v473
      %v2227 = vpop.f32.mrb[0].mxu0
      %v2228 = vadd.f32 0.0, %v2227
      %v2229 = vpop.f32.mrb[0].mxu0
      %2230 = vmatprep.mubr.f32.mxu0 0.0
      %2231 = vmatmul.mubr.f32.gmra.mrb[0].mxu0 %v476
      %v2232 = vpop.f32.mrb[0].mxu0
      %v2233 = vadd.f32 0.0, %v2232
      %v2234 = vpop.f32.mrb[0].mxu0
      %2235 = vmatprep.mubr.f32.mxu0 0.0
      %2236 = vmatmul.mubr.f32.gmra.mrb[0].mxu0 %v479
      %v2237 = vpop.f32.mrb[0].mxu0
      %v2238 = vadd.f32 0.0, %v2237
      %v2239 = vpop.f32.mrb[0].mxu0
      %2240 = vmatprep.mubr.f32.mxu0 0.0
      %2241 = vmatmul.mubr.f32.gmra.mrb[0].mxu0 %v482
      %v2242 = vpop.f32.mrb[0].mxu0
      %v2243 = vadd.f32 0.0, %v2242
      %v2244 = vpop.f32.mrb[0].mxu0
      %2245 = vmatprep.mubr.f32.mxu0 0.0
      %2246 = vmatmul.mubr.f32.gmra.mrb[0].mxu0 %v485
      %v2247 = vpop.f32.mrb[0].mxu0
      %v2248 = vadd.f32 0.0, %v2247
      %v2249 = vpop.f32.mrb[0].mxu0
      %2250 = vmatprep.mubr.f32.mxu0 0.0
      %2251 = vmatmul.mubr.f32.gmra.mrb[0].mxu0 %v488
      %v2252 = vpop.f32.mrb[0].mxu0
      %v2253 = vadd.f32 0.0, %v2252
      %v2254 = vpop.f32.mrb[0].mxu0
      %2255 = vmatprep.mubr.f32.mxu0 0.0
      %2256 = vmatmul.mubr.f32.gmra.mrb[0].mxu0 %v491
      %v2257 = vpop.f32.mrb[0].mxu0
      %v2258 = vadd.f32 0.0, %v2257
      %v2259 = vpop.f32.mrb[0].mxu0
      %2260 = vmatprep.mubr.f32.mxu0 0.0
      %2261 = vmatmul.mubr.f32.gmra.mrb[0].mxu0 %v494
      %v2262 = vpop.f32.mrb[0].mxu0
      %v2263 = vadd.f32 0.0, %v2262
      %v2264 = vpop.f32.mrb[0].mxu0
      %2265 = vmatprep.mubr.f32.mxu0 0.0
      %2266 = vmatmul.mubr.f32.gmra.mrb[0].mxu0 %v497
      %v2267 = vpop.f32.mrb[0].mxu0
      %v2268 = vadd.f32 0.0, %v2267
      %v2269 = vpop.f32.mrb[0].mxu0
      %2270 = vmatprep.mubr.f32.mxu0 0.0
      %2271 = vmatmul.mubr.f32.gmra.mrb[0].mxu0 %v500
      %v2272 = vpop.f32.mrb[0].mxu0
      %v2273 = vadd.f32 0.0, %v2272
      %v2274 = vpop.f32.mrb[0].mxu0
      %2275 = vmatprep.mubr.f32.mxu0 0.0
      %2276 = vmatmul.mubr.f32.gmra.mrb[0].mxu0 %v503
      %v2277 = vpop.f32.mrb[0].mxu0
      %v2278 = vadd.f32 0.0, %v2277
      %v2279 = vpop.f32.mrb[0].mxu0
      %2280 = vmatprep.mubr.f32.mxu0 0.0
      %2281 = vmatmul.mubr.f32.gmra.mrb[0].mxu0 %v506
      %v2282 = vpop.f32.mrb[0].mxu0
      %v2283 = vadd.f32 0.0, %v2282
      %v2284 = vpop.f32.mrb[0].mxu0
      %2285 = vmatprep.mubr.f32.mxu0 0.0
      %2286 = vmatmul.mubr.f32.gmra.mrb[0].mxu0 %v509
      %v2287 = vpop.f32.mrb[0].mxu0
      %v2288 = vadd.f32 0.0, %v2287
      %v2289 = vpop.f32.mrb[0].mxu0
      %2290 = vmatprep.mubr.f32.mxu0 0.0
      %2291 = vmatmul.mubr.f32.gmra.mrb[0].mxu0 %v512
      %v2292 = vpop.f32.mrb[0].mxu0
      %v2293 = vadd.f32 0.0, %v2292
      %v2294 = vpop.f32.mrb[0].mxu0
      %2295 = vmatprep.mubr.f32.mxu0 0.0
      %2296 = vmatmul.mubr.f32.gmra.mrb[0].mxu0 %v515
      %v2297 = vpop.f32.mrb[0].mxu0
      %v2298 = vadd.f32 0.0, %v2297
      %v2299 = vpop.f32.mrb[0].mxu0
      %2300 = vmatprep.mubr.f32.mxu0 0.0
      %2301 = vmatmul.mubr.f32.gmra.mrb[0].mxu0 %v446
      %v2302 = vpop.f32.mrb[0].mxu0
      %v2303 = vadd.f32 0.0, %v2302
      %v2304 = vpop.f32.mrb[0].mxu0
      %2305 = vmatprep.mubr.f32.mxu0 0.0
      %2306 = vmatmul.mubr.f32.gmra.mrb[0].mxu0 %v449
      %v2307 = vpop.f32.mrb[0].mxu0
      %v2308 = vadd.f32 0.0, %v2307
      %v2309 = vpop.f32.mrb[0].mxu0
      %2310 = vmatprep.mubr.f32.mxu0 0.0
      %2311 = vmatmul.mubr.f32.gmra.mrb[0].mxu0 %v452
      %v2312 = vpop.f32.mrb[0].mxu0
      %v2313 = vpop.f32.mrb[0].mxu0
      %2314 = vmatprep.mubr.f32.mxu0 0.0
      %2315 = vmatmul.mubr.f32.gmra.mrb[0].mxu0 %v455
      %v2316 = vpop.f32.mrb[0].mxu0
      %v2317 = vpop.f32.mrb[0].mxu0
      %2318 = vdwg.mxu0
      %v2319 = vadd.f32 %v2113, %v2213
      %v2320 = vadd.f32 %v2114, %v2218
      %v2321 = vadd.f32 %v2115, %v2223
      %v2322 = vadd.f32 %v2116, %v2228
      %v2323 = vadd.f32 %v2117, %v2233
      %v2324 = vadd.f32 %v2118, %v2238
      %v2325 = vadd.f32 %v2119, %v2243
      %v2326 = vadd.f32 %v2120, %v2248
      %v2327 = vadd.f32 %v2121, %v2253
      %v2328 = vadd.f32 %v2122, %v2258
      %v2329 = vadd.f32 %v2123, %v2263
      %v2330 = vadd.f32 %v2124, %v2268
      %v2331 = vadd.f32 %v2125, %v2273
      %v2332 = vadd.f32 %v2126, %v2278
      %v2333 = vadd.f32 %v2127, %v2283
      %v2334 = vadd.f32 %v2128, %v2288
      %v2335 = vadd.f32 %v2129, %v2293
      %v2336 = vadd.f32 %v2130, %v2298
      %v2337 = vadd.f32 %v2131, %v2303
      %v2338 = vadd.f32 %v2132, %v2308
      %s2339 = scalar_lea.vmem %s1, 32
      %v2340 = vld [vmem:[%s2339] sm:$0xf]
      %v2342 = vsel %vm517, %v2340, 0
      %2344 = vmatprep.subr.mxu0 0.0
      %2345 = vmatpush1.msra.mxu0 %v2342
      %2346 = vmatprep.subr.mxu0 0.0
      %2347 = vmatpush1.msra.mxu0 0.0
      %2348 = vmatprep.subr.mxu0 0.0
      %2349 = vmatpush1.msra.mxu0 0.0
      %2350 = vmatprep.subr.mxu0 0.0
      %2351 = vmatpush1.msra.mxu0 0.0
      %2352 = vmatprep.subr.mxu0 0.0
      %2353 = vmatpush1.msra.mxu0 0.0
      %2354 = vmatprep.subr.mxu0 0.0
      %2355 = vmatpush1.msra.mxu0 0.0
      %2356 = vmatprep.subr.mxu0 0.0
      %2357 = vmatpush1.msra.mxu0 0.0
      %2358 = vmatprep.subr.mxu0 0.0
      %2359 = vmatpush1.msra.mxu0 0.0
      %2360 = vmatprep.subr.mxu0 0.0
      %2361 = vmatpush1.msra.mxu0 0.0
      %2362 = vmatprep.subr.mxu0 0.0
      %2363 = vmatpush1.msra.mxu0 0.0
      %2364 = vmatprep.subr.mxu0 0.0
      %2365 = vmatpush1.msra.mxu0 0.0
      %2366 = vmatprep.subr.mxu0 0.0
      %2367 = vmatpush1.msra.mxu0 0.0
      %2368 = vmatprep.subr.mxu0 0.0
      %2369 = vmatpush1.msra.mxu0 0.0
      %2370 = vmatprep.subr.mxu0 0.0
      %2371 = vmatpush1.msra.mxu0 0.0
      %2372 = vmatprep.subr.mxu0 0.0
      %2373 = vmatpush1.msra.mxu0 0.0
      %2374 = vmatprep.subr.mxu0 0.0
      %2375 = vmatpush1.msra.mxu0 0.0
      %2376 = vmatprep.subr.mxu0 0.0
      %2377 = vmatpush1.msra.mxu0 0.0
      %2378 = vmatprep.subr.mxu0 0.0
      %2379 = vmatpush1.msra.mxu0 0.0
      %2380 = vmatprep.subr.mxu0 0.0
      %2381 = vmatpush1.msra.mxu0 0.0
      %2382 = vmatprep.subr.mxu0 0.0
      %2383 = vmatpush1.msra.mxu0 0.0
      %2384 = vmatprep.subr.mxu0 0.0
      %2385 = vmatpush1.msra.mxu0 0.0
      %2386 = vmatprep.subr.mxu0 0.0
      %2387 = vmatpush1.msra.mxu0 0.0
      %2388 = vmatprep.subr.mxu0 0.0
      %2389 = vmatpush1.msra.mxu0 0.0
      %2390 = vmatprep.subr.mxu0 0.0
      %2391 = vmatpush1.msra.mxu0 0.0
      %2392 = vmatprep.subr.mxu0 0.0
      %2393 = vmatpush1.msra.mxu0 0.0
      %2394 = vmatprep.subr.mxu0 0.0
      %2395 = vmatpush1.msra.mxu0 0.0
      %2396 = vmatprep.subr.mxu0 0.0
      %2397 = vmatpush1.msra.mxu0 0.0
      %2398 = vmatprep.subr.mxu0 0.0
      %2399 = vmatpush1.msra.mxu0 0.0
      %2400 = vmatprep.subr.mxu0 0.0
      %2401 = vmatpush1.msra.mxu0 0.0
      %2402 = vmatprep.subr.mxu0 0.0
      %2403 = vmatpush1.msra.mxu0 0.0
      %2404 = vmatprep.subr.mxu0 0.0
      %2405 = vmatpush1.msra.mxu0 0.0
      %2406 = vmatprep.subr.mxu0 0.0
      %2407 = vmatpush1.msra.mxu0 0.0
      %2408 = vmatprep.mubr.f32.mxu0 0.0
      %2409 = vmatmul.mubr.f32.gmra.mrb[0].mxu0 %v1046
      %v2410 = vpop.f32.mrb[0].mxu0
      %v2411 = vpop.f32.mrb[0].mxu0
      %2412 = vmatprep.mubr.f32.mxu0 0.0
      %2413 = vmatmul.mubr.f32.gmra.mrb[0].mxu0 %v1049
      %v2414 = vpop.f32.mrb[0].mxu0
      %v2415 = vpop.f32.mrb[0].mxu0
      %2416 = vmatprep.mubr.f32.mxu0 0.0
      %2417 = vmatmul.mubr.f32.gmra.mrb[0].mxu0 %v1052
      %v2418 = vpop.f32.mrb[0].mxu0
      %v2419 = vadd.f32 0.0, %v2418
      %v2420 = vpop.f32.mrb[0].mxu0
      %2421 = vmatprep.mubr.f32.mxu0 0.0
      %2422 = vmatmul.mubr.f32.gmra.mrb[0].mxu0 %v1055
      %v2423 = vpop.f32.mrb[0].mxu0
      %v2424 = vadd.f32 0.0, %v2423
      %v2425 = vpop.f32.mrb[0].mxu0
      %2426 = vmatprep.mubr.f32.mxu0 0.0
      %2427 = vmatmul.mubr.f32.gmra.mrb[0].mxu0 %v1058
      %v2428 = vpop.f32.mrb[0].mxu0
      %v2429 = vadd.f32 0.0, %v2428
      %v2430 = vpop.f32.mrb[0].mxu0
      %2431 = vmatprep.mubr.f32.mxu0 0.0
      %2432 = vmatmul.mubr.f32.gmra.mrb[0].mxu0 %v1061
      %v2433 = vpop.f32.mrb[0].mxu0
      %v2434 = vadd.f32 0.0, %v2433
      %v2435 = vpop.f32.mrb[0].mxu0
      %2436 = vmatprep.mubr.f32.mxu0 0.0
      %2437 = vmatmul.mubr.f32.gmra.mrb[0].mxu0 %v1064
      %v2438 = vpop.f32.mrb[0].mxu0
      %v2439 = vadd.f32 0.0, %v2438
      %v2440 = vpop.f32.mrb[0].mxu0
      %2441 = vmatprep.mubr.f32.mxu0 0.0
      %2442 = vmatmul.mubr.f32.gmra.mrb[0].mxu0 %v1067
      %v2443 = vpop.f32.mrb[0].mxu0
      %v2444 = vadd.f32 0.0, %v2443
      %v2445 = vpop.f32.mrb[0].mxu0
      %2446 = vmatprep.mubr.f32.mxu0 0.0
      %2447 = vmatmul.mubr.f32.gmra.mrb[0].mxu0 %v1070
      %v2448 = vpop.f32.mrb[0].mxu0
      %v2449 = vadd.f32 0.0, %v2448
      %v2450 = vpop.f32.mrb[0].mxu0
      %2451 = vmatprep.mubr.f32.mxu0 0.0
      %2452 = vmatmul.mubr.f32.gmra.mrb[0].mxu0 %v1073
      %v2453 = vpop.f32.mrb[0].mxu0
      %v2454 = vadd.f32 0.0, %v2453
      %v2455 = vpop.f32.mrb[0].mxu0
      %2456 = vmatprep.mubr.f32.mxu0 0.0
      %2457 = vmatmul.mubr.f32.gmra.mrb[0].mxu0 %v1076
      %v2458 = vpop.f32.mrb[0].mxu0
      %v2459 = vadd.f32 0.0, %v2458
      %v2460 = vpop.f32.mrb[0].mxu0
      %2461 = vmatprep.mubr.f32.mxu0 0.0
      %2462 = vmatmul.mubr.f32.gmra.mrb[0].mxu0 %v1079
      %v2463 = vpop.f32.mrb[0].mxu0
      %v2464 = vadd.f32 0.0, %v2463
      %v2465 = vpop.f32.mrb[0].mxu0
      %2466 = vmatprep.mubr.f32.mxu0 0.0
      %2467 = vmatmul.mubr.f32.gmra.mrb[0].mxu0 %v1082
      %v2468 = vpop.f32.mrb[0].mxu0
      %v2469 = vadd.f32 0.0, %v2468
      %v2470 = vpop.f32.mrb[0].mxu0
      %2471 = vmatprep.mubr.f32.mxu0 0.0
      %2472 = vmatmul.mubr.f32.gmra.mrb[0].mxu0 %v1085
      %v2473 = vpop.f32.mrb[0].mxu0
      %v2474 = vadd.f32 0.0, %v2473
      %v2475 = vpop.f32.mrb[0].mxu0
      %2476 = vmatprep.mubr.f32.mxu0 0.0
      %2477 = vmatmul.mubr.f32.gmra.mrb[0].mxu0 %v1088
      %v2478 = vpop.f32.mrb[0].mxu0
      %v2479 = vadd.f32 0.0, %v2478
      %v2480 = vpop.f32.mrb[0].mxu0
      %2481 = vmatprep.mubr.f32.mxu0 0.0
      %2482 = vmatmul.mubr.f32.gmra.mrb[0].mxu0 %v1091
      %v2483 = vpop.f32.mrb[0].mxu0
      %v2484 = vadd.f32 0.0, %v2483
      %v2485 = vpop.f32.mrb[0].mxu0
      %2486 = vmatprep.mubr.f32.mxu0 0.0
      %2487 = vmatmul.mubr.f32.gmra.mrb[0].mxu0 %v1094
      %v2488 = vpop.f32.mrb[0].mxu0
      %v2489 = vadd.f32 0.0, %v2488
      %v2490 = vpop.f32.mrb[0].mxu0
      %2491 = vmatprep.mubr.f32.mxu0 0.0
      %2492 = vmatmul.mubr.f32.gmra.mrb[0].mxu0 %v1097
      %v2493 = vpop.f32.mrb[0].mxu0
      %v2494 = vadd.f32 0.0, %v2493
      %v2495 = vpop.f32.mrb[0].mxu0
      %2496 = vmatprep.mubr.f32.mxu0 0.0
      %2497 = vmatmul.mubr.f32.gmra.mrb[0].mxu0 %v1100
      %v2498 = vpop.f32.mrb[0].mxu0
      %v2499 = vadd.f32 0.0, %v2498
      %v2500 = vpop.f32.mrb[0].mxu0
      %2501 = vmatprep.mubr.f32.mxu0 0.0
      %2502 = vmatmul.mubr.f32.gmra.mrb[0].mxu0 %v1103
      %v2503 = vpop.f32.mrb[0].mxu0
      %v2504 = vadd.f32 0.0, %v2503
      %v2505 = vpop.f32.mrb[0].mxu0
      %2506 = vmatprep.mubr.f32.mxu0 0.0
      %2507 = vmatmul.mubr.f32.gmra.mrb[0].mxu0 %v1034
      %v2508 = vpop.f32.mrb[0].mxu0
      %v2509 = vadd.f32 0.0, %v2508
      %v2510 = vpop.f32.mrb[0].mxu0
      %2511 = vmatprep.mubr.f32.mxu0 0.0
      %2512 = vmatmul.mubr.f32.gmra.mrb[0].mxu0 %v1037
      %v2513 = vpop.f32.mrb[0].mxu0
      %v2514 = vadd.f32 0.0, %v2513
      %v2515 = vpop.f32.mrb[0].mxu0
      %2516 = vmatprep.mubr.f32.mxu0 0.0
      %2517 = vmatmul.mubr.f32.gmra.mrb[0].mxu0 %v1040
      %v2518 = vpop.f32.mrb[0].mxu0
      %v2519 = vpop.f32.mrb[0].mxu0
      %2520 = vmatprep.mubr.f32.mxu0 0.0
      %2521 = vmatmul.mubr.f32.gmra.mrb[0].mxu0 %v1043
      %v2522 = vpop.f32.mrb[0].mxu0
      %v2523 = vpop.f32.mrb[0].mxu0
      %2524 = vdwg.mxu0
      %v2525 = vadd.f32 %v2319, %v2419
      %v2526 = vadd.f32 %v2320, %v2424
      %v2527 = vadd.f32 %v2321, %v2429
      %v2528 = vadd.f32 %v2322, %v2434
      %v2529 = vadd.f32 %v2323, %v2439
      %v2530 = vadd.f32 %v2324, %v2444
      %v2531 = vadd.f32 %v2325, %v2449
      %v2532 = vadd.f32 %v2326, %v2454
      %v2533 = vadd.f32 %v2327, %v2459
      %v2534 = vadd.f32 %v2328, %v2464
      %v2535 = vadd.f32 %v2329, %v2469
      %v2536 = vadd.f32 %v2330, %v2474
      %v2537 = vadd.f32 %v2331, %v2479
      %v2538 = vadd.f32 %v2332, %v2484
      %v2539 = vadd.f32 %v2333, %v2489
      %v2540 = vadd.f32 %v2334, %v2494
      %v2541 = vadd.f32 %v2335, %v2499
      %v2542 = vadd.f32 %v2336, %v2504
      %v2543 = vadd.f32 %v2337, %v2509
      %v2544 = vadd.f32 %v2338, %v2514
      %v2545 = vld [vmem:[%s2] sm:$0x1]
      %v2547 = vlaneseq
      %v2548 = vshrl.u32 %v2547, 7
      %v2549 = vsub.s32 0, %v2548
      %v2550 = vrot.slane %v2545, %v2549
      %v2552 = vmul.f32 %v2525, %v2550
      %v2553 = vmul.f32 %v2526, %v2550
      %v2554 = vmul.f32 %v2527, %v2550
      %v2555 = vmul.f32 %v2528, %v2550
      %v2556 = vmul.f32 %v2529, %v2550
      %v2557 = vmul.f32 %v2530, %v2550
      %v2558 = vmul.f32 %v2531, %v2550
      %v2559 = vmul.f32 %v2532, %v2550
      %v2560 = vmul.f32 %v2533, %v2550
      %v2561 = vmul.f32 %v2534, %v2550
      %v2562 = vmul.f32 %v2535, %v2550
      %v2563 = vmul.f32 %v2536, %v2550
      %v2564 = vmul.f32 %v2537, %v2550
      %v2565 = vmul.f32 %v2538, %v2550
      %v2566 = vmul.f32 %v2539, %v2550
      %v2567 = vmul.f32 %v2540, %v2550
      %v2568 = vmul.f32 %v2541, %v2550
      %v2569 = vmul.f32 %v2542, %v2550
      %v2570 = vmul.f32 %v2543, %v2550
      %v2571 = vmul.f32 %v2544, %v2550
      %v2572 = vld [vmem:[%s3] sm:$0x1]
      %v2574 = vlaneseq
      %v2575 = vshrl.u32 %v2574, 7
      %v2576 = vsub.s32 0, %v2575
      %v2577 = vrot.slane %v2572, %v2576
      %v2579 = vadd.f32 %v2552, %v2577
      %v2580 = vadd.f32 %v2553, %v2577
      %v2581 = vadd.f32 %v2554, %v2577
      %v2582 = vadd.f32 %v2555, %v2577
      %v2583 = vadd.f32 %v2556, %v2577
      %v2584 = vadd.f32 %v2557, %v2577
      %v2585 = vadd.f32 %v2558, %v2577
      %v2586 = vadd.f32 %v2559, %v2577
      %v2587 = vadd.f32 %v2560, %v2577
      %v2588 = vadd.f32 %v2561, %v2577
      %v2589 = vadd.f32 %v2562, %v2577
      %v2590 = vadd.f32 %v2563, %v2577
      %v2591 = vadd.f32 %v2564, %v2577
      %v2592 = vadd.f32 %v2565, %v2577
      %v2593 = vadd.f32 %v2566, %v2577
      %v2594 = vadd.f32 %v2567, %v2577
      %v2595 = vadd.f32 %v2568, %v2577
      %v2596 = vadd.f32 %v2569, %v2577
      %v2597 = vadd.f32 %v2570, %v2577
      %v2598 = vadd.f32 %v2571, %v2577
      %v2599 = vmax.f32 %v2579, 0.0
      %v2600 = vmax.f32 %v2580, 0.0
      %v2601 = vmax.f32 %v2581, 0.0
      %v2602 = vmax.f32 %v2582, 0.0
      %v2603 = vmax.f32 %v2583, 0.0
      %v2604 = vmax.f32 %v2584, 0.0
      %v2605 = vmax.f32 %v2585, 0.0
      %v2606 = vmax.f32 %v2586, 0.0
      %v2607 = vmax.f32 %v2587, 0.0
      %v2608 = vmax.f32 %v2588, 0.0
      %v2609 = vmax.f32 %v2589, 0.0
      %v2610 = vmax.f32 %v2590, 0.0
      %v2611 = vmax.f32 %v2591, 0.0
      %v2612 = vmax.f32 %v2592, 0.0
      %v2613 = vmax.f32 %v2593, 0.0
      %v2614 = vmax.f32 %v2594, 0.0
      %v2615 = vmax.f32 %v2595, 0.0
      %v2616 = vmax.f32 %v2596, 0.0
      %v2617 = vmax.f32 %v2597, 0.0
      %v2618 = vmax.f32 %v2598, 0.0
      %s2619 = ssub.s32 %s302, 1
      %v2620 = vstv %s2619
      %v2621 = vadd.s32 %v2620, 1
      %v2622 = vadd.s32 %v2620, 2
      %v2623 = vadd.s32 %v2620, 3
      %v2624 = vadd.s32 %v2620, 4
      %v2625 = vadd.s32 %v2620, 5
      %v2626 = vadd.s32 %v2620, 6
      %v2627 = vadd.s32 %v2620, 7
      %v2628 = vadd.s32 %v2620, 8
      %v2629 = vadd.s32 %v2620, 9
      %vm2630 = vcmp.ge.s32.totalorder %v2620, 0
      %vm2631 = vcmp.ge.s32.totalorder %v2621, 0
      %vm2632 = vcmp.ge.s32.totalorder %v2622, 0
      %vm2633 = vcmp.ge.s32.totalorder %v2623, 0
      %vm2634 = vcmp.ge.s32.totalorder %v2624, 0
      %vm2635 = vcmp.ge.s32.totalorder %v2625, 0
      %vm2636 = vcmp.ge.s32.totalorder %v2626, 0
      %vm2637 = vcmp.ge.s32.totalorder %v2627, 0
      %vm2638 = vcmp.ge.s32.totalorder %v2628, 0
      %vm2639 = vcmp.ge.s32.totalorder %v2629, 0
      %vm2640 = vcmp.lt.s32.totalorder %v2620, 16
      %vm2641 = vcmp.lt.s32.totalorder %v2621, 16
      %vm2642 = vcmp.lt.s32.totalorder %v2622, 16
      %vm2643 = vcmp.lt.s32.totalorder %v2623, 16
      %vm2644 = vcmp.lt.s32.totalorder %v2624, 16
      %vm2645 = vcmp.lt.s32.totalorder %v2625, 16
      %vm2646 = vcmp.lt.s32.totalorder %v2626, 16
      %vm2647 = vcmp.lt.s32.totalorder %v2627, 16
      %vm2648 = vcmp.lt.s32.totalorder %v2628, 16
      %vm2649 = vcmp.lt.s32.totalorder %v2629, 16
      %vm2650 = vmand %vm2630, %vm2640
      %vm2651 = vmand %vm2631, %vm2641
      %vm2652 = vmand %vm2632, %vm2642
      %vm2653 = vmand %vm2633, %vm2643
      %vm2654 = vmand %vm2634, %vm2644
      %vm2655 = vmand %vm2635, %vm2645
      %vm2656 = vmand %vm2636, %vm2646
      %vm2657 = vmand %vm2637, %vm2647
      %vm2658 = vmand %vm2638, %vm2648
      %vm2659 = vmand %vm2639, %vm2649
      %v2660 = vsel %vm2650, 1, 0
      %v2661 = vsel %vm2651, 1, 0
      %v2662 = vsel %vm2652, 1, 0
      %v2663 = vsel %vm2653, 1, 0
      %v2664 = vsel %vm2654, 1, 0
      %v2665 = vsel %vm2655, 1, 0
      %v2666 = vsel %vm2656, 1, 0
      %v2667 = vsel %vm2657, 1, 0
      %v2668 = vsel %vm2658, 1, 0
      %v2669 = vsel %vm2659, 1, 0
      %v2670 = vcvt.s32.f32 %v2660
      %v2671 = vcvt.s32.f32 %v2661
      %v2672 = vcvt.s32.f32 %v2662
      %v2673 = vcvt.s32.f32 %v2663
      %v2674 = vcvt.s32.f32 %v2664
      %v2675 = vcvt.s32.f32 %v2665
      %v2676 = vcvt.s32.f32 %v2666
      %v2677 = vcvt.s32.f32 %v2667
      %v2678 = vcvt.s32.f32 %v2668
      %v2679 = vcvt.s32.f32 %v2669
      %v2680 = vmul.f32 %v2599, %v2670
      %v2681 = vmul.f32 %v2600, %v2670
      %v2682 = vmul.f32 %v2601, %v2671
      %v2683 = vmul.f32 %v2602, %v2671
      %v2684 = vmul.f32 %v2603, %v2672
      %v2685 = vmul.f32 %v2604, %v2672
      %v2686 = vmul.f32 %v2605, %v2673
      %v2687 = vmul.f32 %v2606, %v2673
      %v2688 = vmul.f32 %v2607, %v2674
      %v2689 = vmul.f32 %v2608, %v2674
      %v2690 = vmul.f32 %v2609, %v2675
      %v2691 = vmul.f32 %v2610, %v2675
      %v2692 = vmul.f32 %v2611, %v2676
      %v2693 = vmul.f32 %v2612, %v2676
      %v2694 = vmul.f32 %v2613, %v2677
      %v2695 = vmul.f32 %v2614, %v2677
      %v2696 = vmul.f32 %v2615, %v2678
      %v2697 = vmul.f32 %v2616, %v2678
      %v2698 = vmul.f32 %v2617, %v2679
      %v2699 = vmul.f32 %v2618, %v2679
      %v2700 = vrot.slane %v2680, 7
      %v2701 = vrot.slane %v2681, 7
      %v2702 = vrot.slane %v2682, 7
      %v2703 = vrot.slane %v2683, 7
      %v2704 = vrot.slane %v2684, 7
      %v2705 = vrot.slane %v2685, 7
      %v2706 = vrot.slane %v2686, 7
      %v2707 = vrot.slane %v2687, 7
      %v2708 = vrot.slane %v2688, 7
      %v2709 = vrot.slane %v2689, 7
      %v2710 = vrot.slane %v2690, 7
      %v2711 = vrot.slane %v2691, 7
      %v2712 = vrot.slane %v2692, 7
      %v2713 = vrot.slane %v2693, 7
      %v2714 = vrot.slane %v2694, 7
      %v2715 = vrot.slane %v2695, 7
      %v2716 = vrot.slane %v2696, 7
      %v2717 = vrot.slane %v2697, 7
      %v2718 = vrot.slane %v2698, 7
      %v2719 = vrot.slane %v2699, 7
      %v2720 = vsel %vm392, %v2718, %v2719
      %v2721 = vsel %vm392, %v2717, %v2718
      %v2722 = vsel %vm392, %v2716, %v2717
      %v2723 = vsel %vm392, %v2715, %v2716
      %v2724 = vsel %vm392, %v2714, %v2715
      %v2725 = vsel %vm392, %v2713, %v2714
      %v2726 = vsel %vm392, %v2712, %v2713
      %v2727 = vsel %vm392, %v2711, %v2712
      %v2728 = vsel %vm392, %v2710, %v2711
      %v2729 = vsel %vm392, %v2709, %v2710
      %v2730 = vsel %vm392, %v2708, %v2709
      %v2731 = vsel %vm392, %v2707, %v2708
      %v2732 = vsel %vm392, %v2706, %v2707
      %v2733 = vsel %vm392, %v2705, %v2706
      %v2734 = vsel %vm392, %v2704, %v2705
      %v2735 = vsel %vm392, %v2703, %v2704
      %v2736 = vsel %vm392, %v2702, %v2703
      %v2737 = vsel %vm392, %v2701, %v2702
      %v2738 = vsel %vm392, %v2700, %v2701
      %v2739 = vsel %vm392, %v2719, %v2700
      %v2740 = vmul.f32 %v2721, %v360
      %v2741 = vmul.f32 %v2720, %v361
      %v2742 = vmul.f32 %v2739, %v360
      %v2743 = vmul.f32 %v2738, %v361
      %v2744 = vmul.f32 %v2737, %v360
      %v2745 = vmul.f32 %v2736, %v361
      %v2746 = vmul.f32 %v2735, %v360
      %v2747 = vmul.f32 %v2734, %v361
      %v2748 = vmul.f32 %v2733, %v360
      %v2749 = vmul.f32 %v2732, %v361
      %v2750 = vmul.f32 %v2731, %v360
      %v2751 = vmul.f32 %v2730, %v361
      %v2752 = vmul.f32 %v2729, %v360
      %v2753 = vmul.f32 %v2728, %v361
      %v2754 = vmul.f32 %v2727, %v360
      %v2755 = vmul.f32 %v2726, %v361
      %v2756 = vmul.f32 %v2725, %v360
      %v2757 = vmul.f32 %v2724, %v361
      %v2758 = vmul.f32 %v2723, %v360
      %v2759 = vmul.f32 %v2722, %v361
      %v2760 = vld [vmem:[%s4] sm:$0xff]
      %s2761 = scalar_lea.vmem %s4, 8
      %v2762 = vld [vmem:[%s2761] sm:$0xff]
      %vm2763 = vcmask 64512
      %v2765 = vsel %vm2763, %v2698, 0
      %v2768 = vsel %vm2763, %v2699, 0
      %v2771 = vsel %vm2763, %v2680, 0
      %v2774 = vsel %vm2763, %v2681, 0
      %v2777 = vsel %vm2763, %v2682, 0
      %v2780 = vsel %vm2763, %v2683, 0
      %v2783 = vsel %vm2763, %v2684, 0
      %v2786 = vsel %vm2763, %v2685, 0
      %v2789 = vsel %vm2763, %v2686, 0
      %v2792 = vsel %vm2763, %v2687, 0
      %v2795 = vsel %vm2763, %v2688, 0
      %v2798 = vsel %vm2763, %v2689, 0
      %v2801 = vsel %vm2763, %v2690, 0
      %v2804 = vsel %vm2763, %v2691, 0
      %v2807 = vsel %vm2763, %v2692, 0
      %v2810 = vsel %vm2763, %v2693, 0
      %v2813 = vsel %vm2763, %v2694, 0
      %v2816 = vsel %vm2763, %v2695, 0
      %v2819 = vsel %vm2763, %v2696, 0
      %v2822 = vsel %vm2763, %v2697, 0
      %2824 = vmatprep.subr.mxu0 0.0
      %2825 = vmatpush1.msra.mxu0 %v2762
      %2826 = vmatprep.subr.mxu0 0.0
      %2827 = vmatpush1.msra.mxu0 0.0
      %2828 = vmatprep.subr.mxu0 0.0
      %2829 = vmatpush1.msra.mxu0 0.0
      %2830 = vmatprep.subr.mxu0 0.0
      %2831 = vmatpush1.msra.mxu0 0.0
      %2832 = vmatprep.subr.mxu0 0.0
      %2833 = vmatpush1.msra.mxu0 0.0
      %2834 = vmatprep.subr.mxu0 0.0
      %2835 = vmatpush1.msra.mxu0 0.0
      %2836 = vmatprep.subr.mxu0 0.0
      %2837 = vmatpush1.msra.mxu0 0.0
      %2838 = vmatprep.subr.mxu0 0.0
      %2839 = vmatpush1.msra.mxu0 0.0
      %2840 = vmatprep.subr.mxu0 0.0
      %2841 = vmatpush1.msra.mxu0 0.0
      %2842 = vmatprep.subr.mxu0 0.0
      %2843 = vmatpush1.msra.mxu0 0.0
      %2844 = vmatprep.subr.mxu0 0.0
      %2845 = vmatpush1.msra.mxu0 0.0
      %2846 = vmatprep.subr.mxu0 0.0
      %2847 = vmatpush1.msra.mxu0 0.0
      %2848 = vmatprep.subr.mxu0 0.0
      %2849 = vmatpush1.msra.mxu0 0.0
      %2850 = vmatprep.subr.mxu0 0.0
      %2851 = vmatpush1.msra.mxu0 0.0
      %2852 = vmatprep.subr.mxu0 0.0
      %2853 = vmatpush1.msra.mxu0 0.0
      %2854 = vmatprep.subr.mxu0 0.0
      %2855 = vmatpush1.msra.mxu0 0.0
      %2856 = vmatprep.subr.mxu0 0.0
      %2857 = vmatpush1.msra.mxu0 0.0
      %2858 = vmatprep.subr.mxu0 0.0
      %2859 = vmatpush1.msra.mxu0 0.0
      %2860 = vmatprep.subr.mxu0 0.0
      %2861 = vmatpush1.msra.mxu0 0.0
      %2862 = vmatprep.subr.mxu0 0.0
      %2863 = vmatpush1.msra.mxu0 0.0
      %2864 = vmatprep.subr.mxu0 0.0
      %2865 = vmatpush1.msra.mxu0 0.0
      %2866 = vmatprep.subr.mxu0 0.0
      %2867 = vmatpush1.msra.mxu0 0.0
      %2868 = vmatprep.subr.mxu0 0.0
      %2869 = vmatpush1.msra.mxu0 0.0
      %2870 = vmatprep.subr.mxu0 0.0
      %2871 = vmatpush1.msra.mxu0 0.0
      %2872 = vmatprep.subr.mxu0 0.0
      %2873 = vmatpush1.msra.mxu0 0.0
      %2874 = vmatprep.subr.mxu0 0.0
      %2875 = vmatpush1.msra.mxu0 0.0
      %2876 = vmatprep.subr.mxu0 0.0
      %2877 = vmatpush1.msra.mxu0 0.0
      %2878 = vmatprep.subr.mxu0 0.0
      %2879 = vmatpush1.msra.mxu0 0.0
      %2880 = vmatprep.subr.mxu0 0.0
      %2881 = vmatpush1.msra.mxu0 0.0
      %2882 = vmatprep.subr.mxu0 0.0
      %2883 = vmatpush1.msra.mxu0 0.0
      %2884 = vmatprep.subr.mxu0 0.0
      %2885 = vmatpush1.msra.mxu0 0.0
      %2886 = vmatprep.subr.mxu0 0.0
      %2887 = vmatpush1.msra.mxu0 0.0
      %2888 = vmatprep.mubr.f32.mxu0 0.0
      %2889 = vmatmul.mubr.f32.gmra.mrb[0].mxu0 %v2765
      %v2890 = vpop.f32.mrb[0].mxu0
      %v2891 = vpop.f32.mrb[0].mxu0
      %2892 = vmatprep.mubr.f32.mxu0 0.0
      %2893 = vmatmul.mubr.f32.gmra.mrb[0].mxu0 %v2768
      %v2894 = vpop.f32.mrb[0].mxu0
      %v2895 = vpop.f32.mrb[0].mxu0
      %2896 = vmatprep.mubr.f32.mxu0 0.0
      %2897 = vmatmul.mubr.f32.gmra.mrb[0].mxu0 %v2771
      %v2898 = vpop.f32.mrb[0].mxu0
      %v2899 = vadd.f32 0.0, %v2898
      %v2900 = vpop.f32.mrb[0].mxu0
      %2901 = vmatprep.mubr.f32.mxu0 0.0
      %2902 = vmatmul.mubr.f32.gmra.mrb[0].mxu0 %v2774
      %v2903 = vpop.f32.mrb[0].mxu0
      %v2904 = vadd.f32 0.0, %v2903
      %v2905 = vpop.f32.mrb[0].mxu0
      %2906 = vmatprep.mubr.f32.mxu0 0.0
      %2907 = vmatmul.mubr.f32.gmra.mrb[0].mxu0 %v2777
      %v2908 = vpop.f32.mrb[0].mxu0
      %v2909 = vadd.f32 0.0, %v2908
      %v2910 = vpop.f32.mrb[0].mxu0
      %2911 = vmatprep.mubr.f32.mxu0 0.0
      %2912 = vmatmul.mubr.f32.gmra.mrb[0].mxu0 %v2780
      %v2913 = vpop.f32.mrb[0].mxu0
      %v2914 = vadd.f32 0.0, %v2913
      %v2915 = vpop.f32.mrb[0].mxu0
      %2916 = vmatprep.mubr.f32.mxu0 0.0
      %2917 = vmatmul.mubr.f32.gmra.mrb[0].mxu0 %v2783
      %v2918 = vpop.f32.mrb[0].mxu0
      %v2919 = vadd.f32 0.0, %v2918
      %v2920 = vpop.f32.mrb[0].mxu0
      %2921 = vmatprep.mubr.f32.mxu0 0.0
      %2922 = vmatmul.mubr.f32.gmra.mrb[0].mxu0 %v2786
      %v2923 = vpop.f32.mrb[0].mxu0
      %v2924 = vadd.f32 0.0, %v2923
      %v2925 = vpop.f32.mrb[0].mxu0
      %2926 = vmatprep.mubr.f32.mxu0 0.0
      %2927 = vmatmul.mubr.f32.gmra.mrb[0].mxu0 %v2789
      %v2928 = vpop.f32.mrb[0].mxu0
      %v2929 = vadd.f32 0.0, %v2928
      %v2930 = vpop.f32.mrb[0].mxu0
      %2931 = vmatprep.mubr.f32.mxu0 0.0
      %2932 = vmatmul.mubr.f32.gmra.mrb[0].mxu0 %v2792
      %v2933 = vpop.f32.mrb[0].mxu0
      %v2934 = vadd.f32 0.0, %v2933
      %v2935 = vpop.f32.mrb[0].mxu0
      %2936 = vmatprep.mubr.f32.mxu0 0.0
      %2937 = vmatmul.mubr.f32.gmra.mrb[0].mxu0 %v2795
      %v2938 = vpop.f32.mrb[0].mxu0
      %v2939 = vadd.f32 0.0, %v2938
      %v2940 = vpop.f32.mrb[0].mxu0
      %2941 = vmatprep.mubr.f32.mxu0 0.0
      %2942 = vmatmul.mubr.f32.gmra.mrb[0].mxu0 %v2798
      %v2943 = vpop.f32.mrb[0].mxu0
      %v2944 = vadd.f32 0.0, %v2943
      %v2945 = vpop.f32.mrb[0].mxu0
      %2946 = vmatprep.mubr.f32.mxu0 0.0
      %2947 = vmatmul.mubr.f32.gmra.mrb[0].mxu0 %v2801
      %v2948 = vpop.f32.mrb[0].mxu0
      %v2949 = vadd.f32 0.0, %v2948
      %v2950 = vpop.f32.mrb[0].mxu0
      %2951 = vmatprep.mubr.f32.mxu0 0.0
      %2952 = vmatmul.mubr.f32.gmra.mrb[0].mxu0 %v2804
      %v2953 = vpop.f32.mrb[0].mxu0
      %v2954 = vadd.f32 0.0, %v2953
      %v2955 = vpop.f32.mrb[0].mxu0
      %2956 = vmatprep.mubr.f32.mxu0 0.0
      %2957 = vmatmul.mubr.f32.gmra.mrb[0].mxu0 %v2807
      %v2958 = vpop.f32.mrb[0].mxu0
      %v2959 = vadd.f32 0.0, %v2958
      %v2960 = vpop.f32.mrb[0].mxu0
      %2961 = vmatprep.mubr.f32.mxu0 0.0
      %2962 = vmatmul.mubr.f32.gmra.mrb[0].mxu0 %v2810
      %v2963 = vpop.f32.mrb[0].mxu0
      %v2964 = vadd.f32 0.0, %v2963
      %v2965 = vpop.f32.mrb[0].mxu0
      %2966 = vmatprep.mubr.f32.mxu0 0.0
      %2967 = vmatmul.mubr.f32.gmra.mrb[0].mxu0 %v2813
      %v2968 = vpop.f32.mrb[0].mxu0
      %v2969 = vadd.f32 0.0, %v2968
      %v2970 = vpop.f32.mrb[0].mxu0
      %2971 = vmatprep.mubr.f32.mxu0 0.0
      %2972 = vmatmul.mubr.f32.gmra.mrb[0].mxu0 %v2816
      %v2973 = vpop.f32.mrb[0].mxu0
      %v2974 = vadd.f32 0.0, %v2973
      %v2975 = vpop.f32.mrb[0].mxu0
      %2976 = vmatprep.mubr.f32.mxu0 0.0
      %2977 = vmatmul.mubr.f32.gmra.mrb[0].mxu0 %v2819
      %v2978 = vpop.f32.mrb[0].mxu0
      %v2979 = vpop.f32.mrb[0].mxu0
      %2980 = vmatprep.mubr.f32.mxu0 0.0
      %2981 = vmatmul.mubr.f32.gmra.mrb[0].mxu0 %v2822
      %v2982 = vpop.f32.mrb[0].mxu0
      %v2983 = vpop.f32.mrb[0].mxu0
      %2984 = vdwg.mxu0
      %v2986 = vsel %vm2763, %v2740, 0
      %v2989 = vsel %vm2763, %v2741, 0
      %v2992 = vsel %vm2763, %v2742, 0
      %v2995 = vsel %vm2763, %v2743, 0
      %v2998 = vsel %vm2763, %v2744, 0
      %v3001 = vsel %vm2763, %v2745, 0
      %v3004 = vsel %vm2763, %v2746, 0
      %v3007 = vsel %vm2763, %v2747, 0
      %v3010 = vsel %vm2763, %v2748, 0
      %v3013 = vsel %vm2763, %v2749, 0
      %v3016 = vsel %vm2763, %v2750, 0
      %v3019 = vsel %vm2763, %v2751, 0
      %v3022 = vsel %vm2763, %v2752, 0
      %v3025 = vsel %vm2763, %v2753, 0
      %v3028 = vsel %vm2763, %v2754, 0
      %v3031 = vsel %vm2763, %v2755, 0
      %v3034 = vsel %vm2763, %v2756, 0
      %v3037 = vsel %vm2763, %v2757, 0
      %v3040 = vsel %vm2763, %v2758, 0
      %v3043 = vsel %vm2763, %v2759, 0
      %3045 = vmatprep.subr.mxu0 0.0
      %3046 = vmatpush1.msra.mxu0 %v2760
      %3047 = vmatprep.subr.mxu0 0.0
      %3048 = vmatpush1.msra.mxu0 0.0
      %3049 = vmatprep.subr.mxu0 0.0
      %3050 = vmatpush1.msra.mxu0 0.0
      %3051 = vmatprep.subr.mxu0 0.0
      %3052 = vmatpush1.msra.mxu0 0.0
      %3053 = vmatprep.subr.mxu0 0.0
      %3054 = vmatpush1.msra.mxu0 0.0
      %3055 = vmatprep.subr.mxu0 0.0
      %3056 = vmatpush1.msra.mxu0 0.0
      %3057 = vmatprep.subr.mxu0 0.0
      %3058 = vmatpush1.msra.mxu0 0.0
      %3059 = vmatprep.subr.mxu0 0.0
      %3060 = vmatpush1.msra.mxu0 0.0
      %3061 = vmatprep.subr.mxu0 0.0
      %3062 = vmatpush1.msra.mxu0 0.0
      %3063 = vmatprep.subr.mxu0 0.0
      %3064 = vmatpush1.msra.mxu0 0.0
      %3065 = vmatprep.subr.mxu0 0.0
      %3066 = vmatpush1.msra.mxu0 0.0
      %3067 = vmatprep.subr.mxu0 0.0
      %3068 = vmatpush1.msra.mxu0 0.0
      %3069 = vmatprep.subr.mxu0 0.0
      %3070 = vmatpush1.msra.mxu0 0.0
      %3071 = vmatprep.subr.mxu0 0.0
      %3072 = vmatpush1.msra.mxu0 0.0
      %3073 = vmatprep.subr.mxu0 0.0
      %3074 = vmatpush1.msra.mxu0 0.0
      %3075 = vmatprep.subr.mxu0 0.0
      %3076 = vmatpush1.msra.mxu0 0.0
      %3077 = vmatprep.subr.mxu0 0.0
      %3078 = vmatpush1.msra.mxu0 0.0
      %3079 = vmatprep.subr.mxu0 0.0
      %3080 = vmatpush1.msra.mxu0 0.0
      %3081 = vmatprep.subr.mxu0 0.0
      %3082 = vmatpush1.msra.mxu0 0.0
      %3083 = vmatprep.subr.mxu0 0.0
      %3084 = vmatpush1.msra.mxu0 0.0
      %3085 = vmatprep.subr.mxu0 0.0
      %3086 = vmatpush1.msra.mxu0 0.0
      %3087 = vmatprep.subr.mxu0 0.0
      %3088 = vmatpush1.msra.mxu0 0.0
      %3089 = vmatprep.subr.mxu0 0.0
      %3090 = vmatpush1.msra.mxu0 0.0
      %3091 = vmatprep.subr.mxu0 0.0
      %3092 = vmatpush1.msra.mxu0 0.0
      %3093 = vmatprep.subr.mxu0 0.0
      %3094 = vmatpush1.msra.mxu0 0.0
      %3095 = vmatprep.subr.mxu0 0.0
      %3096 = vmatpush1.msra.mxu0 0.0
      %3097 = vmatprep.subr.mxu0 0.0
      %3098 = vmatpush1.msra.mxu0 0.0
      %3099 = vmatprep.subr.mxu0 0.0
      %3100 = vmatpush1.msra.mxu0 0.0
      %3101 = vmatprep.subr.mxu0 0.0
      %3102 = vmatpush1.msra.mxu0 0.0
      %3103 = vmatprep.subr.mxu0 0.0
      %3104 = vmatpush1.msra.mxu0 0.0
      %3105 = vmatprep.subr.mxu0 0.0
      %3106 = vmatpush1.msra.mxu0 0.0
      %3107 = vmatprep.subr.mxu0 0.0
      %3108 = vmatpush1.msra.mxu0 0.0
      %3109 = vmatprep.mubr.f32.mxu0 0.0
      %3110 = vmatmul.mubr.f32.gmra.mrb[0].mxu0 %v2986
      %v3111 = vpop.f32.mrb[0].mxu0
      %v3112 = vpop.f32.mrb[0].mxu0
      %3113 = vmatprep.mubr.f32.mxu0 0.0
      %3114 = vmatmul.mubr.f32.gmra.mrb[0].mxu0 %v2989
      %v3115 = vpop.f32.mrb[0].mxu0
      %v3116 = vpop.f32.mrb[0].mxu0
      %3117 = vmatprep.mubr.f32.mxu0 0.0
      %3118 = vmatmul.mubr.f32.gmra.mrb[0].mxu0 %v2992
      %v3119 = vpop.f32.mrb[0].mxu0
      %v3120 = vadd.f32 %v2899, %v3119
      %v3121 = vpop.f32.mrb[0].mxu0
      %3122 = vmatprep.mubr.f32.mxu0 0.0
      %3123 = vmatmul.mubr.f32.gmra.mrb[0].mxu0 %v2995
      %v3124 = vpop.f32.mrb[0].mxu0
      %v3125 = vadd.f32 %v2904, %v3124
      %v3126 = vpop.f32.mrb[0].mxu0
      %3127 = vmatprep.mubr.f32.mxu0 0.0
      %3128 = vmatmul.mubr.f32.gmra.mrb[0].mxu0 %v2998
      %v3129 = vpop.f32.mrb[0].mxu0
      %v3130 = vadd.f32 %v2909, %v3129
      %v3131 = vpop.f32.mrb[0].mxu0
      %3132 = vmatprep.mubr.f32.mxu0 0.0
      %3133 = vmatmul.mubr.f32.gmra.mrb[0].mxu0 %v3001
      %v3134 = vpop.f32.mrb[0].mxu0
      %v3135 = vadd.f32 %v2914, %v3134
      %v3136 = vpop.f32.mrb[0].mxu0
      %3137 = vmatprep.mubr.f32.mxu0 0.0
      %3138 = vmatmul.mubr.f32.gmra.mrb[0].mxu0 %v3004
      %v3139 = vpop.f32.mrb[0].mxu0
      %v3140 = vadd.f32 %v2919, %v3139
      %v3141 = vpop.f32.mrb[0].mxu0
      %3142 = vmatprep.mubr.f32.mxu0 0.0
      %3143 = vmatmul.mubr.f32.gmra.mrb[0].mxu0 %v3007
      %v3144 = vpop.f32.mrb[0].mxu0
      %v3145 = vadd.f32 %v2924, %v3144
      %v3146 = vpop.f32.mrb[0].mxu0
      %3147 = vmatprep.mubr.f32.mxu0 0.0
      %3148 = vmatmul.mubr.f32.gmra.mrb[0].mxu0 %v3010
      %v3149 = vpop.f32.mrb[0].mxu0
      %v3150 = vadd.f32 %v2929, %v3149
      %v3151 = vpop.f32.mrb[0].mxu0
      %3152 = vmatprep.mubr.f32.mxu0 0.0
      %3153 = vmatmul.mubr.f32.gmra.mrb[0].mxu0 %v3013
      %v3154 = vpop.f32.mrb[0].mxu0
      %v3155 = vadd.f32 %v2934, %v3154
      %v3156 = vpop.f32.mrb[0].mxu0
      %3157 = vmatprep.mubr.f32.mxu0 0.0
      %3158 = vmatmul.mubr.f32.gmra.mrb[0].mxu0 %v3016
      %v3159 = vpop.f32.mrb[0].mxu0
      %v3160 = vadd.f32 %v2939, %v3159
      %v3161 = vpop.f32.mrb[0].mxu0
      %3162 = vmatprep.mubr.f32.mxu0 0.0
      %3163 = vmatmul.mubr.f32.gmra.mrb[0].mxu0 %v3019
      %v3164 = vpop.f32.mrb[0].mxu0
      %v3165 = vadd.f32 %v2944, %v3164
      %v3166 = vpop.f32.mrb[0].mxu0
      %3167 = vmatprep.mubr.f32.mxu0 0.0
      %3168 = vmatmul.mubr.f32.gmra.mrb[0].mxu0 %v3022
      %v3169 = vpop.f32.mrb[0].mxu0
      %v3170 = vadd.f32 %v2949, %v3169
      %v3171 = vpop.f32.mrb[0].mxu0
      %3172 = vmatprep.mubr.f32.mxu0 0.0
      %3173 = vmatmul.mubr.f32.gmra.mrb[0].mxu0 %v3025
      %v3174 = vpop.f32.mrb[0].mxu0
      %v3175 = vadd.f32 %v2954, %v3174
      %v3176 = vpop.f32.mrb[0].mxu0
      %3177 = vmatprep.mubr.f32.mxu0 0.0
      %3178 = vmatmul.mubr.f32.gmra.mrb[0].mxu0 %v3028
      %v3179 = vpop.f32.mrb[0].mxu0
      %v3180 = vadd.f32 %v2959, %v3179
      %v3181 = vpop.f32.mrb[0].mxu0
      %3182 = vmatprep.mubr.f32.mxu0 0.0
      %3183 = vmatmul.mubr.f32.gmra.mrb[0].mxu0 %v3031
      %v3184 = vpop.f32.mrb[0].mxu0
      %v3185 = vadd.f32 %v2964, %v3184
      %v3186 = vpop.f32.mrb[0].mxu0
      %3187 = vmatprep.mubr.f32.mxu0 0.0
      %3188 = vmatmul.mubr.f32.gmra.mrb[0].mxu0 %v3034
      %v3189 = vpop.f32.mrb[0].mxu0
      %v3190 = vadd.f32 %v2969, %v3189
      %v3191 = vpop.f32.mrb[0].mxu0
      %3192 = vmatprep.mubr.f32.mxu0 0.0
      %3193 = vmatmul.mubr.f32.gmra.mrb[0].mxu0 %v3037
      %v3194 = vpop.f32.mrb[0].mxu0
      %v3195 = vadd.f32 %v2974, %v3194
      %v3196 = vpop.f32.mrb[0].mxu0
      %3197 = vmatprep.mubr.f32.mxu0 0.0
      %3198 = vmatmul.mubr.f32.gmra.mrb[0].mxu0 %v3040
      %v3199 = vpop.f32.mrb[0].mxu0
      %v3200 = vpop.f32.mrb[0].mxu0
      %3201 = vmatprep.mubr.f32.mxu0 0.0
      %3202 = vmatmul.mubr.f32.gmra.mrb[0].mxu0 %v3043
      %v3203 = vpop.f32.mrb[0].mxu0
      %v3204 = vpop.f32.mrb[0].mxu0
      %3205 = vdwg.mxu0
      %v3206 = vrot.slane %v2680, 1
      %v3207 = vrot.slane %v2681, 1
      %v3208 = vrot.slane %v2682, 1
      %v3209 = vrot.slane %v2683, 1
      %v3210 = vrot.slane %v2684, 1
      %v3211 = vrot.slane %v2685, 1
      %v3212 = vrot.slane %v2686, 1
      %v3213 = vrot.slane %v2687, 1
      %v3214 = vrot.slane %v2688, 1
      %v3215 = vrot.slane %v2689, 1
      %v3216 = vrot.slane %v2690, 1
      %v3217 = vrot.slane %v2691, 1
      %v3218 = vrot.slane %v2692, 1
      %v3219 = vrot.slane %v2693, 1
      %v3220 = vrot.slane %v2694, 1
      %v3221 = vrot.slane %v2695, 1
      %v3222 = vrot.slane %v2696, 1
      %v3223 = vrot.slane %v2697, 1
      %v3224 = vrot.slane %v2698, 1
      %v3225 = vrot.slane %v2699, 1
      %v3226 = vsel %vm982, %v3224, %v3225
      %v3227 = vsel %vm982, %v3223, %v3224
      %v3228 = vsel %vm982, %v3222, %v3223
      %v3229 = vsel %vm982, %v3221, %v3222
      %v3230 = vsel %vm982, %v3220, %v3221
      %v3231 = vsel %vm982, %v3219, %v3220
      %v3232 = vsel %vm982, %v3218, %v3219
      %v3233 = vsel %vm982, %v3217, %v3218
      %v3234 = vsel %vm982, %v3216, %v3217
      %v3235 = vsel %vm982, %v3215, %v3216
      %v3236 = vsel %vm982, %v3214, %v3215
      %v3237 = vsel %vm982, %v3213, %v3214
      %v3238 = vsel %vm982, %v3212, %v3213
      %v3239 = vsel %vm982, %v3211, %v3212
      %v3240 = vsel %vm982, %v3210, %v3211
      %v3241 = vsel %vm982, %v3209, %v3210
      %v3242 = vsel %vm982, %v3208, %v3209
      %v3243 = vsel %vm982, %v3207, %v3208
      %v3244 = vsel %vm982, %v3206, %v3207
      %v3245 = vsel %vm982, %v3225, %v3206
      %v3246 = vmul.f32 %v3226, %v366
      %v3247 = vmul.f32 %v3245, %v367
      %v3248 = vmul.f32 %v3244, %v366
      %v3249 = vmul.f32 %v3243, %v367
      %v3250 = vmul.f32 %v3242, %v366
      %v3251 = vmul.f32 %v3241, %v367
      %v3252 = vmul.f32 %v3240, %v366
      %v3253 = vmul.f32 %v3239, %v367
      %v3254 = vmul.f32 %v3238, %v366
      %v3255 = vmul.f32 %v3237, %v367
      %v3256 = vmul.f32 %v3236, %v366
      %v3257 = vmul.f32 %v3235, %v367
      %v3258 = vmul.f32 %v3234, %v366
      %v3259 = vmul.f32 %v3233, %v367
      %v3260 = vmul.f32 %v3232, %v366
      %v3261 = vmul.f32 %v3231, %v367
      %v3262 = vmul.f32 %v3230, %v366
      %v3263 = vmul.f32 %v3229, %v367
      %v3264 = vmul.f32 %v3228, %v366
      %v3265 = vmul.f32 %v3227, %v367
      %s3266 = scalar_lea.vmem %s4, 16
      %v3267 = vld [vmem:[%s3266] sm:$0xff]
      %v3269 = vsel %vm2763, %v3246, 0
      %v3272 = vsel %vm2763, %v3247, 0
      %v3275 = vsel %vm2763, %v3248, 0
      %v3278 = vsel %vm2763, %v3249, 0
      %v3281 = vsel %vm2763, %v3250, 0
      %v3284 = vsel %vm2763, %v3251, 0
      %v3287 = vsel %vm2763, %v3252, 0
      %v3290 = vsel %vm2763, %v3253, 0
      %v3293 = vsel %vm2763, %v3254, 0
      %v3296 = vsel %vm2763, %v3255, 0
      %v3299 = vsel %vm2763, %v3256, 0
      %v3302 = vsel %vm2763, %v3257, 0
      %v3305 = vsel %vm2763, %v3258, 0
      %v3308 = vsel %vm2763, %v3259, 0
      %v3311 = vsel %vm2763, %v3260, 0
      %v3314 = vsel %vm2763, %v3261, 0
      %v3317 = vsel %vm2763, %v3262, 0
      %v3320 = vsel %vm2763, %v3263, 0
      %v3323 = vsel %vm2763, %v3264, 0
      %v3326 = vsel %vm2763, %v3265, 0
      %3328 = vmatprep.subr.mxu0 0.0
      %3329 = vmatpush1.msra.mxu0 %v3267
      %3330 = vmatprep.subr.mxu0 0.0
      %3331 = vmatpush1.msra.mxu0 0.0
      %3332 = vmatprep.subr.mxu0 0.0
      %3333 = vmatpush1.msra.mxu0 0.0
      %3334 = vmatprep.subr.mxu0 0.0
      %3335 = vmatpush1.msra.mxu0 0.0
      %3336 = vmatprep.subr.mxu0 0.0
      %3337 = vmatpush1.msra.mxu0 0.0
      %3338 = vmatprep.subr.mxu0 0.0
      %3339 = vmatpush1.msra.mxu0 0.0
      %3340 = vmatprep.subr.mxu0 0.0
      %3341 = vmatpush1.msra.mxu0 0.0
      %3342 = vmatprep.subr.mxu0 0.0
      %3343 = vmatpush1.msra.mxu0 0.0
      %3344 = vmatprep.subr.mxu0 0.0
      %3345 = vmatpush1.msra.mxu0 0.0
      %3346 = vmatprep.subr.mxu0 0.0
      %3347 = vmatpush1.msra.mxu0 0.0
      %3348 = vmatprep.subr.mxu0 0.0
      %3349 = vmatpush1.msra.mxu0 0.0
      %3350 = vmatprep.subr.mxu0 0.0
      %3351 = vmatpush1.msra.mxu0 0.0
      %3352 = vmatprep.subr.mxu0 0.0
      %3353 = vmatpush1.msra.mxu0 0.0
      %3354 = vmatprep.subr.mxu0 0.0
      %3355 = vmatpush1.msra.mxu0 0.0
      %3356 = vmatprep.subr.mxu0 0.0
      %3357 = vmatpush1.msra.mxu0 0.0
      %3358 = vmatprep.subr.mxu0 0.0
      %3359 = vmatpush1.msra.mxu0 0.0
      %3360 = vmatprep.subr.mxu0 0.0
      %3361 = vmatpush1.msra.mxu0 0.0
      %3362 = vmatprep.subr.mxu0 0.0
      %3363 = vmatpush1.msra.mxu0 0.0
      %3364 = vmatprep.subr.mxu0 0.0
      %3365 = vmatpush1.msra.mxu0 0.0
      %3366 = vmatprep.subr.mxu0 0.0
      %3367 = vmatpush1.msra.mxu0 0.0
      %3368 = vmatprep.subr.mxu0 0.0
      %3369 = vmatpush1.msra.mxu0 0.0
      %3370 = vmatprep.subr.mxu0 0.0
      %3371 = vmatpush1.msra.mxu0 0.0
      %3372 = vmatprep.subr.mxu0 0.0
      %3373 = vmatpush1.msra.mxu0 0.0
      %3374 = vmatprep.subr.mxu0 0.0
      %3375 = vmatpush1.msra.mxu0 0.0
      %3376 = vmatprep.subr.mxu0 0.0
      %3377 = vmatpush1.msra.mxu0 0.0
      %3378 = vmatprep.subr.mxu0 0.0
      %3379 = vmatpush1.msra.mxu0 0.0
      %3380 = vmatprep.subr.mxu0 0.0
      %3381 = vmatpush1.msra.mxu0 0.0
      %3382 = vmatprep.subr.mxu0 0.0
      %3383 = vmatpush1.msra.mxu0 0.0
      %3384 = vmatprep.subr.mxu0 0.0
      %3385 = vmatpush1.msra.mxu0 0.0
      %3386 = vmatprep.subr.mxu0 0.0
      %3387 = vmatpush1.msra.mxu0 0.0
      %3388 = vmatprep.subr.mxu0 0.0
      %3389 = vmatpush1.msra.mxu0 0.0
      %3390 = vmatprep.subr.mxu0 0.0
      %3391 = vmatpush1.msra.mxu0 0.0
      %3392 = vmatprep.mubr.f32.mxu0 0.0
      %3393 = vmatmul.mubr.f32.gmra.mrb[0].mxu0 %v3269
      %v3394 = vpop.f32.mrb[0].mxu0
      %v3395 = vpop.f32.mrb[0].mxu0
      %3396 = vmatprep.mubr.f32.mxu0 0.0
      %3397 = vmatmul.mubr.f32.gmra.mrb[0].mxu0 %v3272
      %v3398 = vpop.f32.mrb[0].mxu0
      %v3399 = vpop.f32.mrb[0].mxu0
      %3400 = vmatprep.mubr.f32.mxu0 0.0
      %3401 = vmatmul.mubr.f32.gmra.mrb[0].mxu0 %v3275
      %v3402 = vpop.f32.mrb[0].mxu0
      %v3403 = vadd.f32 0.0, %v3402
      %v3404 = vpop.f32.mrb[0].mxu0
      %3405 = vmatprep.mubr.f32.mxu0 0.0
      %3406 = vmatmul.mubr.f32.gmra.mrb[0].mxu0 %v3278
      %v3407 = vpop.f32.mrb[0].mxu0
      %v3408 = vadd.f32 0.0, %v3407
      %v3409 = vpop.f32.mrb[0].mxu0
      %3410 = vmatprep.mubr.f32.mxu0 0.0
      %3411 = vmatmul.mubr.f32.gmra.mrb[0].mxu0 %v3281
      %v3412 = vpop.f32.mrb[0].mxu0
      %v3413 = vadd.f32 0.0, %v3412
      %v3414 = vpop.f32.mrb[0].mxu0
      %3415 = vmatprep.mubr.f32.mxu0 0.0
      %3416 = vmatmul.mubr.f32.gmra.mrb[0].mxu0 %v3284
      %v3417 = vpop.f32.mrb[0].mxu0
      %v3418 = vadd.f32 0.0, %v3417
      %v3419 = vpop.f32.mrb[0].mxu0
      %3420 = vmatprep.mubr.f32.mxu0 0.0
      %3421 = vmatmul.mubr.f32.gmra.mrb[0].mxu0 %v3287
      %v3422 = vpop.f32.mrb[0].mxu0
      %v3423 = vadd.f32 0.0, %v3422
      %v3424 = vpop.f32.mrb[0].mxu0
      %3425 = vmatprep.mubr.f32.mxu0 0.0
      %3426 = vmatmul.mubr.f32.gmra.mrb[0].mxu0 %v3290
      %v3427 = vpop.f32.mrb[0].mxu0
      %v3428 = vadd.f32 0.0, %v3427
      %v3429 = vpop.f32.mrb[0].mxu0
      %3430 = vmatprep.mubr.f32.mxu0 0.0
      %3431 = vmatmul.mubr.f32.gmra.mrb[0].mxu0 %v3293
      %v3432 = vpop.f32.mrb[0].mxu0
      %v3433 = vadd.f32 0.0, %v3432
      %v3434 = vpop.f32.mrb[0].mxu0
      %3435 = vmatprep.mubr.f32.mxu0 0.0
      %3436 = vmatmul.mubr.f32.gmra.mrb[0].mxu0 %v3296
      %v3437 = vpop.f32.mrb[0].mxu0
      %v3438 = vadd.f32 0.0, %v3437
      %v3439 = vpop.f32.mrb[0].mxu0
      %3440 = vmatprep.mubr.f32.mxu0 0.0
      %3441 = vmatmul.mubr.f32.gmra.mrb[0].mxu0 %v3299
      %v3442 = vpop.f32.mrb[0].mxu0
      %v3443 = vadd.f32 0.0, %v3442
      %v3444 = vpop.f32.mrb[0].mxu0
      %3445 = vmatprep.mubr.f32.mxu0 0.0
      %3446 = vmatmul.mubr.f32.gmra.mrb[0].mxu0 %v3302
      %v3447 = vpop.f32.mrb[0].mxu0
      %v3448 = vadd.f32 0.0, %v3447
      %v3449 = vpop.f32.mrb[0].mxu0
      %3450 = vmatprep.mubr.f32.mxu0 0.0
      %3451 = vmatmul.mubr.f32.gmra.mrb[0].mxu0 %v3305
      %v3452 = vpop.f32.mrb[0].mxu0
      %v3453 = vadd.f32 0.0, %v3452
      %v3454 = vpop.f32.mrb[0].mxu0
      %3455 = vmatprep.mubr.f32.mxu0 0.0
      %3456 = vmatmul.mubr.f32.gmra.mrb[0].mxu0 %v3308
      %v3457 = vpop.f32.mrb[0].mxu0
      %v3458 = vadd.f32 0.0, %v3457
      %v3459 = vpop.f32.mrb[0].mxu0
      %3460 = vmatprep.mubr.f32.mxu0 0.0
      %3461 = vmatmul.mubr.f32.gmra.mrb[0].mxu0 %v3311
      %v3462 = vpop.f32.mrb[0].mxu0
      %v3463 = vadd.f32 0.0, %v3462
      %v3464 = vpop.f32.mrb[0].mxu0
      %3465 = vmatprep.mubr.f32.mxu0 0.0
      %3466 = vmatmul.mubr.f32.gmra.mrb[0].mxu0 %v3314
      %v3467 = vpop.f32.mrb[0].mxu0
      %v3468 = vadd.f32 0.0, %v3467
      %v3469 = vpop.f32.mrb[0].mxu0
      %3470 = vmatprep.mubr.f32.mxu0 0.0
      %3471 = vmatmul.mubr.f32.gmra.mrb[0].mxu0 %v3317
      %v3472 = vpop.f32.mrb[0].mxu0
      %v3473 = vadd.f32 0.0, %v3472
      %v3474 = vpop.f32.mrb[0].mxu0
      %3475 = vmatprep.mubr.f32.mxu0 0.0
      %3476 = vmatmul.mubr.f32.gmra.mrb[0].mxu0 %v3320
      %v3477 = vpop.f32.mrb[0].mxu0
      %v3478 = vadd.f32 0.0, %v3477
      %v3479 = vpop.f32.mrb[0].mxu0
      %3480 = vmatprep.mubr.f32.mxu0 0.0
      %3481 = vmatmul.mubr.f32.gmra.mrb[0].mxu0 %v3323
      %v3482 = vpop.f32.mrb[0].mxu0
      %v3483 = vpop.f32.mrb[0].mxu0
      %3484 = vmatprep.mubr.f32.mxu0 0.0
      %3485 = vmatmul.mubr.f32.gmra.mrb[0].mxu0 %v3326
      %v3486 = vpop.f32.mrb[0].mxu0
      %v3487 = vpop.f32.mrb[0].mxu0
      %3488 = vdwg.mxu0
      %v3489 = vadd.f32 %v3120, %v3403
      %v3490 = vadd.f32 %v3125, %v3408
      %v3491 = vadd.f32 %v3130, %v3413
      %v3492 = vadd.f32 %v3135, %v3418
      %v3493 = vadd.f32 %v3140, %v3423
      %v3494 = vadd.f32 %v3145, %v3428
      %v3495 = vadd.f32 %v3150, %v3433
      %v3496 = vadd.f32 %v3155, %v3438
      %v3497 = vadd.f32 %v3160, %v3443
      %v3498 = vadd.f32 %v3165, %v3448
      %v3499 = vadd.f32 %v3170, %v3453
      %v3500 = vadd.f32 %v3175, %v3458
      %v3501 = vadd.f32 %v3180, %v3463
      %v3502 = vadd.f32 %v3185, %v3468
      %v3503 = vadd.f32 %v3190, %v3473
      %v3504 = vadd.f32 %v3195, %v3478
      %s3505 = scalar_lea.vmem %s4, 24
      %v3506 = vld [vmem:[%s3505] sm:$0xff]
      %3507 = vmatprep.subr.mxu0 0.0
      %3508 = vmatpush1.msra.mxu0 %v3506
      %3509 = vmatprep.subr.mxu0 0.0
      %3510 = vmatpush1.msra.mxu0 0.0
      %3511 = vmatprep.subr.mxu0 0.0
      %3512 = vmatpush1.msra.mxu0 0.0
      %3513 = vmatprep.subr.mxu0 0.0
      %3514 = vmatpush1.msra.mxu0 0.0
      %3515 = vmatprep.subr.mxu0 0.0
      %3516 = vmatpush1.msra.mxu0 0.0
      %3517 = vmatprep.subr.mxu0 0.0
      %3518 = vmatpush1.msra.mxu0 0.0
      %3519 = vmatprep.subr.mxu0 0.0
      %3520 = vmatpush1.msra.mxu0 0.0
      %3521 = vmatprep.subr.mxu0 0.0
      %3522 = vmatpush1.msra.mxu0 0.0
      %3523 = vmatprep.subr.mxu0 0.0
      %3524 = vmatpush1.msra.mxu0 0.0
      %3525 = vmatprep.subr.mxu0 0.0
      %3526 = vmatpush1.msra.mxu0 0.0
      %3527 = vmatprep.subr.mxu0 0.0
      %3528 = vmatpush1.msra.mxu0 0.0
      %3529 = vmatprep.subr.mxu0 0.0
      %3530 = vmatpush1.msra.mxu0 0.0
      %3531 = vmatprep.subr.mxu0 0.0
      %3532 = vmatpush1.msra.mxu0 0.0
      %3533 = vmatprep.subr.mxu0 0.0
      %3534 = vmatpush1.msra.mxu0 0.0
      %3535 = vmatprep.subr.mxu0 0.0
      %3536 = vmatpush1.msra.mxu0 0.0
      %3537 = vmatprep.subr.mxu0 0.0
      %3538 = vmatpush1.msra.mxu0 0.0
      %3539 = vmatprep.subr.mxu0 0.0
      %3540 = vmatpush1.msra.mxu0 0.0
      %3541 = vmatprep.subr.mxu0 0.0
      %3542 = vmatpush1.msra.mxu0 0.0
      %3543 = vmatprep.subr.mxu0 0.0
      %3544 = vmatpush1.msra.mxu0 0.0
      %3545 = vmatprep.subr.mxu0 0.0
      %3546 = vmatpush1.msra.mxu0 0.0
      %3547 = vmatprep.subr.mxu0 0.0
      %3548 = vmatpush1.msra.mxu0 0.0
      %3549 = vmatprep.subr.mxu0 0.0
      %3550 = vmatpush1.msra.mxu0 0.0
      %3551 = vmatprep.subr.mxu0 0.0
      %3552 = vmatpush1.msra.mxu0 0.0
      %3553 = vmatprep.subr.mxu0 0.0
      %3554 = vmatpush1.msra.mxu0 0.0
      %3555 = vmatprep.subr.mxu0 0.0
      %3556 = vmatpush1.msra.mxu0 0.0
      %3557 = vmatprep.subr.mxu0 0.0
      %3558 = vmatpush1.msra.mxu0 0.0
      %3559 = vmatprep.subr.mxu0 0.0
      %3560 = vmatpush1.msra.mxu0 0.0
      %3561 = vmatprep.subr.mxu0 0.0
      %3562 = vmatpush1.msra.mxu0 0.0
      %3563 = vmatprep.subr.mxu0 0.0
      %3564 = vmatpush1.msra.mxu0 0.0
      %3565 = vmatprep.subr.mxu0 0.0
      %3566 = vmatpush1.msra.mxu0 0.0
      %3567 = vmatprep.subr.mxu0 0.0
      %3568 = vmatpush1.msra.mxu0 0.0
      %3569 = vmatprep.subr.mxu0 0.0
      %3570 = vmatpush1.msra.mxu0 0.0
      %3571 = vmatprep.mubr.f32.mxu0 0.0
      %3572 = vmatmul.mubr.f32.gmra.mrb[0].mxu0 %v2992
      %v3573 = vpop.f32.mrb[0].mxu0
      %v3574 = vpop.f32.mrb[0].mxu0
      %3575 = vmatprep.mubr.f32.mxu0 0.0
      %3576 = vmatmul.mubr.f32.gmra.mrb[0].mxu0 %v2995
      %v3577 = vpop.f32.mrb[0].mxu0
      %v3578 = vpop.f32.mrb[0].mxu0
      %3579 = vmatprep.mubr.f32.mxu0 0.0
      %3580 = vmatmul.mubr.f32.gmra.mrb[0].mxu0 %v2998
      %v3581 = vpop.f32.mrb[0].mxu0
      %v3582 = vadd.f32 0.0, %v3581
      %v3583 = vpop.f32.mrb[0].mxu0
      %3584 = vmatprep.mubr.f32.mxu0 0.0
      %3585 = vmatmul.mubr.f32.gmra.mrb[0].mxu0 %v3001
      %v3586 = vpop.f32.mrb[0].mxu0
      %v3587 = vadd.f32 0.0, %v3586
      %v3588 = vpop.f32.mrb[0].mxu0
      %3589 = vmatprep.mubr.f32.mxu0 0.0
      %3590 = vmatmul.mubr.f32.gmra.mrb[0].mxu0 %v3004
      %v3591 = vpop.f32.mrb[0].mxu0
      %v3592 = vadd.f32 0.0, %v3591
      %v3593 = vpop.f32.mrb[0].mxu0
      %3594 = vmatprep.mubr.f32.mxu0 0.0
      %3595 = vmatmul.mubr.f32.gmra.mrb[0].mxu0 %v3007
      %v3596 = vpop.f32.mrb[0].mxu0
      %v3597 = vadd.f32 0.0, %v3596
      %v3598 = vpop.f32.mrb[0].mxu0
      %3599 = vmatprep.mubr.f32.mxu0 0.0
      %3600 = vmatmul.mubr.f32.gmra.mrb[0].mxu0 %v3010
      %v3601 = vpop.f32.mrb[0].mxu0
      %v3602 = vadd.f32 0.0, %v3601
      %v3603 = vpop.f32.mrb[0].mxu0
      %3604 = vmatprep.mubr.f32.mxu0 0.0
      %3605 = vmatmul.mubr.f32.gmra.mrb[0].mxu0 %v3013
      %v3606 = vpop.f32.mrb[0].mxu0
      %v3607 = vadd.f32 0.0, %v3606
      %v3608 = vpop.f32.mrb[0].mxu0
      %3609 = vmatprep.mubr.f32.mxu0 0.0
      %3610 = vmatmul.mubr.f32.gmra.mrb[0].mxu0 %v3016
      %v3611 = vpop.f32.mrb[0].mxu0
      %v3612 = vadd.f32 0.0, %v3611
      %v3613 = vpop.f32.mrb[0].mxu0
      %3614 = vmatprep.mubr.f32.mxu0 0.0
      %3615 = vmatmul.mubr.f32.gmra.mrb[0].mxu0 %v3019
      %v3616 = vpop.f32.mrb[0].mxu0
      %v3617 = vadd.f32 0.0, %v3616
      %v3618 = vpop.f32.mrb[0].mxu0
      %3619 = vmatprep.mubr.f32.mxu0 0.0
      %3620 = vmatmul.mubr.f32.gmra.mrb[0].mxu0 %v3022
      %v3621 = vpop.f32.mrb[0].mxu0
      %v3622 = vadd.f32 0.0, %v3621
      %v3623 = vpop.f32.mrb[0].mxu0
      %3624 = vmatprep.mubr.f32.mxu0 0.0
      %3625 = vmatmul.mubr.f32.gmra.mrb[0].mxu0 %v3025
      %v3626 = vpop.f32.mrb[0].mxu0
      %v3627 = vadd.f32 0.0, %v3626
      %v3628 = vpop.f32.mrb[0].mxu0
      %3629 = vmatprep.mubr.f32.mxu0 0.0
      %3630 = vmatmul.mubr.f32.gmra.mrb[0].mxu0 %v3028
      %v3631 = vpop.f32.mrb[0].mxu0
      %v3632 = vadd.f32 0.0, %v3631
      %v3633 = vpop.f32.mrb[0].mxu0
      %3634 = vmatprep.mubr.f32.mxu0 0.0
      %3635 = vmatmul.mubr.f32.gmra.mrb[0].mxu0 %v3031
      %v3636 = vpop.f32.mrb[0].mxu0
      %v3637 = vadd.f32 0.0, %v3636
      %v3638 = vpop.f32.mrb[0].mxu0
      %3639 = vmatprep.mubr.f32.mxu0 0.0
      %3640 = vmatmul.mubr.f32.gmra.mrb[0].mxu0 %v3034
      %v3641 = vpop.f32.mrb[0].mxu0
      %v3642 = vadd.f32 0.0, %v3641
      %v3643 = vpop.f32.mrb[0].mxu0
      %3644 = vmatprep.mubr.f32.mxu0 0.0
      %3645 = vmatmul.mubr.f32.gmra.mrb[0].mxu0 %v3037
      %v3646 = vpop.f32.mrb[0].mxu0
      %v3647 = vadd.f32 0.0, %v3646
      %v3648 = vpop.f32.mrb[0].mxu0
      %3649 = vmatprep.mubr.f32.mxu0 0.0
      %3650 = vmatmul.mubr.f32.gmra.mrb[0].mxu0 %v3040
      %v3651 = vpop.f32.mrb[0].mxu0
      %v3652 = vadd.f32 0.0, %v3651
      %v3653 = vpop.f32.mrb[0].mxu0
      %3654 = vmatprep.mubr.f32.mxu0 0.0
      %3655 = vmatmul.mubr.f32.gmra.mrb[0].mxu0 %v3043
      %v3656 = vpop.f32.mrb[0].mxu0
      %v3657 = vadd.f32 0.0, %v3656
      %v3658 = vpop.f32.mrb[0].mxu0
      %3659 = vmatprep.mubr.f32.mxu0 0.0
      %3660 = vmatmul.mubr.f32.gmra.mrb[0].mxu0 %v2986
      %v3661 = vpop.f32.mrb[0].mxu0
      %v3662 = vpop.f32.mrb[0].mxu0
      %3663 = vmatprep.mubr.f32.mxu0 0.0
      %3664 = vmatmul.mubr.f32.gmra.mrb[0].mxu0 %v2989
      %v3665 = vpop.f32.mrb[0].mxu0
      %v3666 = vpop.f32.mrb[0].mxu0
      %3667 = vdwg.mxu0
      %v3668 = vadd.f32 %v3489, %v3582
      %v3669 = vadd.f32 %v3490, %v3587
      %v3670 = vadd.f32 %v3491, %v3592
      %v3671 = vadd.f32 %v3492, %v3597
      %v3672 = vadd.f32 %v3493, %v3602
      %v3673 = vadd.f32 %v3494, %v3607
      %v3674 = vadd.f32 %v3495, %v3612
      %v3675 = vadd.f32 %v3496, %v3617
      %v3676 = vadd.f32 %v3497, %v3622
      %v3677 = vadd.f32 %v3498, %v3627
      %v3678 = vadd.f32 %v3499, %v3632
      %v3679 = vadd.f32 %v3500, %v3637
      %v3680 = vadd.f32 %v3501, %v3642
      %v3681 = vadd.f32 %v3502, %v3647
      %v3682 = vadd.f32 %v3503, %v3652
      %v3683 = vadd.f32 %v3504, %v3657
      %s3684 = scalar_lea.vmem %s4, 32
      %v3685 = vld [vmem:[%s3684] sm:$0xff]
      %3686 = vmatprep.subr.mxu0 0.0
      %3687 = vmatpush1.msra.mxu0 %v3685
      %3688 = vmatprep.subr.mxu0 0.0
      %3689 = vmatpush1.msra.mxu0 0.0
      %3690 = vmatprep.subr.mxu0 0.0
      %3691 = vmatpush1.msra.mxu0 0.0
      %3692 = vmatprep.subr.mxu0 0.0
      %3693 = vmatpush1.msra.mxu0 0.0
      %3694 = vmatprep.subr.mxu0 0.0
      %3695 = vmatpush1.msra.mxu0 0.0
      %3696 = vmatprep.subr.mxu0 0.0
      %3697 = vmatpush1.msra.mxu0 0.0
      %3698 = vmatprep.subr.mxu0 0.0
      %3699 = vmatpush1.msra.mxu0 0.0
      %3700 = vmatprep.subr.mxu0 0.0
      %3701 = vmatpush1.msra.mxu0 0.0
      %3702 = vmatprep.subr.mxu0 0.0
      %3703 = vmatpush1.msra.mxu0 0.0
      %3704 = vmatprep.subr.mxu0 0.0
      %3705 = vmatpush1.msra.mxu0 0.0
      %3706 = vmatprep.subr.mxu0 0.0
      %3707 = vmatpush1.msra.mxu0 0.0
      %3708 = vmatprep.subr.mxu0 0.0
      %3709 = vmatpush1.msra.mxu0 0.0
      %3710 = vmatprep.subr.mxu0 0.0
      %3711 = vmatpush1.msra.mxu0 0.0
      %3712 = vmatprep.subr.mxu0 0.0
      %3713 = vmatpush1.msra.mxu0 0.0
      %3714 = vmatprep.subr.mxu0 0.0
      %3715 = vmatpush1.msra.mxu0 0.0
      %3716 = vmatprep.subr.mxu0 0.0
      %3717 = vmatpush1.msra.mxu0 0.0
      %3718 = vmatprep.subr.mxu0 0.0
      %3719 = vmatpush1.msra.mxu0 0.0
      %3720 = vmatprep.subr.mxu0 0.0
      %3721 = vmatpush1.msra.mxu0 0.0
      %3722 = vmatprep.subr.mxu0 0.0
      %3723 = vmatpush1.msra.mxu0 0.0
      %3724 = vmatprep.subr.mxu0 0.0
      %3725 = vmatpush1.msra.mxu0 0.0
      %3726 = vmatprep.subr.mxu0 0.0
      %3727 = vmatpush1.msra.mxu0 0.0
      %3728 = vmatprep.subr.mxu0 0.0
      %3729 = vmatpush1.msra.mxu0 0.0
      %3730 = vmatprep.subr.mxu0 0.0
      %3731 = vmatpush1.msra.mxu0 0.0
      %3732 = vmatprep.subr.mxu0 0.0
      %3733 = vmatpush1.msra.mxu0 0.0
      %3734 = vmatprep.subr.mxu0 0.0
      %3735 = vmatpush1.msra.mxu0 0.0
      %3736 = vmatprep.subr.mxu0 0.0
      %3737 = vmatpush1.msra.mxu0 0.0
      %3738 = vmatprep.subr.mxu0 0.0
      %3739 = vmatpush1.msra.mxu0 0.0
      %3740 = vmatprep.subr.mxu0 0.0
      %3741 = vmatpush1.msra.mxu0 0.0
      %3742 = vmatprep.subr.mxu0 0.0
      %3743 = vmatpush1.msra.mxu0 0.0
      %3744 = vmatprep.subr.mxu0 0.0
      %3745 = vmatpush1.msra.mxu0 0.0
      %3746 = vmatprep.subr.mxu0 0.0
      %3747 = vmatpush1.msra.mxu0 0.0
      %3748 = vmatprep.subr.mxu0 0.0
      %3749 = vmatpush1.msra.mxu0 0.0
      %3750 = vmatprep.mubr.f32.mxu0 0.0
      %3751 = vmatmul.mubr.f32.gmra.mrb[0].mxu0 %v2771
      %v3752 = vpop.f32.mrb[0].mxu0
      %v3753 = vpop.f32.mrb[0].mxu0
      %3754 = vmatprep.mubr.f32.mxu0 0.0
      %3755 = vmatmul.mubr.f32.gmra.mrb[0].mxu0 %v2774
      %v3756 = vpop.f32.mrb[0].mxu0
      %v3757 = vpop.f32.mrb[0].mxu0
      %3758 = vmatprep.mubr.f32.mxu0 0.0
      %3759 = vmatmul.mubr.f32.gmra.mrb[0].mxu0 %v2777
      %v3760 = vpop.f32.mrb[0].mxu0
      %v3761 = vadd.f32 0.0, %v3760
      %v3762 = vpop.f32.mrb[0].mxu0
      %3763 = vmatprep.mubr.f32.mxu0 0.0
      %3764 = vmatmul.mubr.f32.gmra.mrb[0].mxu0 %v2780
      %v3765 = vpop.f32.mrb[0].mxu0
      %v3766 = vadd.f32 0.0, %v3765
      %v3767 = vpop.f32.mrb[0].mxu0
      %3768 = vmatprep.mubr.f32.mxu0 0.0
      %3769 = vmatmul.mubr.f32.gmra.mrb[0].mxu0 %v2783
      %v3770 = vpop.f32.mrb[0].mxu0
      %v3771 = vadd.f32 0.0, %v3770
      %v3772 = vpop.f32.mrb[0].mxu0
      %3773 = vmatprep.mubr.f32.mxu0 0.0
      %3774 = vmatmul.mubr.f32.gmra.mrb[0].mxu0 %v2786
      %v3775 = vpop.f32.mrb[0].mxu0
      %v3776 = vadd.f32 0.0, %v3775
      %v3777 = vpop.f32.mrb[0].mxu0
      %3778 = vmatprep.mubr.f32.mxu0 0.0
      %3779 = vmatmul.mubr.f32.gmra.mrb[0].mxu0 %v2789
      %v3780 = vpop.f32.mrb[0].mxu0
      %v3781 = vadd.f32 0.0, %v3780
      %v3782 = vpop.f32.mrb[0].mxu0
      %3783 = vmatprep.mubr.f32.mxu0 0.0
      %3784 = vmatmul.mubr.f32.gmra.mrb[0].mxu0 %v2792
      %v3785 = vpop.f32.mrb[0].mxu0
      %v3786 = vadd.f32 0.0, %v3785
      %v3787 = vpop.f32.mrb[0].mxu0
      %3788 = vmatprep.mubr.f32.mxu0 0.0
      %3789 = vmatmul.mubr.f32.gmra.mrb[0].mxu0 %v2795
      %v3790 = vpop.f32.mrb[0].mxu0
      %v3791 = vadd.f32 0.0, %v3790
      %v3792 = vpop.f32.mrb[0].mxu0
      %3793 = vmatprep.mubr.f32.mxu0 0.0
      %3794 = vmatmul.mubr.f32.gmra.mrb[0].mxu0 %v2798
      %v3795 = vpop.f32.mrb[0].mxu0
      %v3796 = vadd.f32 0.0, %v3795
      %v3797 = vpop.f32.mrb[0].mxu0
      %3798 = vmatprep.mubr.f32.mxu0 0.0
      %3799 = vmatmul.mubr.f32.gmra.mrb[0].mxu0 %v2801
      %v3800 = vpop.f32.mrb[0].mxu0
      %v3801 = vadd.f32 0.0, %v3800
      %v3802 = vpop.f32.mrb[0].mxu0
      %3803 = vmatprep.mubr.f32.mxu0 0.0
      %3804 = vmatmul.mubr.f32.gmra.mrb[0].mxu0 %v2804
      %v3805 = vpop.f32.mrb[0].mxu0
      %v3806 = vadd.f32 0.0, %v3805
      %v3807 = vpop.f32.mrb[0].mxu0
      %3808 = vmatprep.mubr.f32.mxu0 0.0
      %3809 = vmatmul.mubr.f32.gmra.mrb[0].mxu0 %v2807
      %v3810 = vpop.f32.mrb[0].mxu0
      %v3811 = vadd.f32 0.0, %v3810
      %v3812 = vpop.f32.mrb[0].mxu0
      %3813 = vmatprep.mubr.f32.mxu0 0.0
      %3814 = vmatmul.mubr.f32.gmra.mrb[0].mxu0 %v2810
      %v3815 = vpop.f32.mrb[0].mxu0
      %v3816 = vadd.f32 0.0, %v3815
      %v3817 = vpop.f32.mrb[0].mxu0
      %3818 = vmatprep.mubr.f32.mxu0 0.0
      %3819 = vmatmul.mubr.f32.gmra.mrb[0].mxu0 %v2813
      %v3820 = vpop.f32.mrb[0].mxu0
      %v3821 = vadd.f32 0.0, %v3820
      %v3822 = vpop.f32.mrb[0].mxu0
      %3823 = vmatprep.mubr.f32.mxu0 0.0
      %3824 = vmatmul.mubr.f32.gmra.mrb[0].mxu0 %v2816
      %v3825 = vpop.f32.mrb[0].mxu0
      %v3826 = vadd.f32 0.0, %v3825
      %v3827 = vpop.f32.mrb[0].mxu0
      %3828 = vmatprep.mubr.f32.mxu0 0.0
      %3829 = vmatmul.mubr.f32.gmra.mrb[0].mxu0 %v2819
      %v3830 = vpop.f32.mrb[0].mxu0
      %v3831 = vadd.f32 0.0, %v3830
      %v3832 = vpop.f32.mrb[0].mxu0
      %3833 = vmatprep.mubr.f32.mxu0 0.0
      %3834 = vmatmul.mubr.f32.gmra.mrb[0].mxu0 %v2822
      %v3835 = vpop.f32.mrb[0].mxu0
      %v3836 = vadd.f32 0.0, %v3835
      %v3837 = vpop.f32.mrb[0].mxu0
      %3838 = vmatprep.mubr.f32.mxu0 0.0
      %3839 = vmatmul.mubr.f32.gmra.mrb[0].mxu0 %v2765
      %v3840 = vpop.f32.mrb[0].mxu0
      %v3841 = vpop.f32.mrb[0].mxu0
      %3842 = vmatprep.mubr.f32.mxu0 0.0
      %3843 = vmatmul.mubr.f32.gmra.mrb[0].mxu0 %v2768
      %v3844 = vpop.f32.mrb[0].mxu0
      %v3845 = vpop.f32.mrb[0].mxu0
      %3846 = vdwg.mxu0
      %v3847 = vadd.f32 %v3668, %v3761
      %v3848 = vadd.f32 %v3669, %v3766
      %v3849 = vadd.f32 %v3670, %v3771
      %v3850 = vadd.f32 %v3671, %v3776
      %v3851 = vadd.f32 %v3672, %v3781
      %v3852 = vadd.f32 %v3673, %v3786
      %v3853 = vadd.f32 %v3674, %v3791
      %v3854 = vadd.f32 %v3675, %v3796
      %v3855 = vadd.f32 %v3676, %v3801
      %v3856 = vadd.f32 %v3677, %v3806
      %v3857 = vadd.f32 %v3678, %v3811
      %v3858 = vadd.f32 %v3679, %v3816
      %v3859 = vadd.f32 %v3680, %v3821
      %v3860 = vadd.f32 %v3681, %v3826
      %v3861 = vadd.f32 %v3682, %v3831
      %v3862 = vadd.f32 %v3683, %v3836
      %s3863 = scalar_lea.vmem %s4, 40
      %v3864 = vld [vmem:[%s3863] sm:$0xff]
      %3865 = vmatprep.subr.mxu0 0.0
      %3866 = vmatpush1.msra.mxu0 %v3864
      %3867 = vmatprep.subr.mxu0 0.0
      %3868 = vmatpush1.msra.mxu0 0.0
      %3869 = vmatprep.subr.mxu0 0.0
      %3870 = vmatpush1.msra.mxu0 0.0
      %3871 = vmatprep.subr.mxu0 0.0
      %3872 = vmatpush1.msra.mxu0 0.0
      %3873 = vmatprep.subr.mxu0 0.0
      %3874 = vmatpush1.msra.mxu0 0.0
      %3875 = vmatprep.subr.mxu0 0.0
      %3876 = vmatpush1.msra.mxu0 0.0
      %3877 = vmatprep.subr.mxu0 0.0
      %3878 = vmatpush1.msra.mxu0 0.0
      %3879 = vmatprep.subr.mxu0 0.0
      %3880 = vmatpush1.msra.mxu0 0.0
      %3881 = vmatprep.subr.mxu0 0.0
      %3882 = vmatpush1.msra.mxu0 0.0
      %3883 = vmatprep.subr.mxu0 0.0
      %3884 = vmatpush1.msra.mxu0 0.0
      %3885 = vmatprep.subr.mxu0 0.0
      %3886 = vmatpush1.msra.mxu0 0.0
      %3887 = vmatprep.subr.mxu0 0.0
      %3888 = vmatpush1.msra.mxu0 0.0
      %3889 = vmatprep.subr.mxu0 0.0
      %3890 = vmatpush1.msra.mxu0 0.0
      %3891 = vmatprep.subr.mxu0 0.0
      %3892 = vmatpush1.msra.mxu0 0.0
      %3893 = vmatprep.subr.mxu0 0.0
      %3894 = vmatpush1.msra.mxu0 0.0
      %3895 = vmatprep.subr.mxu0 0.0
      %3896 = vmatpush1.msra.mxu0 0.0
      %3897 = vmatprep.subr.mxu0 0.0
      %3898 = vmatpush1.msra.mxu0 0.0
      %3899 = vmatprep.subr.mxu0 0.0
      %3900 = vmatpush1.msra.mxu0 0.0
      %3901 = vmatprep.subr.mxu0 0.0
      %3902 = vmatpush1.msra.mxu0 0.0
      %3903 = vmatprep.subr.mxu0 0.0
      %3904 = vmatpush1.msra.mxu0 0.0
      %3905 = vmatprep.subr.mxu0 0.0
      %3906 = vmatpush1.msra.mxu0 0.0
      %3907 = vmatprep.subr.mxu0 0.0
      %3908 = vmatpush1.msra.mxu0 0.0
      %3909 = vmatprep.subr.mxu0 0.0
      %3910 = vmatpush1.msra.mxu0 0.0
      %3911 = vmatprep.subr.mxu0 0.0
      %3912 = vmatpush1.msra.mxu0 0.0
      %3913 = vmatprep.subr.mxu0 0.0
      %3914 = vmatpush1.msra.mxu0 0.0
      %3915 = vmatprep.subr.mxu0 0.0
      %3916 = vmatpush1.msra.mxu0 0.0
      %3917 = vmatprep.subr.mxu0 0.0
      %3918 = vmatpush1.msra.mxu0 0.0
      %3919 = vmatprep.subr.mxu0 0.0
      %3920 = vmatpush1.msra.mxu0 0.0
      %3921 = vmatprep.subr.mxu0 0.0
      %3922 = vmatpush1.msra.mxu0 0.0
      %3923 = vmatprep.subr.mxu0 0.0
      %3924 = vmatpush1.msra.mxu0 0.0
      %3925 = vmatprep.subr.mxu0 0.0
      %3926 = vmatpush1.msra.mxu0 0.0
      %3927 = vmatprep.subr.mxu0 0.0
      %3928 = vmatpush1.msra.mxu0 0.0
      %3929 = vmatprep.mubr.f32.mxu0 0.0
      %3930 = vmatmul.mubr.f32.gmra.mrb[0].mxu0 %v3275
      %v3931 = vpop.f32.mrb[0].mxu0
      %v3932 = vpop.f32.mrb[0].mxu0
      %3933 = vmatprep.mubr.f32.mxu0 0.0
      %3934 = vmatmul.mubr.f32.gmra.mrb[0].mxu0 %v3278
      %v3935 = vpop.f32.mrb[0].mxu0
      %v3936 = vpop.f32.mrb[0].mxu0
      %3937 = vmatprep.mubr.f32.mxu0 0.0
      %3938 = vmatmul.mubr.f32.gmra.mrb[0].mxu0 %v3281
      %v3939 = vpop.f32.mrb[0].mxu0
      %v3940 = vadd.f32 0.0, %v3939
      %v3941 = vpop.f32.mrb[0].mxu0
      %3942 = vmatprep.mubr.f32.mxu0 0.0
      %3943 = vmatmul.mubr.f32.gmra.mrb[0].mxu0 %v3284
      %v3944 = vpop.f32.mrb[0].mxu0
      %v3945 = vadd.f32 0.0, %v3944
      %v3946 = vpop.f32.mrb[0].mxu0
      %3947 = vmatprep.mubr.f32.mxu0 0.0
      %3948 = vmatmul.mubr.f32.gmra.mrb[0].mxu0 %v3287
      %v3949 = vpop.f32.mrb[0].mxu0
      %v3950 = vadd.f32 0.0, %v3949
      %v3951 = vpop.f32.mrb[0].mxu0
      %3952 = vmatprep.mubr.f32.mxu0 0.0
      %3953 = vmatmul.mubr.f32.gmra.mrb[0].mxu0 %v3290
      %v3954 = vpop.f32.mrb[0].mxu0
      %v3955 = vadd.f32 0.0, %v3954
      %v3956 = vpop.f32.mrb[0].mxu0
      %3957 = vmatprep.mubr.f32.mxu0 0.0
      %3958 = vmatmul.mubr.f32.gmra.mrb[0].mxu0 %v3293
      %v3959 = vpop.f32.mrb[0].mxu0
      %v3960 = vadd.f32 0.0, %v3959
      %v3961 = vpop.f32.mrb[0].mxu0
      %3962 = vmatprep.mubr.f32.mxu0 0.0
      %3963 = vmatmul.mubr.f32.gmra.mrb[0].mxu0 %v3296
      %v3964 = vpop.f32.mrb[0].mxu0
      %v3965 = vadd.f32 0.0, %v3964
      %v3966 = vpop.f32.mrb[0].mxu0
      %3967 = vmatprep.mubr.f32.mxu0 0.0
      %3968 = vmatmul.mubr.f32.gmra.mrb[0].mxu0 %v3299
      %v3969 = vpop.f32.mrb[0].mxu0
      %v3970 = vadd.f32 0.0, %v3969
      %v3971 = vpop.f32.mrb[0].mxu0
      %3972 = vmatprep.mubr.f32.mxu0 0.0
      %3973 = vmatmul.mubr.f32.gmra.mrb[0].mxu0 %v3302
      %v3974 = vpop.f32.mrb[0].mxu0
      %v3975 = vadd.f32 0.0, %v3974
      %v3976 = vpop.f32.mrb[0].mxu0
      %3977 = vmatprep.mubr.f32.mxu0 0.0
      %3978 = vmatmul.mubr.f32.gmra.mrb[0].mxu0 %v3305
      %v3979 = vpop.f32.mrb[0].mxu0
      %v3980 = vadd.f32 0.0, %v3979
      %v3981 = vpop.f32.mrb[0].mxu0
      %3982 = vmatprep.mubr.f32.mxu0 0.0
      %3983 = vmatmul.mubr.f32.gmra.mrb[0].mxu0 %v3308
      %v3984 = vpop.f32.mrb[0].mxu0
      %v3985 = vadd.f32 0.0, %v3984
      %v3986 = vpop.f32.mrb[0].mxu0
      %3987 = vmatprep.mubr.f32.mxu0 0.0
      %3988 = vmatmul.mubr.f32.gmra.mrb[0].mxu0 %v3311
      %v3989 = vpop.f32.mrb[0].mxu0
      %v3990 = vadd.f32 0.0, %v3989
      %v3991 = vpop.f32.mrb[0].mxu0
      %3992 = vmatprep.mubr.f32.mxu0 0.0
      %3993 = vmatmul.mubr.f32.gmra.mrb[0].mxu0 %v3314
      %v3994 = vpop.f32.mrb[0].mxu0
      %v3995 = vadd.f32 0.0, %v3994
      %v3996 = vpop.f32.mrb[0].mxu0
      %3997 = vmatprep.mubr.f32.mxu0 0.0
      %3998 = vmatmul.mubr.f32.gmra.mrb[0].mxu0 %v3317
      %v3999 = vpop.f32.mrb[0].mxu0
      %v4000 = vadd.f32 0.0, %v3999
      %v4001 = vpop.f32.mrb[0].mxu0
      %4002 = vmatprep.mubr.f32.mxu0 0.0
      %4003 = vmatmul.mubr.f32.gmra.mrb[0].mxu0 %v3320
      %v4004 = vpop.f32.mrb[0].mxu0
      %v4005 = vadd.f32 0.0, %v4004
      %v4006 = vpop.f32.mrb[0].mxu0
      %4007 = vmatprep.mubr.f32.mxu0 0.0
      %4008 = vmatmul.mubr.f32.gmra.mrb[0].mxu0 %v3323
      %v4009 = vpop.f32.mrb[0].mxu0
      %v4010 = vadd.f32 0.0, %v4009
      %v4011 = vpop.f32.mrb[0].mxu0
      %4012 = vmatprep.mubr.f32.mxu0 0.0
      %4013 = vmatmul.mubr.f32.gmra.mrb[0].mxu0 %v3326
      %v4014 = vpop.f32.mrb[0].mxu0
      %v4015 = vadd.f32 0.0, %v4014
      %v4016 = vpop.f32.mrb[0].mxu0
      %4017 = vmatprep.mubr.f32.mxu0 0.0
      %4018 = vmatmul.mubr.f32.gmra.mrb[0].mxu0 %v3269
      %v4019 = vpop.f32.mrb[0].mxu0
      %v4020 = vpop.f32.mrb[0].mxu0
      %4021 = vmatprep.mubr.f32.mxu0 0.0
      %4022 = vmatmul.mubr.f32.gmra.mrb[0].mxu0 %v3272
      %v4023 = vpop.f32.mrb[0].mxu0
      %v4024 = vpop.f32.mrb[0].mxu0
      %4025 = vdwg.mxu0
      %v4026 = vadd.f32 %v3847, %v3940
      %v4027 = vadd.f32 %v3848, %v3945
      %v4028 = vadd.f32 %v3849, %v3950
      %v4029 = vadd.f32 %v3850, %v3955
      %v4030 = vadd.f32 %v3851, %v3960
      %v4031 = vadd.f32 %v3852, %v3965
      %v4032 = vadd.f32 %v3853, %v3970
      %v4033 = vadd.f32 %v3854, %v3975
      %v4034 = vadd.f32 %v3855, %v3980
      %v4035 = vadd.f32 %v3856, %v3985
      %v4036 = vadd.f32 %v3857, %v3990
      %v4037 = vadd.f32 %v3858, %v3995
      %v4038 = vadd.f32 %v3859, %v4000
      %v4039 = vadd.f32 %v3860, %v4005
      %v4040 = vadd.f32 %v3861, %v4010
      %v4041 = vadd.f32 %v3862, %v4015
      %s4042 = scalar_lea.vmem %s4, 48
      %v4043 = vld [vmem:[%s4042] sm:$0xff]
      %4044 = vmatprep.subr.mxu0 0.0
      %4045 = vmatpush1.msra.mxu0 %v4043
      %4046 = vmatprep.subr.mxu0 0.0
      %4047 = vmatpush1.msra.mxu0 0.0
      %4048 = vmatprep.subr.mxu0 0.0
      %4049 = vmatpush1.msra.mxu0 0.0
      %4050 = vmatprep.subr.mxu0 0.0
      %4051 = vmatpush1.msra.mxu0 0.0
      %4052 = vmatprep.subr.mxu0 0.0
      %4053 = vmatpush1.msra.mxu0 0.0
      %4054 = vmatprep.subr.mxu0 0.0
      %4055 = vmatpush1.msra.mxu0 0.0
      %4056 = vmatprep.subr.mxu0 0.0
      %4057 = vmatpush1.msra.mxu0 0.0
      %4058 = vmatprep.subr.mxu0 0.0
      %4059 = vmatpush1.msra.mxu0 0.0
      %4060 = vmatprep.subr.mxu0 0.0
      %4061 = vmatpush1.msra.mxu0 0.0
      %4062 = vmatprep.subr.mxu0 0.0
      %4063 = vmatpush1.msra.mxu0 0.0
      %4064 = vmatprep.subr.mxu0 0.0
      %4065 = vmatpush1.msra.mxu0 0.0
      %4066 = vmatprep.subr.mxu0 0.0
      %4067 = vmatpush1.msra.mxu0 0.0
      %4068 = vmatprep.subr.mxu0 0.0
      %4069 = vmatpush1.msra.mxu0 0.0
      %4070 = vmatprep.subr.mxu0 0.0
      %4071 = vmatpush1.msra.mxu0 0.0
      %4072 = vmatprep.subr.mxu0 0.0
      %4073 = vmatpush1.msra.mxu0 0.0
      %4074 = vmatprep.subr.mxu0 0.0
      %4075 = vmatpush1.msra.mxu0 0.0
      %4076 = vmatprep.subr.mxu0 0.0
      %4077 = vmatpush1.msra.mxu0 0.0
      %4078 = vmatprep.subr.mxu0 0.0
      %4079 = vmatpush1.msra.mxu0 0.0
      %4080 = vmatprep.subr.mxu0 0.0
      %4081 = vmatpush1.msra.mxu0 0.0
      %4082 = vmatprep.subr.mxu0 0.0
      %4083 = vmatpush1.msra.mxu0 0.0
      %4084 = vmatprep.subr.mxu0 0.0
      %4085 = vmatpush1.msra.mxu0 0.0
      %4086 = vmatprep.subr.mxu0 0.0
      %4087 = vmatpush1.msra.mxu0 0.0
      %4088 = vmatprep.subr.mxu0 0.0
      %4089 = vmatpush1.msra.mxu0 0.0
      %4090 = vmatprep.subr.mxu0 0.0
      %4091 = vmatpush1.msra.mxu0 0.0
      %4092 = vmatprep.subr.mxu0 0.0
      %4093 = vmatpush1.msra.mxu0 0.0
      %4094 = vmatprep.subr.mxu0 0.0
      %4095 = vmatpush1.msra.mxu0 0.0
      %4096 = vmatprep.subr.mxu0 0.0
      %4097 = vmatpush1.msra.mxu0 0.0
      %4098 = vmatprep.subr.mxu0 0.0
      %4099 = vmatpush1.msra.mxu0 0.0
      %4100 = vmatprep.subr.mxu0 0.0
      %4101 = vmatpush1.msra.mxu0 0.0
      %4102 = vmatprep.subr.mxu0 0.0
      %4103 = vmatpush1.msra.mxu0 0.0
      %4104 = vmatprep.subr.mxu0 0.0
      %4105 = vmatpush1.msra.mxu0 0.0
      %4106 = vmatprep.subr.mxu0 0.0
      %4107 = vmatpush1.msra.mxu0 0.0
      %4108 = vmatprep.mubr.f32.mxu0 0.0
      %4109 = vmatmul.mubr.f32.gmra.mrb[0].mxu0 %v2998
      %v4110 = vpop.f32.mrb[0].mxu0
      %v4111 = vpop.f32.mrb[0].mxu0
      %4112 = vmatprep.mubr.f32.mxu0 0.0
      %4113 = vmatmul.mubr.f32.gmra.mrb[0].mxu0 %v3001
      %v4114 = vpop.f32.mrb[0].mxu0
      %v4115 = vpop.f32.mrb[0].mxu0
      %4116 = vmatprep.mubr.f32.mxu0 0.0
      %4117 = vmatmul.mubr.f32.gmra.mrb[0].mxu0 %v3004
      %v4118 = vpop.f32.mrb[0].mxu0
      %v4119 = vadd.f32 0.0, %v4118
      %v4120 = vpop.f32.mrb[0].mxu0
      %4121 = vmatprep.mubr.f32.mxu0 0.0
      %4122 = vmatmul.mubr.f32.gmra.mrb[0].mxu0 %v3007
      %v4123 = vpop.f32.mrb[0].mxu0
      %v4124 = vadd.f32 0.0, %v4123
      %v4125 = vpop.f32.mrb[0].mxu0
      %4126 = vmatprep.mubr.f32.mxu0 0.0
      %4127 = vmatmul.mubr.f32.gmra.mrb[0].mxu0 %v3010
      %v4128 = vpop.f32.mrb[0].mxu0
      %v4129 = vadd.f32 0.0, %v4128
      %v4130 = vpop.f32.mrb[0].mxu0
      %4131 = vmatprep.mubr.f32.mxu0 0.0
      %4132 = vmatmul.mubr.f32.gmra.mrb[0].mxu0 %v3013
      %v4133 = vpop.f32.mrb[0].mxu0
      %v4134 = vadd.f32 0.0, %v4133
      %v4135 = vpop.f32.mrb[0].mxu0
      %4136 = vmatprep.mubr.f32.mxu0 0.0
      %4137 = vmatmul.mubr.f32.gmra.mrb[0].mxu0 %v3016
      %v4138 = vpop.f32.mrb[0].mxu0
      %v4139 = vadd.f32 0.0, %v4138
      %v4140 = vpop.f32.mrb[0].mxu0
      %4141 = vmatprep.mubr.f32.mxu0 0.0
      %4142 = vmatmul.mubr.f32.gmra.mrb[0].mxu0 %v3019
      %v4143 = vpop.f32.mrb[0].mxu0
      %v4144 = vadd.f32 0.0, %v4143
      %v4145 = vpop.f32.mrb[0].mxu0
      %4146 = vmatprep.mubr.f32.mxu0 0.0
      %4147 = vmatmul.mubr.f32.gmra.mrb[0].mxu0 %v3022
      %v4148 = vpop.f32.mrb[0].mxu0
      %v4149 = vadd.f32 0.0, %v4148
      %v4150 = vpop.f32.mrb[0].mxu0
      %4151 = vmatprep.mubr.f32.mxu0 0.0
      %4152 = vmatmul.mubr.f32.gmra.mrb[0].mxu0 %v3025
      %v4153 = vpop.f32.mrb[0].mxu0
      %v4154 = vadd.f32 0.0, %v4153
      %v4155 = vpop.f32.mrb[0].mxu0
      %4156 = vmatprep.mubr.f32.mxu0 0.0
      %4157 = vmatmul.mubr.f32.gmra.mrb[0].mxu0 %v3028
      %v4158 = vpop.f32.mrb[0].mxu0
      %v4159 = vadd.f32 0.0, %v4158
      %v4160 = vpop.f32.mrb[0].mxu0
      %4161 = vmatprep.mubr.f32.mxu0 0.0
      %4162 = vmatmul.mubr.f32.gmra.mrb[0].mxu0 %v3031
      %v4163 = vpop.f32.mrb[0].mxu0
      %v4164 = vadd.f32 0.0, %v4163
      %v4165 = vpop.f32.mrb[0].mxu0
      %4166 = vmatprep.mubr.f32.mxu0 0.0
      %4167 = vmatmul.mubr.f32.gmra.mrb[0].mxu0 %v3034
      %v4168 = vpop.f32.mrb[0].mxu0
      %v4169 = vadd.f32 0.0, %v4168
      %v4170 = vpop.f32.mrb[0].mxu0
      %4171 = vmatprep.mubr.f32.mxu0 0.0
      %4172 = vmatmul.mubr.f32.gmra.mrb[0].mxu0 %v3037
      %v4173 = vpop.f32.mrb[0].mxu0
      %v4174 = vadd.f32 0.0, %v4173
      %v4175 = vpop.f32.mrb[0].mxu0
      %4176 = vmatprep.mubr.f32.mxu0 0.0
      %4177 = vmatmul.mubr.f32.gmra.mrb[0].mxu0 %v3040
      %v4178 = vpop.f32.mrb[0].mxu0
      %v4179 = vadd.f32 0.0, %v4178
      %v4180 = vpop.f32.mrb[0].mxu0
      %4181 = vmatprep.mubr.f32.mxu0 0.0
      %4182 = vmatmul.mubr.f32.gmra.mrb[0].mxu0 %v3043
      %v4183 = vpop.f32.mrb[0].mxu0
      %v4184 = vadd.f32 0.0, %v4183
      %v4185 = vpop.f32.mrb[0].mxu0
      %4186 = vmatprep.mubr.f32.mxu0 0.0
      %4187 = vmatmul.mubr.f32.gmra.mrb[0].mxu0 %v2986
      %v4188 = vpop.f32.mrb[0].mxu0
      %v4189 = vadd.f32 0.0, %v4188
      %v4190 = vpop.f32.mrb[0].mxu0
      %4191 = vmatprep.mubr.f32.mxu0 0.0
      %4192 = vmatmul.mubr.f32.gmra.mrb[0].mxu0 %v2989
      %v4193 = vpop.f32.mrb[0].mxu0
      %v4194 = vadd.f32 0.0, %v4193
      %v4195 = vpop.f32.mrb[0].mxu0
      %4196 = vmatprep.mubr.f32.mxu0 0.0
      %4197 = vmatmul.mubr.f32.gmra.mrb[0].mxu0 %v2992
      %v4198 = vpop.f32.mrb[0].mxu0
      %v4199 = vpop.f32.mrb[0].mxu0
      %4200 = vmatprep.mubr.f32.mxu0 0.0
      %4201 = vmatmul.mubr.f32.gmra.mrb[0].mxu0 %v2995
      %v4202 = vpop.f32.mrb[0].mxu0
      %v4203 = vpop.f32.mrb[0].mxu0
      %4204 = vdwg.mxu0
      %v4205 = vadd.f32 %v4026, %v4119
      %v4206 = vadd.f32 %v4027, %v4124
      %v4207 = vadd.f32 %v4028, %v4129
      %v4208 = vadd.f32 %v4029, %v4134
      %v4209 = vadd.f32 %v4030, %v4139
      %v4210 = vadd.f32 %v4031, %v4144
      %v4211 = vadd.f32 %v4032, %v4149
      %v4212 = vadd.f32 %v4033, %v4154
      %v4213 = vadd.f32 %v4034, %v4159
      %v4214 = vadd.f32 %v4035, %v4164
      %v4215 = vadd.f32 %v4036, %v4169
      %v4216 = vadd.f32 %v4037, %v4174
      %v4217 = vadd.f32 %v4038, %v4179
      %v4218 = vadd.f32 %v4039, %v4184
      %v4219 = vadd.f32 %v4040, %v4189
      %v4220 = vadd.f32 %v4041, %v4194
      %s4221 = scalar_lea.vmem %s4, 56
      %v4222 = vld [vmem:[%s4221] sm:$0xff]
      %4223 = vmatprep.subr.mxu0 0.0
      %4224 = vmatpush1.msra.mxu0 %v4222
      %4225 = vmatprep.subr.mxu0 0.0
      %4226 = vmatpush1.msra.mxu0 0.0
      %4227 = vmatprep.subr.mxu0 0.0
      %4228 = vmatpush1.msra.mxu0 0.0
      %4229 = vmatprep.subr.mxu0 0.0
      %4230 = vmatpush1.msra.mxu0 0.0
      %4231 = vmatprep.subr.mxu0 0.0
      %4232 = vmatpush1.msra.mxu0 0.0
      %4233 = vmatprep.subr.mxu0 0.0
      %4234 = vmatpush1.msra.mxu0 0.0
      %4235 = vmatprep.subr.mxu0 0.0
      %4236 = vmatpush1.msra.mxu0 0.0
      %4237 = vmatprep.subr.mxu0 0.0
      %4238 = vmatpush1.msra.mxu0 0.0
      %4239 = vmatprep.subr.mxu0 0.0
      %4240 = vmatpush1.msra.mxu0 0.0
      %4241 = vmatprep.subr.mxu0 0.0
      %4242 = vmatpush1.msra.mxu0 0.0
      %4243 = vmatprep.subr.mxu0 0.0
      %4244 = vmatpush1.msra.mxu0 0.0
      %4245 = vmatprep.subr.mxu0 0.0
      %4246 = vmatpush1.msra.mxu0 0.0
      %4247 = vmatprep.subr.mxu0 0.0
      %4248 = vmatpush1.msra.mxu0 0.0
      %4249 = vmatprep.subr.mxu0 0.0
      %4250 = vmatpush1.msra.mxu0 0.0
      %4251 = vmatprep.subr.mxu0 0.0
      %4252 = vmatpush1.msra.mxu0 0.0
      %4253 = vmatprep.subr.mxu0 0.0
      %4254 = vmatpush1.msra.mxu0 0.0
      %4255 = vmatprep.subr.mxu0 0.0
      %4256 = vmatpush1.msra.mxu0 0.0
      %4257 = vmatprep.subr.mxu0 0.0
      %4258 = vmatpush1.msra.mxu0 0.0
      %4259 = vmatprep.subr.mxu0 0.0
      %4260 = vmatpush1.msra.mxu0 0.0
      %4261 = vmatprep.subr.mxu0 0.0
      %4262 = vmatpush1.msra.mxu0 0.0
      %4263 = vmatprep.subr.mxu0 0.0
      %4264 = vmatpush1.msra.mxu0 0.0
      %4265 = vmatprep.subr.mxu0 0.0
      %4266 = vmatpush1.msra.mxu0 0.0
      %4267 = vmatprep.subr.mxu0 0.0
      %4268 = vmatpush1.msra.mxu0 0.0
      %4269 = vmatprep.subr.mxu0 0.0
      %4270 = vmatpush1.msra.mxu0 0.0
      %4271 = vmatprep.subr.mxu0 0.0
      %4272 = vmatpush1.msra.mxu0 0.0
      %4273 = vmatprep.subr.mxu0 0.0
      %4274 = vmatpush1.msra.mxu0 0.0
      %4275 = vmatprep.subr.mxu0 0.0
      %4276 = vmatpush1.msra.mxu0 0.0
      %4277 = vmatprep.subr.mxu0 0.0
      %4278 = vmatpush1.msra.mxu0 0.0
      %4279 = vmatprep.subr.mxu0 0.0
      %4280 = vmatpush1.msra.mxu0 0.0
      %4281 = vmatprep.subr.mxu0 0.0
      %4282 = vmatpush1.msra.mxu0 0.0
      %4283 = vmatprep.subr.mxu0 0.0
      %4284 = vmatpush1.msra.mxu0 0.0
      %4285 = vmatprep.subr.mxu0 0.0
      %4286 = vmatpush1.msra.mxu0 0.0
      %4287 = vmatprep.mubr.f32.mxu0 0.0
      %4288 = vmatmul.mubr.f32.gmra.mrb[0].mxu0 %v2777
      %v4289 = vpop.f32.mrb[0].mxu0
      %v4290 = vpop.f32.mrb[0].mxu0
      %4291 = vmatprep.mubr.f32.mxu0 0.0
      %4292 = vmatmul.mubr.f32.gmra.mrb[0].mxu0 %v2780
      %v4293 = vpop.f32.mrb[0].mxu0
      %v4294 = vpop.f32.mrb[0].mxu0
      %4295 = vmatprep.mubr.f32.mxu0 0.0
      %4296 = vmatmul.mubr.f32.gmra.mrb[0].mxu0 %v2783
      %v4297 = vpop.f32.mrb[0].mxu0
      %v4298 = vadd.f32 0.0, %v4297
      %v4299 = vpop.f32.mrb[0].mxu0
      %4300 = vmatprep.mubr.f32.mxu0 0.0
      %4301 = vmatmul.mubr.f32.gmra.mrb[0].mxu0 %v2786
      %v4302 = vpop.f32.mrb[0].mxu0
      %v4303 = vadd.f32 0.0, %v4302
      %v4304 = vpop.f32.mrb[0].mxu0
      %4305 = vmatprep.mubr.f32.mxu0 0.0
      %4306 = vmatmul.mubr.f32.gmra.mrb[0].mxu0 %v2789
      %v4307 = vpop.f32.mrb[0].mxu0
      %v4308 = vadd.f32 0.0, %v4307
      %v4309 = vpop.f32.mrb[0].mxu0
      %4310 = vmatprep.mubr.f32.mxu0 0.0
      %4311 = vmatmul.mubr.f32.gmra.mrb[0].mxu0 %v2792
      %v4312 = vpop.f32.mrb[0].mxu0
      %v4313 = vadd.f32 0.0, %v4312
      %v4314 = vpop.f32.mrb[0].mxu0
      %4315 = vmatprep.mubr.f32.mxu0 0.0
      %4316 = vmatmul.mubr.f32.gmra.mrb[0].mxu0 %v2795
      %v4317 = vpop.f32.mrb[0].mxu0
      %v4318 = vadd.f32 0.0, %v4317
      %v4319 = vpop.f32.mrb[0].mxu0
      %4320 = vmatprep.mubr.f32.mxu0 0.0
      %4321 = vmatmul.mubr.f32.gmra.mrb[0].mxu0 %v2798
      %v4322 = vpop.f32.mrb[0].mxu0
      %v4323 = vadd.f32 0.0, %v4322
      %v4324 = vpop.f32.mrb[0].mxu0
      %4325 = vmatprep.mubr.f32.mxu0 0.0
      %4326 = vmatmul.mubr.f32.gmra.mrb[0].mxu0 %v2801
      %v4327 = vpop.f32.mrb[0].mxu0
      %v4328 = vadd.f32 0.0, %v4327
      %v4329 = vpop.f32.mrb[0].mxu0
      %4330 = vmatprep.mubr.f32.mxu0 0.0
      %4331 = vmatmul.mubr.f32.gmra.mrb[0].mxu0 %v2804
      %v4332 = vpop.f32.mrb[0].mxu0
      %v4333 = vadd.f32 0.0, %v4332
      %v4334 = vpop.f32.mrb[0].mxu0
      %4335 = vmatprep.mubr.f32.mxu0 0.0
      %4336 = vmatmul.mubr.f32.gmra.mrb[0].mxu0 %v2807
      %v4337 = vpop.f32.mrb[0].mxu0
      %v4338 = vadd.f32 0.0, %v4337
      %v4339 = vpop.f32.mrb[0].mxu0
      %4340 = vmatprep.mubr.f32.mxu0 0.0
      %4341 = vmatmul.mubr.f32.gmra.mrb[0].mxu0 %v2810
      %v4342 = vpop.f32.mrb[0].mxu0
      %v4343 = vadd.f32 0.0, %v4342
      %v4344 = vpop.f32.mrb[0].mxu0
      %4345 = vmatprep.mubr.f32.mxu0 0.0
      %4346 = vmatmul.mubr.f32.gmra.mrb[0].mxu0 %v2813
      %v4347 = vpop.f32.mrb[0].mxu0
      %v4348 = vadd.f32 0.0, %v4347
      %v4349 = vpop.f32.mrb[0].mxu0
      %4350 = vmatprep.mubr.f32.mxu0 0.0
      %4351 = vmatmul.mubr.f32.gmra.mrb[0].mxu0 %v2816
      %v4352 = vpop.f32.mrb[0].mxu0
      %v4353 = vadd.f32 0.0, %v4352
      %v4354 = vpop.f32.mrb[0].mxu0
      %4355 = vmatprep.mubr.f32.mxu0 0.0
      %4356 = vmatmul.mubr.f32.gmra.mrb[0].mxu0 %v2819
      %v4357 = vpop.f32.mrb[0].mxu0
      %v4358 = vadd.f32 0.0, %v4357
      %v4359 = vpop.f32.mrb[0].mxu0
      %4360 = vmatprep.mubr.f32.mxu0 0.0
      %4361 = vmatmul.mubr.f32.gmra.mrb[0].mxu0 %v2822
      %v4362 = vpop.f32.mrb[0].mxu0
      %v4363 = vadd.f32 0.0, %v4362
      %v4364 = vpop.f32.mrb[0].mxu0
      %4365 = vmatprep.mubr.f32.mxu0 0.0
      %4366 = vmatmul.mubr.f32.gmra.mrb[0].mxu0 %v2765
      %v4367 = vpop.f32.mrb[0].mxu0
      %v4368 = vadd.f32 0.0, %v4367
      %v4369 = vpop.f32.mrb[0].mxu0
      %4370 = vmatprep.mubr.f32.mxu0 0.0
      %4371 = vmatmul.mubr.f32.gmra.mrb[0].mxu0 %v2768
      %v4372 = vpop.f32.mrb[0].mxu0
      %v4373 = vadd.f32 0.0, %v4372
      %v4374 = vpop.f32.mrb[0].mxu0
      %4375 = vmatprep.mubr.f32.mxu0 0.0
      %4376 = vmatmul.mubr.f32.gmra.mrb[0].mxu0 %v2771
      %v4377 = vpop.f32.mrb[0].mxu0
      %v4378 = vpop.f32.mrb[0].mxu0
      %4379 = vmatprep.mubr.f32.mxu0 0.0
      %4380 = vmatmul.mubr.f32.gmra.mrb[0].mxu0 %v2774
      %v4381 = vpop.f32.mrb[0].mxu0
      %v4382 = vpop.f32.mrb[0].mxu0
      %4383 = vdwg.mxu0
      %v4384 = vadd.f32 %v4205, %v4298
      %v4385 = vadd.f32 %v4206, %v4303
      %v4386 = vadd.f32 %v4207, %v4308
      %v4387 = vadd.f32 %v4208, %v4313
      %v4388 = vadd.f32 %v4209, %v4318
      %v4389 = vadd.f32 %v4210, %v4323
      %v4390 = vadd.f32 %v4211, %v4328
      %v4391 = vadd.f32 %v4212, %v4333
      %v4392 = vadd.f32 %v4213, %v4338
      %v4393 = vadd.f32 %v4214, %v4343
      %v4394 = vadd.f32 %v4215, %v4348
      %v4395 = vadd.f32 %v4216, %v4353
      %v4396 = vadd.f32 %v4217, %v4358
      %v4397 = vadd.f32 %v4218, %v4363
      %v4398 = vadd.f32 %v4219, %v4368
      %v4399 = vadd.f32 %v4220, %v4373
      %s4400 = scalar_lea.vmem %s4, 64
      %v4401 = vld [vmem:[%s4400] sm:$0xff]
      %4402 = vmatprep.subr.mxu0 0.0
      %4403 = vmatpush1.msra.mxu0 %v4401
      %4404 = vmatprep.subr.mxu0 0.0
      %4405 = vmatpush1.msra.mxu0 0.0
      %4406 = vmatprep.subr.mxu0 0.0
      %4407 = vmatpush1.msra.mxu0 0.0
      %4408 = vmatprep.subr.mxu0 0.0
      %4409 = vmatpush1.msra.mxu0 0.0
      %4410 = vmatprep.subr.mxu0 0.0
      %4411 = vmatpush1.msra.mxu0 0.0
      %4412 = vmatprep.subr.mxu0 0.0
      %4413 = vmatpush1.msra.mxu0 0.0
      %4414 = vmatprep.subr.mxu0 0.0
      %4415 = vmatpush1.msra.mxu0 0.0
      %4416 = vmatprep.subr.mxu0 0.0
      %4417 = vmatpush1.msra.mxu0 0.0
      %4418 = vmatprep.subr.mxu0 0.0
      %4419 = vmatpush1.msra.mxu0 0.0
      %4420 = vmatprep.subr.mxu0 0.0
      %4421 = vmatpush1.msra.mxu0 0.0
      %4422 = vmatprep.subr.mxu0 0.0
      %4423 = vmatpush1.msra.mxu0 0.0
      %4424 = vmatprep.subr.mxu0 0.0
      %4425 = vmatpush1.msra.mxu0 0.0
      %4426 = vmatprep.subr.mxu0 0.0
      %4427 = vmatpush1.msra.mxu0 0.0
      %4428 = vmatprep.subr.mxu0 0.0
      %4429 = vmatpush1.msra.mxu0 0.0
      %4430 = vmatprep.subr.mxu0 0.0
      %4431 = vmatpush1.msra.mxu0 0.0
      %4432 = vmatprep.subr.mxu0 0.0
      %4433 = vmatpush1.msra.mxu0 0.0
      %4434 = vmatprep.subr.mxu0 0.0
      %4435 = vmatpush1.msra.mxu0 0.0
      %4436 = vmatprep.subr.mxu0 0.0
      %4437 = vmatpush1.msra.mxu0 0.0
      %4438 = vmatprep.subr.mxu0 0.0
      %4439 = vmatpush1.msra.mxu0 0.0
      %4440 = vmatprep.subr.mxu0 0.0
      %4441 = vmatpush1.msra.mxu0 0.0
      %4442 = vmatprep.subr.mxu0 0.0
      %4443 = vmatpush1.msra.mxu0 0.0
      %4444 = vmatprep.subr.mxu0 0.0
      %4445 = vmatpush1.msra.mxu0 0.0
      %4446 = vmatprep.subr.mxu0 0.0
      %4447 = vmatpush1.msra.mxu0 0.0
      %4448 = vmatprep.subr.mxu0 0.0
      %4449 = vmatpush1.msra.mxu0 0.0
      %4450 = vmatprep.subr.mxu0 0.0
      %4451 = vmatpush1.msra.mxu0 0.0
      %4452 = vmatprep.subr.mxu0 0.0
      %4453 = vmatpush1.msra.mxu0 0.0
      %4454 = vmatprep.subr.mxu0 0.0
      %4455 = vmatpush1.msra.mxu0 0.0
      %4456 = vmatprep.subr.mxu0 0.0
      %4457 = vmatpush1.msra.mxu0 0.0
      %4458 = vmatprep.subr.mxu0 0.0
      %4459 = vmatpush1.msra.mxu0 0.0
      %4460 = vmatprep.subr.mxu0 0.0
      %4461 = vmatpush1.msra.mxu0 0.0
      %4462 = vmatprep.subr.mxu0 0.0
      %4463 = vmatpush1.msra.mxu0 0.0
      %4464 = vmatprep.subr.mxu0 0.0
      %4465 = vmatpush1.msra.mxu0 0.0
      %4466 = vmatprep.mubr.f32.mxu0 0.0
      %4467 = vmatmul.mubr.f32.gmra.mrb[0].mxu0 %v3281
      %v4468 = vpop.f32.mrb[0].mxu0
      %v4469 = vpop.f32.mrb[0].mxu0
      %4470 = vmatprep.mubr.f32.mxu0 0.0
      %4471 = vmatmul.mubr.f32.gmra.mrb[0].mxu0 %v3284
      %v4472 = vpop.f32.mrb[0].mxu0
      %v4473 = vpop.f32.mrb[0].mxu0
      %4474 = vmatprep.mubr.f32.mxu0 0.0
      %4475 = vmatmul.mubr.f32.gmra.mrb[0].mxu0 %v3287
      %v4476 = vpop.f32.mrb[0].mxu0
      %v4477 = vadd.f32 0.0, %v4476
      %v4478 = vpop.f32.mrb[0].mxu0
      %4479 = vmatprep.mubr.f32.mxu0 0.0
      %4480 = vmatmul.mubr.f32.gmra.mrb[0].mxu0 %v3290
      %v4481 = vpop.f32.mrb[0].mxu0
      %v4482 = vadd.f32 0.0, %v4481
      %v4483 = vpop.f32.mrb[0].mxu0
      %4484 = vmatprep.mubr.f32.mxu0 0.0
      %4485 = vmatmul.mubr.f32.gmra.mrb[0].mxu0 %v3293
      %v4486 = vpop.f32.mrb[0].mxu0
      %v4487 = vadd.f32 0.0, %v4486
      %v4488 = vpop.f32.mrb[0].mxu0
      %4489 = vmatprep.mubr.f32.mxu0 0.0
      %4490 = vmatmul.mubr.f32.gmra.mrb[0].mxu0 %v3296
      %v4491 = vpop.f32.mrb[0].mxu0
      %v4492 = vadd.f32 0.0, %v4491
      %v4493 = vpop.f32.mrb[0].mxu0
      %4494 = vmatprep.mubr.f32.mxu0 0.0
      %4495 = vmatmul.mubr.f32.gmra.mrb[0].mxu0 %v3299
      %v4496 = vpop.f32.mrb[0].mxu0
      %v4497 = vadd.f32 0.0, %v4496
      %v4498 = vpop.f32.mrb[0].mxu0
      %4499 = vmatprep.mubr.f32.mxu0 0.0
      %4500 = vmatmul.mubr.f32.gmra.mrb[0].mxu0 %v3302
      %v4501 = vpop.f32.mrb[0].mxu0
      %v4502 = vadd.f32 0.0, %v4501
      %v4503 = vpop.f32.mrb[0].mxu0
      %4504 = vmatprep.mubr.f32.mxu0 0.0
      %4505 = vmatmul.mubr.f32.gmra.mrb[0].mxu0 %v3305
      %v4506 = vpop.f32.mrb[0].mxu0
      %v4507 = vadd.f32 0.0, %v4506
      %v4508 = vpop.f32.mrb[0].mxu0
      %4509 = vmatprep.mubr.f32.mxu0 0.0
      %4510 = vmatmul.mubr.f32.gmra.mrb[0].mxu0 %v3308
      %v4511 = vpop.f32.mrb[0].mxu0
      %v4512 = vadd.f32 0.0, %v4511
      %v4513 = vpop.f32.mrb[0].mxu0
      %4514 = vmatprep.mubr.f32.mxu0 0.0
      %4515 = vmatmul.mubr.f32.gmra.mrb[0].mxu0 %v3311
      %v4516 = vpop.f32.mrb[0].mxu0
      %v4517 = vadd.f32 0.0, %v4516
      %v4518 = vpop.f32.mrb[0].mxu0
      %4519 = vmatprep.mubr.f32.mxu0 0.0
      %4520 = vmatmul.mubr.f32.gmra.mrb[0].mxu0 %v3314
      %v4521 = vpop.f32.mrb[0].mxu0
      %v4522 = vadd.f32 0.0, %v4521
      %v4523 = vpop.f32.mrb[0].mxu0
      %4524 = vmatprep.mubr.f32.mxu0 0.0
      %4525 = vmatmul.mubr.f32.gmra.mrb[0].mxu0 %v3317
      %v4526 = vpop.f32.mrb[0].mxu0
      %v4527 = vadd.f32 0.0, %v4526
      %v4528 = vpop.f32.mrb[0].mxu0
      %4529 = vmatprep.mubr.f32.mxu0 0.0
      %4530 = vmatmul.mubr.f32.gmra.mrb[0].mxu0 %v3320
      %v4531 = vpop.f32.mrb[0].mxu0
      %v4532 = vadd.f32 0.0, %v4531
      %v4533 = vpop.f32.mrb[0].mxu0
      %4534 = vmatprep.mubr.f32.mxu0 0.0
      %4535 = vmatmul.mubr.f32.gmra.mrb[0].mxu0 %v3323
      %v4536 = vpop.f32.mrb[0].mxu0
      %v4537 = vadd.f32 0.0, %v4536
      %v4538 = vpop.f32.mrb[0].mxu0
      %4539 = vmatprep.mubr.f32.mxu0 0.0
      %4540 = vmatmul.mubr.f32.gmra.mrb[0].mxu0 %v3326
      %v4541 = vpop.f32.mrb[0].mxu0
      %v4542 = vadd.f32 0.0, %v4541
      %v4543 = vpop.f32.mrb[0].mxu0
      %4544 = vmatprep.mubr.f32.mxu0 0.0
      %4545 = vmatmul.mubr.f32.gmra.mrb[0].mxu0 %v3269
      %v4546 = vpop.f32.mrb[0].mxu0
      %v4547 = vadd.f32 0.0, %v4546
      %v4548 = vpop.f32.mrb[0].mxu0
      %4549 = vmatprep.mubr.f32.mxu0 0.0
      %4550 = vmatmul.mubr.f32.gmra.mrb[0].mxu0 %v3272
      %v4551 = vpop.f32.mrb[0].mxu0
      %v4552 = vadd.f32 0.0, %v4551
      %v4553 = vpop.f32.mrb[0].mxu0
      %4554 = vmatprep.mubr.f32.mxu0 0.0
      %4555 = vmatmul.mubr.f32.gmra.mrb[0].mxu0 %v3275
      %v4556 = vpop.f32.mrb[0].mxu0
      %v4557 = vpop.f32.mrb[0].mxu0
      %4558 = vmatprep.mubr.f32.mxu0 0.0
      %4559 = vmatmul.mubr.f32.gmra.mrb[0].mxu0 %v3278
      %v4560 = vpop.f32.mrb[0].mxu0
      %v4561 = vpop.f32.mrb[0].mxu0
      %4562 = vdwg.mxu0
      %v4563 = vadd.f32 %v4384, %v4477
      %v4564 = vadd.f32 %v4385, %v4482
      %v4565 = vadd.f32 %v4386, %v4487
      %v4566 = vadd.f32 %v4387, %v4492
      %v4567 = vadd.f32 %v4388, %v4497
      %v4568 = vadd.f32 %v4389, %v4502
      %v4569 = vadd.f32 %v4390, %v4507
      %v4570 = vadd.f32 %v4391, %v4512
      %v4571 = vadd.f32 %v4392, %v4517
      %v4572 = vadd.f32 %v4393, %v4522
      %v4573 = vadd.f32 %v4394, %v4527
      %v4574 = vadd.f32 %v4395, %v4532
      %v4575 = vadd.f32 %v4396, %v4537
      %v4576 = vadd.f32 %v4397, %v4542
      %v4577 = vadd.f32 %v4398, %v4547
      %v4578 = vadd.f32 %v4399, %v4552
      %v4579 = vld [vmem:[%s5] sm:$0x1]
      %v4581 = vlaneseq
      %v4582 = vshrl.u32 %v4581, 7
      %v4583 = vsub.s32 0, %v4582
      %v4584 = vrot.slane %v4579, %v4583
      %v4586 = vmul.f32 %v4563, %v4584
      %v4587 = vmul.f32 %v4564, %v4584
      %v4588 = vmul.f32 %v4565, %v4584
      %v4589 = vmul.f32 %v4566, %v4584
      %v4590 = vmul.f32 %v4567, %v4584
      %v4591 = vmul.f32 %v4568, %v4584
      %v4592 = vmul.f32 %v4569, %v4584
      %v4593 = vmul.f32 %v4570, %v4584
      %v4594 = vmul.f32 %v4571, %v4584
      %v4595 = vmul.f32 %v4572, %v4584
      %v4596 = vmul.f32 %v4573, %v4584
      %v4597 = vmul.f32 %v4574, %v4584
      %v4598 = vmul.f32 %v4575, %v4584
      %v4599 = vmul.f32 %v4576, %v4584
      %v4600 = vmul.f32 %v4577, %v4584
      %v4601 = vmul.f32 %v4578, %v4584
      %v4602 = vld [vmem:[%s6] sm:$0x1]
      %v4604 = vlaneseq
      %v4605 = vshrl.u32 %v4604, 7
      %v4606 = vsub.s32 0, %v4605
      %v4607 = vrot.slane %v4602, %v4606
      %v4609 = vadd.f32 %v4586, %v4607
      %v4610 = vadd.f32 %v4587, %v4607
      %v4611 = vadd.f32 %v4588, %v4607
      %v4612 = vadd.f32 %v4589, %v4607
      %v4613 = vadd.f32 %v4590, %v4607
      %v4614 = vadd.f32 %v4591, %v4607
      %v4615 = vadd.f32 %v4592, %v4607
      %v4616 = vadd.f32 %v4593, %v4607
      %v4617 = vadd.f32 %v4594, %v4607
      %v4618 = vadd.f32 %v4595, %v4607
      %v4619 = vadd.f32 %v4596, %v4607
      %v4620 = vadd.f32 %v4597, %v4607
      %v4621 = vadd.f32 %v4598, %v4607
      %v4622 = vadd.f32 %v4599, %v4607
      %v4623 = vadd.f32 %v4600, %v4607
      %v4624 = vadd.f32 %v4601, %v4607
      %v4625 = vmax.f32 %v4609, 0.0
      %v4626 = vmax.f32 %v4610, 0.0
      %v4627 = vmax.f32 %v4611, 0.0
      %v4628 = vmax.f32 %v4612, 0.0
      %v4629 = vmax.f32 %v4613, 0.0
      %v4630 = vmax.f32 %v4614, 0.0
      %v4631 = vmax.f32 %v4615, 0.0
      %v4632 = vmax.f32 %v4616, 0.0
      %v4633 = vmax.f32 %v4617, 0.0
      %v4634 = vmax.f32 %v4618, 0.0
      %v4635 = vmax.f32 %v4619, 0.0
      %v4636 = vmax.f32 %v4620, 0.0
      %v4637 = vmax.f32 %v4621, 0.0
      %v4638 = vmax.f32 %v4622, 0.0
      %v4639 = vmax.f32 %v4623, 0.0
      %v4640 = vmax.f32 %v4624, 0.0
      %4641 = vst.msk [vmem:[%s300] sm:$0xff] %vm2763, %v4625
      %4642 = vst.msk [vmem:[%s300 + $0x8] sm:$0xff] %vm2763, %v4626
      %4643 = vst.msk [vmem:[%s300 + $0x10] sm:$0xff] %vm2763, %v4627
      %4644 = vst.msk [vmem:[%s300 + $0x18] sm:$0xff] %vm2763, %v4628
      %4645 = vst.msk [vmem:[%s300 + $0x20] sm:$0xff] %vm2763, %v4629
      %4646 = vst.msk [vmem:[%s300 + $0x28] sm:$0xff] %vm2763, %v4630
      %4647 = vst.msk [vmem:[%s300 + $0x30] sm:$0xff] %vm2763, %v4631
      %4648 = vst.msk [vmem:[%s300 + $0x38] sm:$0xff] %vm2763, %v4632
      %4649 = vst.msk [vmem:[%s300 + $0x40] sm:$0xff] %vm2763, %v4633
      %4650 = vst.msk [vmem:[%s300 + $0x48] sm:$0xff] %vm2763, %v4634
      %4651 = vst.msk [vmem:[%s300 + $0x50] sm:$0xff] %vm2763, %v4635
      %4652 = vst.msk [vmem:[%s300 + $0x58] sm:$0xff] %vm2763, %v4636
      %4653 = vst.msk [vmem:[%s300 + $0x60] sm:$0xff] %vm2763, %v4637
      %4654 = vst.msk [vmem:[%s300 + $0x68] sm:$0xff] %vm2763, %v4638
      %4655 = vst.msk [vmem:[%s300 + $0x70] sm:$0xff] %vm2763, %v4639
      %4656 = vst.msk [vmem:[%s300 + $0x78] sm:$0xff] %vm2763, %v4640
      %s4657 = smul.u32 16, %s23
      %p4658 = scmp.lt.s32.totalorder %s22, 1
      %s4659 = scalar_select %p4658, %s22, 1
      %p4660 = scmp.lt.s32.totalorder %s4657, 31
      %s4661 = scalar_select %p4660, %s4657, 31
      %s4662 = smul.addr %s4659, 32
      %s4663 = sadd.s32 %s4661, %s4662
      %s4664 = smul.addr %s4663, 8
      %s4665 = scalar_lea.vmem %s7, %s4664
      // Predicated region
      $region49: #{tpu_custom_call.1} parent=47 // pred_check
        %p4666 = pneg %p202
      $region50: #{tpu_custom_call.1} parent=47 // pred_check_branch
        %4668 = sbr.rel (%p4666) target = $region52
      $region51: #{tpu_custom_call.1} parent=47 // pred_region
        %s4669 = smul.u32 16, %s23
      $region52: #{tpu_custom_call.1} parent=47 // pred_fallthru
        _
    $region48: #{tpu_custom_call.1} parent=5 // pred_fallthru
      _
    %p4670 = scmp.le.s32.totalorder 2, %s13
    // Predicated region
    $region53: #{tpu_custom_call.1} parent=5 // pred_check
      %p4671 = pneg %p4670
    $region54: #{tpu_custom_call.1} parent=5 // pred_check_branch
      %4673 = sbr.rel (%p4671) target = $region56
    $region55: #{tpu_custom_call.1} parent=5 // pred_region
      %s4674 = ssub.s32 %s13, 2
      // Predicated region
      $region57: #{tpu_custom_call.1} parent=55 // pred_check
        %p4675 = pneg %p208
      $region58: #{tpu_custom_call.1} parent=55 // pred_check_branch
        %4677 = sbr.rel (%p4675) target = $region60
      $region59: #{tpu_custom_call.1} parent=55 // pred_region
        %s4678 = smul.u32 16, %s25
        %p4679 = scmp.lt.s32.totalorder %s24, 1
        %s4680 = scalar_select %p4679, %s24, 1
        %p4681 = scmp.lt.s32.totalorder %s4678, 31
        %s4682 = scalar_select %p4681, %s4678, 31
        %s4683 = smul.addr %s4680, 32
        %s4684 = sadd.s32 %s4682, %s4683
        %s4685 = smul.addr %s4684, 8
        %s4686 = scalar_lea.vmem %s7, %s4685
      $region60: #{tpu_custom_call.1} parent=55 // pred_fallthru
        _
    $region56: #{tpu_custom_call.1} parent=5 // pred_fallthru
      _
  $region6: #{tpu_custom_call.1} parent=0 // loop_footer
    %s17 = sadd.s32 1, %s13
  $region7: #{tpu_custom_call.1} parent=0 // loop_footer_branch
    %12 = sbr.rel target = $region3
  $region8: #{tpu_custom_call.1} parent=0 // loop_exit
    _

</llo_original>
